<compile_context>
chip_gen: v7x
topology: tpu7x:2x2x1
jax: 0.10.0
libtpu: 0.0.40
codegen_flags: <defaults>
</compile_context>

<pallas_src>
import functools

import jax
import jax.numpy as jnp
from jax.experimental import pallas as pl
from jax.experimental.pallas import tpu as pltpu

_NUM_LAYERS = 8
_HIDDEN_DIMS = [1024, 512, 256, 128, 64, 32, 16, 2]
_BN_EPS = 1e-5


# ---------------------------------------------------------------------------
# Fused kernel: 8 x (bf16 matmul -> f32 bias -> f32 SiLU), final layer no SiLU.
# Activations never leave the chip between layers.
# ---------------------------------------------------------------------------
def _deepnet2_kernel(*refs, num_layers):
    x_ref = refs[0]
    w_refs = refs[1:1 + num_layers]                      # bf16 (in, out) each
    b_refs = refs[1 + num_layers:1 + 2 * num_layers]     # f32  (1, out) each
    o_ref = refs[1 + 2 * num_layers]

    h = x_ref[...]                                       # (TILE_B, n_points) f32
    for i in range(num_layers):
        # bf16 operands on the MXU, f32 accumulation.
        y = jnp.dot(h.astype(jnp.bfloat16), w_refs[i][...],
                    preferred_element_type=jnp.float32)
        y = y + b_refs[i][...]                           # folded BN bias (f32)
        if i < num_layers - 1:
            y = y * jax.nn.sigmoid(y)                    # SiLU epilogue in f32
        # Dropout is identity in eval mode.
        h = y
    o_ref[...] = h.astype(o_ref.dtype)


# ---------------------------------------------------------------------------
# Wrapper: one pallas_call for the whole network, optional batch tiling.
# ---------------------------------------------------------------------------
def deepnet2_forward(x, params, *, tile_b=None):
    B, n_points = x.shape
    ws = [p[0] for p in params]
    bs = [p[1] for p in params]
    dims = [n_points] + [w.shape[1] for w in ws]
    out_dim = dims[-1]

    if tile_b is None:
        # Small batches: single block. Larger: tile (multiple of 8 required).
        tile_b = B if B <= 512 else 512
    assert B % tile_b == 0, "batch must be divisible by tile_b"
    grid = (B // tile_b,)

    in_specs = [pl.BlockSpec((tile_b, n_points), lambda i: (i, 0))]
    for w in ws:  # weights / biases are fully resident (same block every step)
        in_specs.append(pl.BlockSpec(w.shape, lambda i: (0, 0)))
    for b in bs:
        in_specs.append(pl.BlockSpec(b.shape, lambda i: (0, 0)))
    out_spec = pl.BlockSpec((tile_b, out_dim), lambda i: (i, 0))

    flops = 2 * B * sum(dims[k] * dims[k + 1] for k in range(_NUM_LAYERS))
    transcendentals = B * sum(dims[1:_NUM_LAYERS])       # one sigmoid / hidden act
    bytes_accessed = (
        x.size * x.dtype.itemsize
        + sum(w.size * w.dtype.itemsize for w in ws)
        + sum(b.size * b.dtype.itemsize for b in bs)
        + B * out_dim * 4)

    kernel = functools.partial(_deepnet2_kernel, num_layers=_NUM_LAYERS)
    return pl.pallas_call(
        kernel,
        out_shape=jax.ShapeDtypeStruct((B, out_dim), jnp.float32),
        grid=grid,
        in_specs=in_specs,
        out_specs=out_spec,
        compiler_params=pltpu.CompilerParams(
            dimension_semantics=("parallel",),
            vmem_limit_bytes=32 * 1024 * 1024),          # safe on v5e/v6e/v7x
        cost_estimate=pl.CostEstimate(
            flops=flops,
            transcendentals=transcendentals,
            bytes_accessed=bytes_accessed),
    )(x, *ws, *bs)


# ---------------------------------------------------------------------------
# Parameter construction: PyTorch-default-style Linear init, BatchNorm at its
# init state folded into (W, b).  Weights stored transposed (in, out), bf16.
# ---------------------------------------------------------------------------
def init_params(key, n_points):
    dims = [n_points] + _HIDDEN_DIMS
    params = []
    for i in range(_NUM_LAYERS):
        fan_in, fan_out = dims[i], dims[i + 1]
        key, kw, kb = jax.random.split(key, 3)
        bound = 1.0 / jnp.sqrt(fan_in)
        w = jax.random.uniform(kw, (fan_in, fan_out), jnp.float32, -bound, bound)
        b = jax.random.uniform(kb, (1, fan_out), jnp.float32, -bound, bound)
        if i < _NUM_LAYERS - 1:
            # BatchNorm1d at init: gamma=1, beta=0, running_mean=0, running_var=1
            gamma = jnp.ones((fan_out,), jnp.float32)
            beta = jnp.zeros((fan_out,), jnp.float32)
            running_mean = jnp.zeros((fan_out,), jnp.float32)
            running_var = jnp.ones((fan_out,), jnp.float32)
            scale = gamma / jnp.sqrt(running_var + _BN_EPS)
            shift = beta - running_mean * scale
            w = w * scale[None, :]
            b = b * scale[None, :] + shift[None, :]
        params.append((w.astype(jnp.bfloat16), b))       # bf16 W, f32 bias
    return params


# Pure-JAX reference with the same folding / bf16 casts (for validation).
def reference_forward(x, params):
    h = x
    for i, (w, b) in enumerate(params):
        y = jnp.dot(h.astype(jnp.bfloat16), w,
                    preferred_element_type=jnp.float32) + b
        if i < len(params) - 1:
            y = y * jax.nn.sigmoid(y)
        h = y
    return h


if __name__ == "__main__":
    key = jax.random.PRNGKey(0)
    k_in, k_params = jax.random.split(key)

    batch, n_points = 8, 32
    x = jax.random.normal(k_in, (batch, n_points), jnp.float32)
    params = init_params(k_params, n_points)

    fwd = jax.jit(deepnet2_forward)
    out = fwd(x, params)
    jax.block_until_ready(out)

    assert out.shape == (batch, 2), out.shape
    ref = reference_forward(x, params)
    assert jnp.all(jnp.isfinite(out))
    assert jnp.allclose(out, ref, atol=2e-2, rtol=2e-2), (out, ref)
    print("KERNEL_OK")
</pallas_src>

<mosaic_0001>
module attributes {stable_mosaic.version = 11 : i64} {
  func.func @_deepnet2_kernel(%arg0: i32, %arg1: memref<8x32xf32, #tpu.memory_space<vmem>>, %arg2: memref<32x1024xbf16, #tpu.memory_space<vmem>>, %arg3: memref<1024x512xbf16, #tpu.memory_space<vmem>>, %arg4: memref<512x256xbf16, #tpu.memory_space<vmem>>, %arg5: memref<256x128xbf16, #tpu.memory_space<vmem>>, %arg6: memref<128x64xbf16, #tpu.memory_space<vmem>>, %arg7: memref<64x32xbf16, #tpu.memory_space<vmem>>, %arg8: memref<32x16xbf16, #tpu.memory_space<vmem>>, %arg9: memref<16x2xbf16, #tpu.memory_space<vmem>>, %arg10: memref<1x1024xf32, #tpu.memory_space<vmem>>, %arg11: memref<1x512xf32, #tpu.memory_space<vmem>>, %arg12: memref<1x256xf32, #tpu.memory_space<vmem>>, %arg13: memref<1x128xf32, #tpu.memory_space<vmem>>, %arg14: memref<1x64xf32, #tpu.memory_space<vmem>>, %arg15: memref<1x32xf32, #tpu.memory_space<vmem>>, %arg16: memref<1x16xf32, #tpu.memory_space<vmem>>, %arg17: memref<1x2xf32, #tpu.memory_space<vmem>>, %arg18: memref<8x2xf32, #tpu.memory_space<vmem>>) attributes {dimension_semantics = [#tpu.dimension_semantics<parallel>], iteration_bounds = array<i64: 1>, scalar_prefetch = 0 : i64, scratch_operands = 0 : i64, tpu.core_type = #tpu.core_type<tc>, window_params = [{transform_indices = @transform_0, window_bounds = array<i64: 8, 32>}, {pipeline_mode = #tpu.pipeline_mode<synchronous>, transform_indices = @transform_1, window_bounds = array<i64: 32, 1024>}, {pipeline_mode = #tpu.pipeline_mode<synchronous>, transform_indices = @transform_2, window_bounds = array<i64: 1024, 512>}, {pipeline_mode = #tpu.pipeline_mode<synchronous>, transform_indices = @transform_3, window_bounds = array<i64: 512, 256>}, {pipeline_mode = #tpu.pipeline_mode<synchronous>, transform_indices = @transform_4, window_bounds = array<i64: 256, 128>}, {pipeline_mode = #tpu.pipeline_mode<synchronous>, transform_indices = @transform_5, window_bounds = array<i64: 128, 64>}, {pipeline_mode = #tpu.pipeline_mode<synchronous>, transform_indices = @transform_6, window_bounds = array<i64: 64, 32>}, {pipeline_mode = #tpu.pipeline_mode<synchronous>, transform_indices = @transform_7, window_bounds = array<i64: 32, 16>}, {pipeline_mode = #tpu.pipeline_mode<synchronous>, transform_indices = @transform_8, window_bounds = array<i64: 16, 2>}, {pipeline_mode = #tpu.pipeline_mode<synchronous>, transform_indices = @transform_9, window_bounds = array<i64: 1, 1024>}, {pipeline_mode = #tpu.pipeline_mode<synchronous>, transform_indices = @transform_10, window_bounds = array<i64: 1, 512>}, {pipeline_mode = #tpu.pipeline_mode<synchronous>, transform_indices = @transform_11, window_bounds = array<i64: 1, 256>}, {pipeline_mode = #tpu.pipeline_mode<synchronous>, transform_indices = @transform_12, window_bounds = array<i64: 1, 128>}, {pipeline_mode = #tpu.pipeline_mode<synchronous>, transform_indices = @transform_13, window_bounds = array<i64: 1, 64>}, {pipeline_mode = #tpu.pipeline_mode<synchronous>, transform_indices = @transform_14, window_bounds = array<i64: 1, 32>}, {pipeline_mode = #tpu.pipeline_mode<synchronous>, transform_indices = @transform_15, window_bounds = array<i64: 1, 16>}, {pipeline_mode = #tpu.pipeline_mode<synchronous>, transform_indices = @transform_16, window_bounds = array<i64: 1, 2>}, {transform_indices = @transform_17, window_bounds = array<i64: 8, 2>}]} {
    %c0 = arith.constant 0 : index
    %c0_0 = arith.constant 0 : index
    %0 = vector.load %arg1[%c0, %c0_0] : memref<8x32xf32, #tpu.memory_space<vmem>>, vector<8x32xf32>
    %1 = arith.truncf %0 : vector<8x32xf32> to vector<8x32xbf16>
    %c0_1 = arith.constant 0 : index
    %c0_2 = arith.constant 0 : index
    %2 = vector.load %arg2[%c0_1, %c0_2] : memref<32x1024xbf16, #tpu.memory_space<vmem>>, vector<32x1024xbf16>
    %cst = arith.constant dense<0.000000e+00> : vector<8x1024xf32>
    %3 = tpu.matmul %1, %2, %cst {dimension_numbers = #tpu.dot_dimension_numbers<[1], [0], [0], [1], [0, 0, 1, 1], [], []>} : vector<8x32xbf16>, vector<32x1024xbf16>, vector<8x1024xf32> -> vector<8x1024xf32>
    %c0_3 = arith.constant 0 : index
    %c0_4 = arith.constant 0 : index
    %4 = vector.load %arg10[%c0_3, %c0_4] : memref<1x1024xf32, #tpu.memory_space<vmem>>, vector<1x1024xf32>
    %5 = vector.broadcast %4 : vector<1x1024xf32> to vector<8x1024xf32>
    %6 = arith.addf %3, %5 : vector<8x1024xf32>
    %7 = arith.negf %6 : vector<8x1024xf32>
    %8 = math.exp %7 : vector<8x1024xf32>
    %cst_5 = arith.constant 1.000000e+00 : f32
    %9 = vector.broadcast %cst_5 : f32 to vector<8x1024xf32>
    %10 = arith.addf %9, %8 : vector<8x1024xf32>
    %11 = arith.divf %9, %10 : vector<8x1024xf32>
    %12 = arith.mulf %6, %11 : vector<8x1024xf32>
    %13 = arith.truncf %12 : vector<8x1024xf32> to vector<8x1024xbf16>
    %c0_6 = arith.constant 0 : index
    %c0_7 = arith.constant 0 : index
    %14 = vector.load %arg3[%c0_6, %c0_7] : memref<1024x512xbf16, #tpu.memory_space<vmem>>, vector<1024x512xbf16>
    %cst_8 = arith.constant dense<0.000000e+00> : vector<8x512xf32>
    %15 = tpu.matmul %13, %14, %cst_8 {dimension_numbers = #tpu.dot_dimension_numbers<[1], [0], [0], [1], [0, 0, 1, 1], [], []>} : vector<8x1024xbf16>, vector<1024x512xbf16>, vector<8x512xf32> -> vector<8x512xf32>
    %c0_9 = arith.constant 0 : index
    %c0_10 = arith.constant 0 : index
    %16 = vector.load %arg11[%c0_9, %c0_10] : memref<1x512xf32, #tpu.memory_space<vmem>>, vector<1x512xf32>
    %17 = vector.broadcast %16 : vector<1x512xf32> to vector<8x512xf32>
    %18 = arith.addf %15, %17 : vector<8x512xf32>
    %19 = arith.negf %18 : vector<8x512xf32>
    %20 = math.exp %19 : vector<8x512xf32>
    %cst_11 = arith.constant 1.000000e+00 : f32
    %21 = vector.broadcast %cst_11 : f32 to vector<8x512xf32>
    %22 = arith.addf %21, %20 : vector<8x512xf32>
    %23 = arith.divf %21, %22 : vector<8x512xf32>
    %24 = arith.mulf %18, %23 : vector<8x512xf32>
    %25 = arith.truncf %24 : vector<8x512xf32> to vector<8x512xbf16>
    %c0_12 = arith.constant 0 : index
    %c0_13 = arith.constant 0 : index
    %26 = vector.load %arg4[%c0_12, %c0_13] : memref<512x256xbf16, #tpu.memory_space<vmem>>, vector<512x256xbf16>
    %cst_14 = arith.constant dense<0.000000e+00> : vector<8x256xf32>
    %27 = tpu.matmul %25, %26, %cst_14 {dimension_numbers = #tpu.dot_dimension_numbers<[1], [0], [0], [1], [0, 0, 1, 1], [], []>} : vector<8x512xbf16>, vector<512x256xbf16>, vector<8x256xf32> -> vector<8x256xf32>
    %c0_15 = arith.constant 0 : index
    %c0_16 = arith.constant 0 : index
    %28 = vector.load %arg12[%c0_15, %c0_16] : memref<1x256xf32, #tpu.memory_space<vmem>>, vector<1x256xf32>
    %29 = vector.broadcast %28 : vector<1x256xf32> to vector<8x256xf32>
    %30 = arith.addf %27, %29 : vector<8x256xf32>
    %31 = arith.negf %30 : vector<8x256xf32>
    %32 = math.exp %31 : vector<8x256xf32>
    %cst_17 = arith.constant 1.000000e+00 : f32
    %33 = vector.broadcast %cst_17 : f32 to vector<8x256xf32>
    %34 = arith.addf %33, %32 : vector<8x256xf32>
    %35 = arith.divf %33, %34 : vector<8x256xf32>
    %36 = arith.mulf %30, %35 : vector<8x256xf32>
    %37 = arith.truncf %36 : vector<8x256xf32> to vector<8x256xbf16>
    %c0_18 = arith.constant 0 : index
    %c0_19 = arith.constant 0 : index
    %38 = vector.load %arg5[%c0_18, %c0_19] : memref<256x128xbf16, #tpu.memory_space<vmem>>, vector<256x128xbf16>
    %cst_20 = arith.constant dense<0.000000e+00> : vector<8x128xf32>
    %39 = tpu.matmul %37, %38, %cst_20 {dimension_numbers = #tpu.dot_dimension_numbers<[1], [0], [0], [1], [0, 0, 1, 1], [], []>} : vector<8x256xbf16>, vector<256x128xbf16>, vector<8x128xf32> -> vector<8x128xf32>
    %c0_21 = arith.constant 0 : index
    %c0_22 = arith.constant 0 : index
    %40 = vector.load %arg13[%c0_21, %c0_22] : memref<1x128xf32, #tpu.memory_space<vmem>>, vector<1x128xf32>
    %41 = vector.broadcast %40 : vector<1x128xf32> to vector<8x128xf32>
    %42 = arith.addf %39, %41 : vector<8x128xf32>
    %43 = arith.negf %42 : vector<8x128xf32>
    %44 = math.exp %43 : vector<8x128xf32>
    %cst_23 = arith.constant 1.000000e+00 : f32
    %45 = vector.broadcast %cst_23 : f32 to vector<8x128xf32>
    %46 = arith.addf %45, %44 : vector<8x128xf32>
    %47 = arith.divf %45, %46 : vector<8x128xf32>
    %48 = arith.mulf %42, %47 : vector<8x128xf32>
    %49 = arith.truncf %48 : vector<8x128xf32> to vector<8x128xbf16>
    %c0_24 = arith.constant 0 : index
    %c0_25 = arith.constant 0 : index
    %50 = vector.load %arg6[%c0_24, %c0_25] : memref<128x64xbf16, #tpu.memory_space<vmem>>, vector<128x64xbf16>
    %cst_26 = arith.constant dense<0.000000e+00> : vector<8x64xf32>
    %51 = tpu.matmul %49, %50, %cst_26 {dimension_numbers = #tpu.dot_dimension_numbers<[1], [0], [0], [1], [0, 0, 1, 1], [], []>} : vector<8x128xbf16>, vector<128x64xbf16>, vector<8x64xf32> -> vector<8x64xf32>
    %c0_27 = arith.constant 0 : index
    %c0_28 = arith.constant 0 : index
    %52 = vector.load %arg14[%c0_27, %c0_28] : memref<1x64xf32, #tpu.memory_space<vmem>>, vector<1x64xf32>
    %53 = vector.broadcast %52 : vector<1x64xf32> to vector<8x64xf32>
    %54 = arith.addf %51, %53 : vector<8x64xf32>
    %55 = arith.negf %54 : vector<8x64xf32>
    %56 = math.exp %55 : vector<8x64xf32>
    %cst_29 = arith.constant 1.000000e+00 : f32
    %57 = vector.broadcast %cst_29 : f32 to vector<8x64xf32>
    %58 = arith.addf %57, %56 : vector<8x64xf32>
    %59 = arith.divf %57, %58 : vector<8x64xf32>
    %60 = arith.mulf %54, %59 : vector<8x64xf32>
    %61 = arith.truncf %60 : vector<8x64xf32> to vector<8x64xbf16>
    %c0_30 = arith.constant 0 : index
    %c0_31 = arith.constant 0 : index
    %62 = vector.load %arg7[%c0_30, %c0_31] : memref<64x32xbf16, #tpu.memory_space<vmem>>, vector<64x32xbf16>
    %cst_32 = arith.constant dense<0.000000e+00> : vector<8x32xf32>
    %63 = tpu.matmul %61, %62, %cst_32 {dimension_numbers = #tpu.dot_dimension_numbers<[1], [0], [0], [1], [0, 0, 1, 1], [], []>} : vector<8x64xbf16>, vector<64x32xbf16>, vector<8x32xf32> -> vector<8x32xf32>
    %c0_33 = arith.constant 0 : index
    %c0_34 = arith.constant 0 : index
    %64 = vector.load %arg15[%c0_33, %c0_34] : memref<1x32xf32, #tpu.memory_space<vmem>>, vector<1x32xf32>
    %65 = vector.broadcast %64 : vector<1x32xf32> to vector<8x32xf32>
    %66 = arith.addf %63, %65 : vector<8x32xf32>
    %67 = arith.negf %66 : vector<8x32xf32>
    %68 = math.exp %67 : vector<8x32xf32>
    %cst_35 = arith.constant 1.000000e+00 : f32
    %69 = vector.broadcast %cst_35 : f32 to vector<8x32xf32>
    %70 = arith.addf %69, %68 : vector<8x32xf32>
    %71 = arith.divf %69, %70 : vector<8x32xf32>
    %72 = arith.mulf %66, %71 : vector<8x32xf32>
    %73 = arith.truncf %72 : vector<8x32xf32> to vector<8x32xbf16>
    %c0_36 = arith.constant 0 : index
    %c0_37 = arith.constant 0 : index
    %74 = vector.load %arg8[%c0_36, %c0_37] : memref<32x16xbf16, #tpu.memory_space<vmem>>, vector<32x16xbf16>
    %cst_38 = arith.constant dense<0.000000e+00> : vector<8x16xf32>
    %75 = tpu.matmul %73, %74, %cst_38 {dimension_numbers = #tpu.dot_dimension_numbers<[1], [0], [0], [1], [0, 0, 1, 1], [], []>} : vector<8x32xbf16>, vector<32x16xbf16>, vector<8x16xf32> -> vector<8x16xf32>
    %c0_39 = arith.constant 0 : index
    %c0_40 = arith.constant 0 : index
    %76 = vector.load %arg16[%c0_39, %c0_40] : memref<1x16xf32, #tpu.memory_space<vmem>>, vector<1x16xf32>
    %77 = vector.broadcast %76 : vector<1x16xf32> to vector<8x16xf32>
    %78 = arith.addf %75, %77 : vector<8x16xf32>
    %79 = arith.negf %78 : vector<8x16xf32>
    %80 = math.exp %79 : vector<8x16xf32>
    %cst_41 = arith.constant 1.000000e+00 : f32
    %81 = vector.broadcast %cst_41 : f32 to vector<8x16xf32>
    %82 = arith.addf %81, %80 : vector<8x16xf32>
    %83 = arith.divf %81, %82 : vector<8x16xf32>
    %84 = arith.mulf %78, %83 : vector<8x16xf32>
    %85 = arith.truncf %84 : vector<8x16xf32> to vector<8x16xbf16>
    %c0_42 = arith.constant 0 : index
    %c0_43 = arith.constant 0 : index
    %86 = vector.load %arg9[%c0_42, %c0_43] : memref<16x2xbf16, #tpu.memory_space<vmem>>, vector<16x2xbf16>
    %cst_44 = arith.constant dense<0.000000e+00> : vector<8x2xf32>
    %87 = tpu.matmul %85, %86, %cst_44 {dimension_numbers = #tpu.dot_dimension_numbers<[1], [0], [0], [1], [0, 0, 1, 1], [], []>} : vector<8x16xbf16>, vector<16x2xbf16>, vector<8x2xf32> -> vector<8x2xf32>
    %c0_45 = arith.constant 0 : index
    %c0_46 = arith.constant 0 : index
    %88 = vector.load %arg17[%c0_45, %c0_46] : memref<1x2xf32, #tpu.memory_space<vmem>>, vector<1x2xf32>
    %89 = vector.broadcast %88 : vector<1x2xf32> to vector<8x2xf32>
    %90 = arith.addf %87, %89 : vector<8x2xf32>
    %c0_47 = arith.constant 0 : index
    %c0_48 = arith.constant 0 : index
    %91 = vector.load %arg18[%c0_47, %c0_48] : memref<8x2xf32, #tpu.memory_space<vmem>>, vector<8x2xf32>
    tpu.vector_store %arg18[%c0_47, %c0_48], %90 {strides = array<i32>} : memref<8x2xf32, #tpu.memory_space<vmem>>, vector<8x2xf32>,
    return
  }
  func.func @transform_0(%arg0: i32) -> (i32, i32) {
    %c0_i32 = arith.constant 0 : i32
    %c0_i32_0 = arith.constant 0 : i32
    return %arg0, %c0_i32 : i32, i32
  }
  func.func @transform_1(%arg0: i32) -> (i32, i32) {
    %c0_i32 = arith.constant 0 : i32
    %c0_i32_0 = arith.constant 0 : i32
    %c0_i32_1 = arith.constant 0 : i32
    return %c0_i32, %c0_i32_0 : i32, i32
  }
  func.func @transform_2(%arg0: i32) -> (i32, i32) {
    %c0_i32 = arith.constant 0 : i32
    %c0_i32_0 = arith.constant 0 : i32
    %c0_i32_1 = arith.constant 0 : i32
    return %c0_i32, %c0_i32_0 : i32, i32
  }
  func.func @transform_3(%arg0: i32) -> (i32, i32) {
    %c0_i32 = arith.constant 0 : i32
    %c0_i32_0 = arith.constant 0 : i32
    %c0_i32_1 = arith.constant 0 : i32
    return %c0_i32, %c0_i32_0 : i32, i32
  }
  func.func @transform_4(%arg0: i32) -> (i32, i32) {
    %c0_i32 = arith.constant 0 : i32
    %c0_i32_0 = arith.constant 0 : i32
    %c0_i32_1 = arith.constant 0 : i32
    return %c0_i32, %c0_i32_0 : i32, i32
  }
  func.func @transform_5(%arg0: i32) -> (i32, i32) {
    %c0_i32 = arith.constant 0 : i32
    %c0_i32_0 = arith.constant 0 : i32
    %c0_i32_1 = arith.constant 0 : i32
    return %c0_i32, %c0_i32_0 : i32, i32
  }
  func.func @transform_6(%arg0: i32) -> (i32, i32) {
    %c0_i32 = arith.constant 0 : i32
    %c0_i32_0 = arith.constant 0 : i32
    %c0_i32_1 = arith.constant 0 : i32
    return %c0_i32, %c0_i32_0 : i32, i32
  }
  func.func @transform_7(%arg0: i32) -> (i32, i32) {
    %c0_i32 = arith.constant 0 : i32
    %c0_i32_0 = arith.constant 0 : i32
    %c0_i32_1 = arith.constant 0 : i32
    return %c0_i32, %c0_i32_0 : i32, i32
  }
  func.func @transform_8(%arg0: i32) -> (i32, i32) {
    %c0_i32 = arith.constant 0 : i32
    %c0_i32_0 = arith.constant 0 : i32
    %c0_i32_1 = arith.constant 0 : i32
    return %c0_i32, %c0_i32_0 : i32, i32
  }
  func.func @transform_9(%arg0: i32) -> (i32, i32) {
    %c0_i32 = arith.constant 0 : i32
    %c0_i32_0 = arith.constant 0 : i32
    %c0_i32_1 = arith.constant 0 : i32
    return %c0_i32, %c0_i32_0 : i32, i32
  }
  func.func @transform_10(%arg0: i32) -> (i32, i32) {
    %c0_i32 = arith.constant 0 : i32
    %c0_i32_0 = arith.constant 0 : i32
    %c0_i32_1 = arith.constant 0 : i32
    return %c0_i32, %c0_i32_0 : i32, i32
  }
  func.func @transform_11(%arg0: i32) -> (i32, i32) {
    %c0_i32 = arith.constant 0 : i32
    %c0_i32_0 = arith.constant 0 : i32
    %c0_i32_1 = arith.constant 0 : i32
    return %c0_i32, %c0_i32_0 : i32, i32
  }
  func.func @transform_12(%arg0: i32) -> (i32, i32) {
    %c0_i32 = arith.constant 0 : i32
    %c0_i32_0 = arith.constant 0 : i32
    %c0_i32_1 = arith.constant 0 : i32
    return %c0_i32, %c0_i32_0 : i32, i32
  }
  func.func @transform_13(%arg0: i32) -> (i32, i32) {
    %c0_i32 = arith.constant 0 : i32
    %c0_i32_0 = arith.constant 0 : i32
    %c0_i32_1 = arith.constant 0 : i32
    return %c0_i32, %c0_i32_0 : i32, i32
  }
  func.func @transform_14(%arg0: i32) -> (i32, i32) {
    %c0_i32 = arith.constant 0 : i32
    %c0_i32_0 = arith.constant 0 : i32
    %c0_i32_1 = arith.constant 0 : i32
    return %c0_i32, %c0_i32_0 : i32, i32
  }
  func.func @transform_15(%arg0: i32) -> (i32, i32) {
    %c0_i32 = arith.constant 0 : i32
    %c0_i32_0 = arith.constant 0 : i32
    %c0_i32_1 = arith.constant 0 : i32
    return %c0_i32, %c0_i32_0 : i32, i32
  }
  func.func @transform_16(%arg0: i32) -> (i32, i32) {
    %c0_i32 = arith.constant 0 : i32
    %c0_i32_0 = arith.constant 0 : i32
    %c0_i32_1 = arith.constant 0 : i32
    return %c0_i32, %c0_i32_0 : i32, i32
  }
  func.func @transform_17(%arg0: i32) -> (i32, i32) {
    %c0_i32 = arith.constant 0 : i32
    %c0_i32_0 = arith.constant 0 : i32
    return %arg0, %c0_i32 : i32, i32
  }
}

</mosaic_0001>

<llo_original>
// kernel: deepnet2_forward.1
$region0: #{deepnet2_forward.1}
  #allocation0 [shape = 'u32[]', space=smem, size = 0x4, offset = 0x4, fixed_abs, tag = 'smem constant byte address 0x4 - core index']
  #allocation1 [shape = 'u32[144,128]{1,0:T(1,128)}', space=vmem, size = 0x12000, scoped, tag = 'internal scratch']
  %s0 = inlined_call_operand.vmem [shape: f32[8,32], index: 0, kind: input, shape index: {}]
  %s1 = inlined_call_operand.vmem [shape: bf16[32,1024], index: 1, kind: input, shape index: {}]
  %s2 = inlined_call_operand.hbm [shape: bf16[1024,512], index: 2, kind: input, shape index: {}]
  %s3 = inlined_call_operand.hbm [shape: bf16[512,256], index: 3, kind: input, shape index: {}]
  %s4 = inlined_call_operand.hbm [shape: bf16[256,128], index: 4, kind: input, shape index: {}]
  %s5 = inlined_call_operand.vmem [shape: bf16[128,64], index: 5, kind: input, shape index: {}]
  %s6 = inlined_call_operand.vmem [shape: bf16[64,32], index: 6, kind: input, shape index: {}]
  %s7 = inlined_call_operand.vmem [shape: bf16[32,16], index: 7, kind: input, shape index: {}]
  %s8 = inlined_call_operand.vmem [shape: bf16[16,2], index: 8, kind: input, shape index: {}]
  %s9 = inlined_call_operand.hbm [shape: f32[1,1024], index: 9, kind: input, shape index: {}]
  %s10 = inlined_call_operand.hbm [shape: f32[1,512], index: 10, kind: input, shape index: {}]
  %s11 = inlined_call_operand.vmem [shape: f32[1,256], index: 11, kind: input, shape index: {}]
  %s12 = inlined_call_operand.vmem [shape: f32[1,128], index: 12, kind: input, shape index: {}]
  %s13 = inlined_call_operand.vmem [shape: f32[1,64], index: 13, kind: input, shape index: {}]
  %s14 = inlined_call_operand.vmem [shape: f32[1,32], index: 14, kind: input, shape index: {}]
  %s15 = inlined_call_operand.vmem [shape: f32[1,16], index: 15, kind: input, shape index: {}]
  %s16 = inlined_call_operand.vmem [shape: f32[1,2], index: 16, kind: input, shape index: {}]
  %s17 = inlined_call_operand.vmem [shape: f32[8,2], index: 17, kind: output, shape index: {}]
  %s18 = sld [smem:[#allocation0]]
  $region98: #{deepnet2_forward.1} parent=0
    _
  %s20 = ssub.s32 1, %s18
  %s21 = scalar_select 0, %s20, %s18
  $region1: #{deepnet2_forward.1} parent=0
    #allocation2 [shape = 'u8[1048576]{0}', space=vmem, size = 0x100000, scoped, tag = 'input window, operand 2, single buffered']
    #allocation3 [shape = 's32[1]{0}', space=sflag, size = 0x4, scoped, tag = 'scoped memory for deepnet2_forward.1']
    #allocation4 [shape = 'u8[262144]{0}', space=vmem, size = 0x40000, scoped, tag = 'input window, operand 3, single buffered']
    #allocation5 [shape = 's32[1]{0}', space=sflag, size = 0x4, scoped, tag = 'scoped memory for deepnet2_forward.1']
    #allocation6 [shape = 'u8[65536]{0}', space=vmem, size = 0x10000, scoped, tag = 'input window, operand 4, single buffered']
    #allocation7 [shape = 'u8[4096]{0}', space=vmem, size = 0x1000, scoped, tag = 'input window, operand 9, single buffered']
    #allocation8 [shape = 's32[1]{0}', space=sflag, size = 0x4, scoped, tag = 'scoped memory for deepnet2_forward.1']
    #allocation9 [shape = 'u8[2048]{0}', space=vmem, size = 0x800, scoped, tag = 'input window, operand 10, single buffered']
    %22 = vsyncpa [#allocation3], 0
    %23 = vsyncpa [#allocation5], 0
    %24 = vsyncpa [#allocation8], 0
    // Predicated region
    $region2: #{deepnet2_forward.1} parent=1 // pred_check
      _
    $region3: #{deepnet2_forward.1} parent=1 // pred_check_branch
      %26 = sbr.rel (0) target = $region5
    $region4: #{deepnet2_forward.1} parent=1 // pred_region
      _
    $region5: #{deepnet2_forward.1} parent=1 // pred_fallthru
      _
    // Predicated region
    $region6: #{deepnet2_forward.1} parent=1 // pred_check
      _
    $region7: #{deepnet2_forward.1} parent=1 // pred_check_branch
      %28 = sbr.rel (0) target = $region9
    $region8: #{deepnet2_forward.1} parent=1 // pred_region
      _
    $region9: #{deepnet2_forward.1} parent=1 // pred_fallthru
      _
    // Predicated region
    $region10: #{deepnet2_forward.1} parent=1 // pred_check
      _
    $region11: #{deepnet2_forward.1} parent=1 // pred_check_branch
      %30 = sbr.rel (0) target = $region13
    $region12: #{deepnet2_forward.1} parent=1 // pred_region
      %s32 = ssub.s32 32768, 32768
      %33 = vsyncadd [#allocation3], %s32
      %s34 = sshll.u32 [#allocation2], 4
      %s35 = int_to_ptr.vmem [resolvable:$true] %s34
      %40 = dma.hbm_to_vmem [thread:$0]  %s2, 32768, %s35, [#allocation3], 256, 256, 16
    $region13: #{deepnet2_forward.1} parent=1 // pred_fallthru
      _
    // Predicated region
    $region14: #{deepnet2_forward.1} parent=1 // pred_check
      _
    $region15: #{deepnet2_forward.1} parent=1 // pred_check_branch
      %42 = sbr.rel (0) target = $region17
    $region16: #{deepnet2_forward.1} parent=1 // pred_region
      %s44 = ssub.s32 8192, 8192
      %45 = vsyncadd [#allocation5], %s44
      %s46 = sshll.u32 [#allocation4], 4
      %s47 = int_to_ptr.vmem [resolvable:$true] %s46
      %52 = dma.hbm_to_vmem [thread:$0]  %s3, 8192, %s47, [#allocation5], 128, 128, 8
    $region17: #{deepnet2_forward.1} parent=1 // pred_fallthru
      _
    // Predicated region
    $region18: #{deepnet2_forward.1} parent=1 // pred_check
      _
    $region19: #{deepnet2_forward.1} parent=1 // pred_check_branch
      %54 = sbr.rel (0) target = $region21
    $region20: #{deepnet2_forward.1} parent=1 // pred_region
      %s56 = ssub.s32 2048, 2048
      %57 = vsyncadd [#allocation5], %s56
      %s58 = sshll.u32 [#allocation6], 4
      %s59 = int_to_ptr.vmem [resolvable:$true] %s58
      %64 = dma.hbm_to_vmem [thread:$0]  %s4, 2048, %s59, [#allocation5], 64, 64, 4
    $region21: #{deepnet2_forward.1} parent=1 // pred_fallthru
      _
    // Predicated region
    $region22: #{deepnet2_forward.1} parent=1 // pred_check
      _
    $region23: #{deepnet2_forward.1} parent=1 // pred_check_branch
      %66 = sbr.rel (0) target = $region25
    $region24: #{deepnet2_forward.1} parent=1 // pred_region
      _
    $region25: #{deepnet2_forward.1} parent=1 // pred_fallthru
      _
    // Predicated region
    $region26: #{deepnet2_forward.1} parent=1 // pred_check
      _
    $region27: #{deepnet2_forward.1} parent=1 // pred_check_branch
      %68 = sbr.rel (0) target = $region29
    $region28: #{deepnet2_forward.1} parent=1 // pred_region
      _
    $region29: #{deepnet2_forward.1} parent=1 // pred_fallthru
      _
    // Predicated region
    $region30: #{deepnet2_forward.1} parent=1 // pred_check
      _
    $region31: #{deepnet2_forward.1} parent=1 // pred_check_branch
      %70 = sbr.rel (0) target = $region33
    $region32: #{deepnet2_forward.1} parent=1 // pred_region
      _
    $region33: #{deepnet2_forward.1} parent=1 // pred_fallthru
      _
    // Predicated region
    $region34: #{deepnet2_forward.1} parent=1 // pred_check
      _
    $region35: #{deepnet2_forward.1} parent=1 // pred_check_branch
      %72 = sbr.rel (0) target = $region37
    $region36: #{deepnet2_forward.1} parent=1 // pred_region
      _
    $region37: #{deepnet2_forward.1} parent=1 // pred_fallthru
      _
    // Predicated region
    $region38: #{deepnet2_forward.1} parent=1 // pred_check
      _
    $region39: #{deepnet2_forward.1} parent=1 // pred_check_branch
      %74 = sbr.rel (0) target = $region41
    $region40: #{deepnet2_forward.1} parent=1 // pred_region
      %s76 = ssub.s32 128, 128
      %77 = vsyncadd [#allocation8], %s76
      %s79 = sshll.u32 [#allocation7], 4
      %s80 = int_to_ptr.vmem [resolvable:$true] %s79
      %82 = dma.hbm_to_vmem [thread:$0]  %s9, 128, %s80, [#allocation8]
    $region41: #{deepnet2_forward.1} parent=1 // pred_fallthru
      _
    // Predicated region
    $region42: #{deepnet2_forward.1} parent=1 // pred_check
      _
    $region43: #{deepnet2_forward.1} parent=1 // pred_check_branch
      %84 = sbr.rel (0) target = $region45
    $region44: #{deepnet2_forward.1} parent=1 // pred_region
      %s86 = ssub.s32 64, 64
      %87 = vsyncadd [#allocation8], %s86
      %s89 = sshll.u32 [#allocation9], 4
      %s90 = int_to_ptr.vmem [resolvable:$true] %s89
      %92 = dma.hbm_to_vmem [thread:$0]  %s10, 64, %s90, [#allocation8]
    $region45: #{deepnet2_forward.1} parent=1 // pred_fallthru
      _
    // Predicated region
    $region46: #{deepnet2_forward.1} parent=1 // pred_check
      _
    $region47: #{deepnet2_forward.1} parent=1 // pred_check_branch
      %94 = sbr.rel (0) target = $region49
    $region48: #{deepnet2_forward.1} parent=1 // pred_region
      _
    $region49: #{deepnet2_forward.1} parent=1 // pred_fallthru
      _
    // Predicated region
    $region50: #{deepnet2_forward.1} parent=1 // pred_check
      _
    $region51: #{deepnet2_forward.1} parent=1 // pred_check_branch
      %96 = sbr.rel (0) target = $region53
    $region52: #{deepnet2_forward.1} parent=1 // pred_region
      _
    $region53: #{deepnet2_forward.1} parent=1 // pred_fallthru
      _
    // Predicated region
    $region54: #{deepnet2_forward.1} parent=1 // pred_check
      _
    $region55: #{deepnet2_forward.1} parent=1 // pred_check_branch
      %98 = sbr.rel (0) target = $region57
    $region56: #{deepnet2_forward.1} parent=1 // pred_region
      _
    $region57: #{deepnet2_forward.1} parent=1 // pred_fallthru
      _
    // Predicated region
    $region58: #{deepnet2_forward.1} parent=1 // pred_check
      _
    $region59: #{deepnet2_forward.1} parent=1 // pred_check_branch
      %100 = sbr.rel (0) target = $region61
    $region60: #{deepnet2_forward.1} parent=1 // pred_region
      _
    $region61: #{deepnet2_forward.1} parent=1 // pred_fallthru
      _
    // Predicated region
    $region62: #{deepnet2_forward.1} parent=1 // pred_check
      _
    $region63: #{deepnet2_forward.1} parent=1 // pred_check_branch
      %102 = sbr.rel (0) target = $region65
    $region64: #{deepnet2_forward.1} parent=1 // pred_region
      _
    $region65: #{deepnet2_forward.1} parent=1 // pred_fallthru
      _
    // Predicated region
    $region66: #{deepnet2_forward.1} parent=1 // pred_check
      _
    $region67: #{deepnet2_forward.1} parent=1 // pred_check_branch
      %104 = sbr.rel (0) target = $region69
    $region68: #{deepnet2_forward.1} parent=1 // pred_region
      _
    $region69: #{deepnet2_forward.1} parent=1 // pred_fallthru
      _
    // Predicated region
    $region70: #{deepnet2_forward.1} parent=1 // pred_check
      _
    $region71: #{deepnet2_forward.1} parent=1 // pred_check_branch
      %106 = sbr.rel (0) target = $region73
    $region72: #{deepnet2_forward.1} parent=1 // pred_region
      %107 = dma.done [#allocation3], 32768
    $region73: #{deepnet2_forward.1} parent=1 // pred_fallthru
      _
    // Predicated region
    $region74: #{deepnet2_forward.1} parent=1 // pred_check
      _
    $region75: #{deepnet2_forward.1} parent=1 // pred_check_branch
      %109 = sbr.rel (0) target = $region77
    $region76: #{deepnet2_forward.1} parent=1 // pred_region
      %110 = dma.done [#allocation5], 8192
    $region77: #{deepnet2_forward.1} parent=1 // pred_fallthru
      _
    // Predicated region
    $region78: #{deepnet2_forward.1} parent=1 // pred_check
      _
    $region79: #{deepnet2_forward.1} parent=1 // pred_check_branch
      %112 = sbr.rel (0) target = $region81
    $region80: #{deepnet2_forward.1} parent=1 // pred_region
      %113 = dma.done [#allocation5], 2048
    $region81: #{deepnet2_forward.1} parent=1 // pred_fallthru
      _
    // Predicated region
    $region82: #{deepnet2_forward.1} parent=1 // pred_check
      _
    $region83: #{deepnet2_forward.1} parent=1 // pred_check_branch
      %115 = sbr.rel (0) target = $region85
    $region84: #{deepnet2_forward.1} parent=1 // pred_region
      %116 = dma.done [#allocation8], 128
    $region85: #{deepnet2_forward.1} parent=1 // pred_fallthru
      _
    // Predicated region
    $region86: #{deepnet2_forward.1} parent=1 // pred_check
      _
    $region87: #{deepnet2_forward.1} parent=1 // pred_check_branch
      %118 = sbr.rel (0) target = $region89
    $region88: #{deepnet2_forward.1} parent=1 // pred_region
      %119 = dma.done [#allocation8], 64
    $region89: #{deepnet2_forward.1} parent=1 // pred_fallthru
      _
    %v121 = vld [vmem:[%s0] sm:$0xff]
    %v122 = vpack.c.bf16 %v121, %v121
    %v123 = vld [vmem:[%s1] sm:$0xff]
    %v124 = vld [vmem:[%s1 + $0x8] sm:$0xff]
    %v125 = vld [vmem:[%s1 + $0x10] sm:$0xff]
    %v126 = vld [vmem:[%s1 + $0x18] sm:$0xff]
    %v127 = vld [vmem:[%s1 + $0x20] sm:$0xff]
    %v128 = vld [vmem:[%s1 + $0x28] sm:$0xff]
    %v129 = vld [vmem:[%s1 + $0x30] sm:$0xff]
    %v130 = vld [vmem:[%s1 + $0x38] sm:$0xff]
    %v131 = vld [vmem:[%s1 + $0x40] sm:$0xff]
    %v132 = vld [vmem:[%s1 + $0x48] sm:$0xff]
    %v133 = vld [vmem:[%s1 + $0x50] sm:$0xff]
    %v134 = vld [vmem:[%s1 + $0x58] sm:$0xff]
    %v135 = vld [vmem:[%s1 + $0x60] sm:$0xff]
    %v136 = vld [vmem:[%s1 + $0x68] sm:$0xff]
    %v137 = vld [vmem:[%s1 + $0x70] sm:$0xff]
    %v138 = vld [vmem:[%s1 + $0x78] sm:$0xff]
    %v139 = vld [vmem:[#allocation7] sm:$0xff]
    %v141 = vlaneseq
    %v142 = vshrl.u32 %v141, 7
    %v143 = vsub.s32 0, %v142
    %v144 = vrot.slane %v139, %v143
    %v145 = vlaneseq
    %v146 = vshrl.u32 %v145, 7
    %v147 = vsub.s32 1, %v146
    %v148 = vrot.slane %v139, %v147
    %v149 = vlaneseq
    %v150 = vshrl.u32 %v149, 7
    %v151 = vsub.s32 2, %v150
    %v152 = vrot.slane %v139, %v151
    %v153 = vlaneseq
    %v154 = vshrl.u32 %v153, 7
    %v155 = vsub.s32 3, %v154
    %v156 = vrot.slane %v139, %v155
    %v157 = vlaneseq
    %v158 = vshrl.u32 %v157, 7
    %v159 = vsub.s32 4, %v158
    %v160 = vrot.slane %v139, %v159
    %v161 = vlaneseq
    %v162 = vshrl.u32 %v161, 7
    %v163 = vsub.s32 5, %v162
    %v164 = vrot.slane %v139, %v163
    %v165 = vlaneseq
    %v166 = vshrl.u32 %v165, 7
    %v167 = vsub.s32 6, %v166
    %v168 = vrot.slane %v139, %v167
    %v169 = vlaneseq
    %v170 = vshrl.u32 %v169, 7
    %v171 = vsub.s32 7, %v170
    %v172 = vrot.slane %v139, %v171
    %v197 = vunpack.c.l.b16 %v123
    %v198 = vunpack.c.h.b16 %v123
    %v199 = vunpack.c.l.b16 %v124
    %v200 = vunpack.c.h.b16 %v124
    %v201 = vunpack.c.l.b16 %v125
    %v202 = vunpack.c.h.b16 %v125
    %v203 = vunpack.c.l.b16 %v126
    %v204 = vunpack.c.h.b16 %v126
    %v205 = vunpack.c.l.b16 %v127
    %v206 = vunpack.c.h.b16 %v127
    %v207 = vunpack.c.l.b16 %v128
    %v208 = vunpack.c.h.b16 %v128
    %v209 = vunpack.c.l.b16 %v129
    %v210 = vunpack.c.h.b16 %v129
    %v211 = vunpack.c.l.b16 %v130
    %v212 = vunpack.c.h.b16 %v130
    %v213 = vunpack.c.l.b16 %v131
    %v214 = vunpack.c.h.b16 %v131
    %v215 = vunpack.c.l.b16 %v132
    %v216 = vunpack.c.h.b16 %v132
    %v217 = vunpack.c.l.b16 %v133
    %v218 = vunpack.c.h.b16 %v133
    %v219 = vunpack.c.l.b16 %v134
    %v220 = vunpack.c.h.b16 %v134
    %v221 = vunpack.c.l.b16 %v135
    %v222 = vunpack.c.h.b16 %v135
    %v223 = vunpack.c.l.b16 %v136
    %v224 = vunpack.c.h.b16 %v136
    %v225 = vunpack.c.l.b16 %v137
    %v226 = vunpack.c.h.b16 %v137
    %v227 = vunpack.c.l.b16 %v138
    %v228 = vunpack.c.h.b16 %v138
    %v229 = vpack.c.b16 %v205, %v197
    %v230 = vpack.c.b16 %v206, %v198
    %v231 = vpack.c.b16 %v207, %v199
    %v232 = vpack.c.b16 %v208, %v200
    %v233 = vpack.c.b16 %v209, %v201
    %v234 = vpack.c.b16 %v210, %v202
    %v235 = vpack.c.b16 %v211, %v203
    %v236 = vpack.c.b16 %v212, %v204
    %v237 = vpack.c.b16 %v221, %v213
    %v238 = vpack.c.b16 %v222, %v214
    %v239 = vpack.c.b16 %v223, %v215
    %v240 = vpack.c.b16 %v224, %v216
    %v241 = vpack.c.b16 %v225, %v217
    %v242 = vpack.c.b16 %v226, %v218
    %v243 = vpack.c.b16 %v227, %v219
    %v244 = vpack.c.b16 %v228, %v220
    %vm261 = vcmask 261120
    %v263 = vsel %vm261, %v122, 0
    %265 = vmatprep.subr.bf16.mxu0 %v230
    %266 = vmatpush1.bf16.msra.mxu0 %v229
    %267 = vmatprep.subr.bf16.mxu0 %v238
    %268 = vmatpush1.bf16.msra.mxu0 %v237
    %269 = vmatprep.subr.bf16.mxu0 0
    %270 = vmatpush1.bf16.msra.mxu0 0
    %271 = vmatprep.subr.bf16.mxu0 0
    %272 = vmatpush1.bf16.msra.mxu0 0
    %273 = vmatprep.subr.bf16.mxu0 0
    %274 = vmatpush1.bf16.msra.mxu0 0
    %275 = vmatprep.subr.bf16.mxu0 0
    %276 = vmatpush1.bf16.msra.mxu0 0
    %277 = vmatprep.subr.bf16.mxu0 0
    %278 = vmatpush1.bf16.msra.mxu0 0
    %279 = vmatprep.subr.bf16.mxu0 0
    %280 = vmatpush1.bf16.msra.mxu0 0
    %281 = vmatprep.subr.bf16.mxu0 0
    %282 = vmatpush1.bf16.msra.mxu0 0
    %283 = vmatprep.subr.bf16.mxu0 0
    %284 = vmatpush1.bf16.msra.mxu0 0
    %285 = vmatprep.subr.bf16.mxu0 0
    %286 = vmatpush1.bf16.msra.mxu0 0
    %287 = vmatprep.subr.bf16.mxu0 0
    %288 = vmatpush1.bf16.msra.mxu0 0
    %289 = vmatprep.subr.bf16.mxu0 0
    %290 = vmatpush1.bf16.msra.mxu0 0
    %291 = vmatprep.subr.bf16.mxu0 0
    %292 = vmatpush1.bf16.msra.mxu0 0
    %293 = vmatprep.subr.bf16.mxu0 0
    %294 = vmatpush1.bf16.msra.mxu0 0
    %295 = vmatprep.subr.bf16.mxu0 0
    %296 = vmatpush1.bf16.msra.mxu0 0
    %297 = vmatprep.mubr.bf16.mxu0 0
    %298 = vmatmul.mubr.bf16.gmra.mrb[0].mxu0 %v263
    %v299 = vpop.f32.mrb[0].mxu0
    %v300 = vadd.f32 %v144, %v299
    %v301 = vpop.f32.mrb[0].mxu0
    %v302 = vadd.f32 %v148, %v301
    %v303 = vpop.f32.mrb[0].mxu0
    %v304 = vpop.f32.mrb[0].mxu0
    %305 = vdwg.mxu0
    %306 = vmatprep.subr.bf16.mxu0 %v232
    %307 = vmatpush1.bf16.msra.mxu0 %v231
    %308 = vmatprep.subr.bf16.mxu0 %v240
    %309 = vmatpush1.bf16.msra.mxu0 %v239
    %310 = vmatprep.subr.bf16.mxu0 0
    %311 = vmatpush1.bf16.msra.mxu0 0
    %312 = vmatprep.subr.bf16.mxu0 0
    %313 = vmatpush1.bf16.msra.mxu0 0
    %314 = vmatprep.subr.bf16.mxu0 0
    %315 = vmatpush1.bf16.msra.mxu0 0
    %316 = vmatprep.subr.bf16.mxu0 0
    %317 = vmatpush1.bf16.msra.mxu0 0
    %318 = vmatprep.subr.bf16.mxu0 0
    %319 = vmatpush1.bf16.msra.mxu0 0
    %320 = vmatprep.subr.bf16.mxu0 0
    %321 = vmatpush1.bf16.msra.mxu0 0
    %322 = vmatprep.subr.bf16.mxu0 0
    %323 = vmatpush1.bf16.msra.mxu0 0
    %324 = vmatprep.subr.bf16.mxu0 0
    %325 = vmatpush1.bf16.msra.mxu0 0
    %326 = vmatprep.subr.bf16.mxu0 0
    %327 = vmatpush1.bf16.msra.mxu0 0
    %328 = vmatprep.subr.bf16.mxu0 0
    %329 = vmatpush1.bf16.msra.mxu0 0
    %330 = vmatprep.subr.bf16.mxu0 0
    %331 = vmatpush1.bf16.msra.mxu0 0
    %332 = vmatprep.subr.bf16.mxu0 0
    %333 = vmatpush1.bf16.msra.mxu0 0
    %334 = vmatprep.subr.bf16.mxu0 0
    %335 = vmatpush1.bf16.msra.mxu0 0
    %336 = vmatprep.subr.bf16.mxu0 0
    %337 = vmatpush1.bf16.msra.mxu0 0
    %338 = vmatprep.mubr.bf16.mxu0 0
    %339 = vmatmul.mubr.bf16.gmra.mrb[0].mxu0 %v263
    %v340 = vpop.f32.mrb[0].mxu0
    %v341 = vadd.f32 %v152, %v340
    %v342 = vpop.f32.mrb[0].mxu0
    %v343 = vadd.f32 %v156, %v342
    %v344 = vpop.f32.mrb[0].mxu0
    %v345 = vpop.f32.mrb[0].mxu0
    %346 = vdwg.mxu0
    %347 = vmatprep.subr.bf16.mxu0 %v234
    %348 = vmatpush1.bf16.msra.mxu0 %v233
    %349 = vmatprep.subr.bf16.mxu0 %v242
    %350 = vmatpush1.bf16.msra.mxu0 %v241
    %351 = vmatprep.subr.bf16.mxu0 0
    %352 = vmatpush1.bf16.msra.mxu0 0
    %353 = vmatprep.subr.bf16.mxu0 0
    %354 = vmatpush1.bf16.msra.mxu0 0
    %355 = vmatprep.subr.bf16.mxu0 0
    %356 = vmatpush1.bf16.msra.mxu0 0
    %357 = vmatprep.subr.bf16.mxu0 0
    %358 = vmatpush1.bf16.msra.mxu0 0
    %359 = vmatprep.subr.bf16.mxu0 0
    %360 = vmatpush1.bf16.msra.mxu0 0
    %361 = vmatprep.subr.bf16.mxu0 0
    %362 = vmatpush1.bf16.msra.mxu0 0
    %363 = vmatprep.subr.bf16.mxu0 0
    %364 = vmatpush1.bf16.msra.mxu0 0
    %365 = vmatprep.subr.bf16.mxu0 0
    %366 = vmatpush1.bf16.msra.mxu0 0
    %367 = vmatprep.subr.bf16.mxu0 0
    %368 = vmatpush1.bf16.msra.mxu0 0
    %369 = vmatprep.subr.bf16.mxu0 0
    %370 = vmatpush1.bf16.msra.mxu0 0
    %371 = vmatprep.subr.bf16.mxu0 0
    %372 = vmatpush1.bf16.msra.mxu0 0
    %373 = vmatprep.subr.bf16.mxu0 0
    %374 = vmatpush1.bf16.msra.mxu0 0
    %375 = vmatprep.subr.bf16.mxu0 0
    %376 = vmatpush1.bf16.msra.mxu0 0
    %377 = vmatprep.subr.bf16.mxu0 0
    %378 = vmatpush1.bf16.msra.mxu0 0
    %379 = vmatprep.mubr.bf16.mxu0 0
    %380 = vmatmul.mubr.bf16.gmra.mrb[0].mxu0 %v263
    %v381 = vpop.f32.mrb[0].mxu0
    %v382 = vadd.f32 %v160, %v381
    %v383 = vpop.f32.mrb[0].mxu0
    %v384 = vadd.f32 %v164, %v383
    %v385 = vpop.f32.mrb[0].mxu0
    %v386 = vpop.f32.mrb[0].mxu0
    %387 = vdwg.mxu0
    %388 = vmatprep.subr.bf16.mxu0 %v236
    %389 = vmatpush1.bf16.msra.mxu0 %v235
    %390 = vmatprep.subr.bf16.mxu0 %v244
    %391 = vmatpush1.bf16.msra.mxu0 %v243
    %392 = vmatprep.subr.bf16.mxu0 0
    %393 = vmatpush1.bf16.msra.mxu0 0
    %394 = vmatprep.subr.bf16.mxu0 0
    %395 = vmatpush1.bf16.msra.mxu0 0
    %396 = vmatprep.subr.bf16.mxu0 0
    %397 = vmatpush1.bf16.msra.mxu0 0
    %398 = vmatprep.subr.bf16.mxu0 0
    %399 = vmatpush1.bf16.msra.mxu0 0
    %400 = vmatprep.subr.bf16.mxu0 0
    %401 = vmatpush1.bf16.msra.mxu0 0
    %402 = vmatprep.subr.bf16.mxu0 0
    %403 = vmatpush1.bf16.msra.mxu0 0
    %404 = vmatprep.subr.bf16.mxu0 0
    %405 = vmatpush1.bf16.msra.mxu0 0
    %406 = vmatprep.subr.bf16.mxu0 0
    %407 = vmatpush1.bf16.msra.mxu0 0
    %408 = vmatprep.subr.bf16.mxu0 0
    %409 = vmatpush1.bf16.msra.mxu0 0
    %410 = vmatprep.subr.bf16.mxu0 0
    %411 = vmatpush1.bf16.msra.mxu0 0
    %412 = vmatprep.subr.bf16.mxu0 0
    %413 = vmatpush1.bf16.msra.mxu0 0
    %414 = vmatprep.subr.bf16.mxu0 0
    %415 = vmatpush1.bf16.msra.mxu0 0
    %416 = vmatprep.subr.bf16.mxu0 0
    %417 = vmatpush1.bf16.msra.mxu0 0
    %418 = vmatprep.subr.bf16.mxu0 0
    %419 = vmatpush1.bf16.msra.mxu0 0
    %420 = vmatprep.mubr.bf16.mxu0 0
    %421 = vmatmul.mubr.bf16.gmra.mrb[0].mxu0 %v263
    %v422 = vpop.f32.mrb[0].mxu0
    %v423 = vadd.f32 %v168, %v422
    %v424 = vpop.f32.mrb[0].mxu0
    %v425 = vadd.f32 %v172, %v424
    %v426 = vpop.f32.mrb[0].mxu0
    %v427 = vpop.f32.mrb[0].mxu0
    %428 = vdwg.mxu0
    %v429 = vxor.u32 %v300, 2147483648
    %v430 = vxor.u32 %v302, 2147483648
    %v431 = vxor.u32 %v341, 2147483648
    %v432 = vxor.u32 %v343, 2147483648
    %v433 = vxor.u32 %v382, 2147483648
    %v434 = vxor.u32 %v384, 2147483648
    %v435 = vxor.u32 %v423, 2147483648
    %v436 = vxor.u32 %v425, 2147483648
    %v437 = vmul.f32 %v429, 1.442695
    %v438 = vpow.pop %v437
    %v439 = vmul.f32 %v430, 1.442695
    %v440 = vpow.pop %v439
    %v441 = vmul.f32 %v431, 1.442695
    %v442 = vpow.pop %v441
    %v443 = vmul.f32 %v432, 1.442695
    %v444 = vpow.pop %v443
    %v445 = vmul.f32 %v433, 1.442695
    %v446 = vpow.pop %v445
    %v447 = vmul.f32 %v434, 1.442695
    %v448 = vpow.pop %v447
    %v449 = vmul.f32 %v435, 1.442695
    %v450 = vpow.pop %v449
    %v451 = vmul.f32 %v436, 1.442695
    %v452 = vpow.pop %v451
    %v453 = vadd.f32 %v438, 1.0
    %v454 = vadd.f32 %v440, 1.0
    %v455 = vadd.f32 %v442, 1.0
    %v456 = vadd.f32 %v444, 1.0
    %v457 = vadd.f32 %v446, 1.0
    %v458 = vadd.f32 %v448, 1.0
    %v459 = vadd.f32 %v450, 1.0
    %v460 = vadd.f32 %v452, 1.0
    %v461 = vrcp.pop %v453
    %v462 = vmul.f32 1.0, %v461
    %v463 = vrcp.pop %v454
    %v464 = vmul.f32 1.0, %v463
    %v465 = vrcp.pop %v455
    %v466 = vmul.f32 1.0, %v465
    %v467 = vrcp.pop %v456
    %v468 = vmul.f32 1.0, %v467
    %v469 = vrcp.pop %v457
    %v470 = vmul.f32 1.0, %v469
    %v471 = vrcp.pop %v458
    %v472 = vmul.f32 1.0, %v471
    %v473 = vrcp.pop %v459
    %v474 = vmul.f32 1.0, %v473
    %v475 = vrcp.pop %v460
    %v476 = vmul.f32 1.0, %v475
    %v477 = vmul.f32 %v300, %v462
    %v478 = vmul.f32 %v302, %v464
    %v479 = vmul.f32 %v341, %v466
    %v480 = vmul.f32 %v343, %v468
    %v481 = vmul.f32 %v382, %v470
    %v482 = vmul.f32 %v384, %v472
    %v483 = vmul.f32 %v423, %v474
    %v484 = vmul.f32 %v425, %v476
    %v485 = vpack.c.bf16 %v477, %v477
    %v486 = vpack.c.bf16 %v478, %v478
    %v487 = vpack.c.bf16 %v479, %v479
    %v488 = vpack.c.bf16 %v480, %v480
    %v489 = vpack.c.bf16 %v481, %v481
    %v490 = vpack.c.bf16 %v482, %v482
    %v491 = vpack.c.bf16 %v483, %v483
    %v492 = vpack.c.bf16 %v484, %v484
    %v493 = vld [vmem:[#allocation2] sm:$0xff]
    %v494 = vld [vmem:[#allocation2 + $0x8] sm:$0xff]
    %v495 = vld [vmem:[#allocation2 + $0x10] sm:$0xff]
    %v496 = vld [vmem:[#allocation2 + $0x18] sm:$0xff]
    %v497 = vld [vmem:[#allocation2 + $0x20] sm:$0xff]
    %v498 = vld [vmem:[#allocation2 + $0x28] sm:$0xff]
    %v499 = vld [vmem:[#allocation2 + $0x30] sm:$0xff]
    %v500 = vld [vmem:[#allocation2 + $0x38] sm:$0xff]
    %v501 = vld [vmem:[#allocation2 + $0x40] sm:$0xff]
    %v502 = vld [vmem:[#allocation2 + $0x48] sm:$0xff]
    %v503 = vld [vmem:[#allocation2 + $0x50] sm:$0xff]
    %v504 = vld [vmem:[#allocation2 + $0x58] sm:$0xff]
    %v505 = vld [vmem:[#allocation2 + $0x60] sm:$0xff]
    %v506 = vld [vmem:[#allocation2 + $0x68] sm:$0xff]
    %v507 = vld [vmem:[#allocation2 + $0x70] sm:$0xff]
    %v508 = vld [vmem:[#allocation2 + $0x78] sm:$0xff]
    %v509 = vld [vmem:[#allocation2 + $0x80] sm:$0xff]
    %v510 = vld [vmem:[#allocation2 + $0x88] sm:$0xff]
    %v511 = vld [vmem:[#allocation2 + $0x90] sm:$0xff]
    %v512 = vld [vmem:[#allocation2 + $0x98] sm:$0xff]
    %v513 = vld [vmem:[#allocation2 + $0xa0] sm:$0xff]
    %v514 = vld [vmem:[#allocation2 + $0xa8] sm:$0xff]
    %v515 = vld [vmem:[#allocation2 + $0xb0] sm:$0xff]
    %v516 = vld [vmem:[#allocation2 + $0xb8] sm:$0xff]
    %v517 = vld [vmem:[#allocation2 + $0xc0] sm:$0xff]
    %v518 = vld [vmem:[#allocation2 + $0xc8] sm:$0xff]
    %v519 = vld [vmem:[#allocation2 + $0xd0] sm:$0xff]
    %v520 = vld [vmem:[#allocation2 + $0xd8] sm:$0xff]
    %v521 = vld [vmem:[#allocation2 + $0xe0] sm:$0xff]
    %v522 = vld [vmem:[#allocation2 + $0xe8] sm:$0xff]
    %v523 = vld [vmem:[#allocation2 + $0xf0] sm:$0xff]
    %v524 = vld [vmem:[#allocation2 + $0xf8] sm:$0xff]
    %v525 = vld [vmem:[#allocation2 + $0x100] sm:$0xff]
    %v526 = vld [vmem:[#allocation2 + $0x108] sm:$0xff]
    %v527 = vld [vmem:[#allocation2 + $0x110] sm:$0xff]
    %v528 = vld [vmem:[#allocation2 + $0x118] sm:$0xff]
    %v529 = vld [vmem:[#allocation2 + $0x120] sm:$0xff]
    %v530 = vld [vmem:[#allocation2 + $0x128] sm:$0xff]
    %v531 = vld [vmem:[#allocation2 + $0x130] sm:$0xff]
    %v532 = vld [vmem:[#allocation2 + $0x138] sm:$0xff]
    %v533 = vld [vmem:[#allocation2 + $0x140] sm:$0xff]
    %v534 = vld [vmem:[#allocation2 + $0x148] sm:$0xff]
    %v535 = vld [vmem:[#allocation2 + $0x150] sm:$0xff]
    %v536 = vld [vmem:[#allocation2 + $0x158] sm:$0xff]
    %v537 = vld [vmem:[#allocation2 + $0x160] sm:$0xff]
    %v538 = vld [vmem:[#allocation2 + $0x168] sm:$0xff]
    %v539 = vld [vmem:[#allocation2 + $0x170] sm:$0xff]
    %v540 = vld [vmem:[#allocation2 + $0x178] sm:$0xff]
    %v541 = vld [vmem:[#allocation2 + $0x180] sm:$0xff]
    %v542 = vld [vmem:[#allocation2 + $0x188] sm:$0xff]
    %v543 = vld [vmem:[#allocation2 + $0x190] sm:$0xff]
    %v544 = vld [vmem:[#allocation2 + $0x198] sm:$0xff]
    %v545 = vld [vmem:[#allocation2 + $0x1a0] sm:$0xff]
    %v546 = vld [vmem:[#allocation2 + $0x1a8] sm:$0xff]
    %v547 = vld [vmem:[#allocation2 + $0x1b0] sm:$0xff]
    %v548 = vld [vmem:[#allocation2 + $0x1b8] sm:$0xff]
    %v549 = vld [vmem:[#allocation2 + $0x1c0] sm:$0xff]
    %v550 = vld [vmem:[#allocation2 + $0x1c8] sm:$0xff]
    %v551 = vld [vmem:[#allocation2 + $0x1d0] sm:$0xff]
    %v552 = vld [vmem:[#allocation2 + $0x1d8] sm:$0xff]
    %v553 = vld [vmem:[#allocation2 + $0x1e0] sm:$0xff]
    %v554 = vld [vmem:[#allocation2 + $0x1e8] sm:$0xff]
    %v555 = vld [vmem:[#allocation2 + $0x1f0] sm:$0xff]
    %v556 = vld [vmem:[#allocation2 + $0x1f8] sm:$0xff]
    %v557 = vld [vmem:[#allocation2 + $0x200] sm:$0xff]
    %v558 = vld [vmem:[#allocation2 + $0x208] sm:$0xff]
    %v559 = vld [vmem:[#allocation2 + $0x210] sm:$0xff]
    %v560 = vld [vmem:[#allocation2 + $0x218] sm:$0xff]
    %v561 = vld [vmem:[#allocation2 + $0x220] sm:$0xff]
    %v562 = vld [vmem:[#allocation2 + $0x228] sm:$0xff]
    %v563 = vld [vmem:[#allocation2 + $0x230] sm:$0xff]
    %v564 = vld [vmem:[#allocation2 + $0x238] sm:$0xff]
    %v565 = vld [vmem:[#allocation2 + $0x240] sm:$0xff]
    %v566 = vld [vmem:[#allocation2 + $0x248] sm:$0xff]
    %v567 = vld [vmem:[#allocation2 + $0x250] sm:$0xff]
    %v568 = vld [vmem:[#allocation2 + $0x258] sm:$0xff]
    %v569 = vld [vmem:[#allocation2 + $0x260] sm:$0xff]
    %v570 = vld [vmem:[#allocation2 + $0x268] sm:$0xff]
    %v571 = vld [vmem:[#allocation2 + $0x270] sm:$0xff]
    %v572 = vld [vmem:[#allocation2 + $0x278] sm:$0xff]
    %v573 = vld [vmem:[#allocation2 + $0x280] sm:$0xff]
    %v574 = vld [vmem:[#allocation2 + $0x288] sm:$0xff]
    %v575 = vld [vmem:[#allocation2 + $0x290] sm:$0xff]
    %v576 = vld [vmem:[#allocation2 + $0x298] sm:$0xff]
    %v577 = vld [vmem:[#allocation2 + $0x2a0] sm:$0xff]
    %v578 = vld [vmem:[#allocation2 + $0x2a8] sm:$0xff]
    %v579 = vld [vmem:[#allocation2 + $0x2b0] sm:$0xff]
    %v580 = vld [vmem:[#allocation2 + $0x2b8] sm:$0xff]
    %v581 = vld [vmem:[#allocation2 + $0x2c0] sm:$0xff]
    %v582 = vld [vmem:[#allocation2 + $0x2c8] sm:$0xff]
    %v583 = vld [vmem:[#allocation2 + $0x2d0] sm:$0xff]
    %v584 = vld [vmem:[#allocation2 + $0x2d8] sm:$0xff]
    %v585 = vld [vmem:[#allocation2 + $0x2e0] sm:$0xff]
    %v586 = vld [vmem:[#allocation2 + $0x2e8] sm:$0xff]
    %v587 = vld [vmem:[#allocation2 + $0x2f0] sm:$0xff]
    %v588 = vld [vmem:[#allocation2 + $0x2f8] sm:$0xff]
    %v589 = vld [vmem:[#allocation2 + $0x300] sm:$0xff]
    %v590 = vld [vmem:[#allocation2 + $0x308] sm:$0xff]
    %v591 = vld [vmem:[#allocation2 + $0x310] sm:$0xff]
    %v592 = vld [vmem:[#allocation2 + $0x318] sm:$0xff]
    %v593 = vld [vmem:[#allocation2 + $0x320] sm:$0xff]
    %v594 = vld [vmem:[#allocation2 + $0x328] sm:$0xff]
    %v595 = vld [vmem:[#allocation2 + $0x330] sm:$0xff]
    %v596 = vld [vmem:[#allocation2 + $0x338] sm:$0xff]
    %v597 = vld [vmem:[#allocation2 + $0x340] sm:$0xff]
    %v598 = vld [vmem:[#allocation2 + $0x348] sm:$0xff]
    %v599 = vld [vmem:[#allocation2 + $0x350] sm:$0xff]
    %v600 = vld [vmem:[#allocation2 + $0x358] sm:$0xff]
    %v601 = vld [vmem:[#allocation2 + $0x360] sm:$0xff]
    %v602 = vld [vmem:[#allocation2 + $0x368] sm:$0xff]
    %v603 = vld [vmem:[#allocation2 + $0x370] sm:$0xff]
    %v604 = vld [vmem:[#allocation2 + $0x378] sm:$0xff]
    %v605 = vld [vmem:[#allocation2 + $0x380] sm:$0xff]
    %v606 = vld [vmem:[#allocation2 + $0x388] sm:$0xff]
    %v607 = vld [vmem:[#allocation2 + $0x390] sm:$0xff]
    %v608 = vld [vmem:[#allocation2 + $0x398] sm:$0xff]
    %v609 = vld [vmem:[#allocation2 + $0x3a0] sm:$0xff]
    %v610 = vld [vmem:[#allocation2 + $0x3a8] sm:$0xff]
    %v611 = vld [vmem:[#allocation2 + $0x3b0] sm:$0xff]
    %v612 = vld [vmem:[#allocation2 + $0x3b8] sm:$0xff]
    %v613 = vld [vmem:[#allocation2 + $0x3c0] sm:$0xff]
    %v614 = vld [vmem:[#allocation2 + $0x3c8] sm:$0xff]
    %v615 = vld [vmem:[#allocation2 + $0x3d0] sm:$0xff]
    %v616 = vld [vmem:[#allocation2 + $0x3d8] sm:$0xff]
    %v617 = vld [vmem:[#allocation2 + $0x3e0] sm:$0xff]
    %v618 = vld [vmem:[#allocation2 + $0x3e8] sm:$0xff]
    %v619 = vld [vmem:[#allocation2 + $0x3f0] sm:$0xff]
    %v620 = vld [vmem:[#allocation2 + $0x3f8] sm:$0xff]
    %v621 = vld [vmem:[#allocation2 + $0x400] sm:$0xff]
    %v622 = vld [vmem:[#allocation2 + $0x408] sm:$0xff]
    %v623 = vld [vmem:[#allocation2 + $0x410] sm:$0xff]
    %v624 = vld [vmem:[#allocation2 + $0x418] sm:$0xff]
    %v625 = vld [vmem:[#allocation2 + $0x420] sm:$0xff]
    %v626 = vld [vmem:[#allocation2 + $0x428] sm:$0xff]
    %v627 = vld [vmem:[#allocation2 + $0x430] sm:$0xff]
    %v628 = vld [vmem:[#allocation2 + $0x438] sm:$0xff]
    %v629 = vld [vmem:[#allocation2 + $0x440] sm:$0xff]
    %v630 = vld [vmem:[#allocation2 + $0x448] sm:$0xff]
    %v631 = vld [vmem:[#allocation2 + $0x450] sm:$0xff]
    %v632 = vld [vmem:[#allocation2 + $0x458] sm:$0xff]
    %v633 = vld [vmem:[#allocation2 + $0x460] sm:$0xff]
    %v634 = vld [vmem:[#allocation2 + $0x468] sm:$0xff]
    %v635 = vld [vmem:[#allocation2 + $0x470] sm:$0xff]
    %v636 = vld [vmem:[#allocation2 + $0x478] sm:$0xff]
    %v637 = vld [vmem:[#allocation2 + $0x480] sm:$0xff]
    %v638 = vld [vmem:[#allocation2 + $0x488] sm:$0xff]
    %v639 = vld [vmem:[#allocation2 + $0x490] sm:$0xff]
    %v640 = vld [vmem:[#allocation2 + $0x498] sm:$0xff]
    %v641 = vld [vmem:[#allocation2 + $0x4a0] sm:$0xff]
    %v642 = vld [vmem:[#allocation2 + $0x4a8] sm:$0xff]
    %v643 = vld [vmem:[#allocation2 + $0x4b0] sm:$0xff]
    %v644 = vld [vmem:[#allocation2 + $0x4b8] sm:$0xff]
    %v645 = vld [vmem:[#allocation2 + $0x4c0] sm:$0xff]
    %v646 = vld [vmem:[#allocation2 + $0x4c8] sm:$0xff]
    %v647 = vld [vmem:[#allocation2 + $0x4d0] sm:$0xff]
    %v648 = vld [vmem:[#allocation2 + $0x4d8] sm:$0xff]
    %v649 = vld [vmem:[#allocation2 + $0x4e0] sm:$0xff]
    %v650 = vld [vmem:[#allocation2 + $0x4e8] sm:$0xff]
    %v651 = vld [vmem:[#allocation2 + $0x4f0] sm:$0xff]
    %v652 = vld [vmem:[#allocation2 + $0x4f8] sm:$0xff]
    %v653 = vld [vmem:[#allocation2 + $0x500] sm:$0xff]
    %v654 = vld [vmem:[#allocation2 + $0x508] sm:$0xff]
    %v655 = vld [vmem:[#allocation2 + $0x510] sm:$0xff]
    %v656 = vld [vmem:[#allocation2 + $0x518] sm:$0xff]
    %v657 = vld [vmem:[#allocation2 + $0x520] sm:$0xff]
    %v658 = vld [vmem:[#allocation2 + $0x528] sm:$0xff]
    %v659 = vld [vmem:[#allocation2 + $0x530] sm:$0xff]
    %v660 = vld [vmem:[#allocation2 + $0x538] sm:$0xff]
    %v661 = vld [vmem:[#allocation2 + $0x540] sm:$0xff]
    %v662 = vld [vmem:[#allocation2 + $0x548] sm:$0xff]
    %v663 = vld [vmem:[#allocation2 + $0x550] sm:$0xff]
    %v664 = vld [vmem:[#allocation2 + $0x558] sm:$0xff]
    %v665 = vld [vmem:[#allocation2 + $0x560] sm:$0xff]
    %v666 = vld [vmem:[#allocation2 + $0x568] sm:$0xff]
    %v667 = vld [vmem:[#allocation2 + $0x570] sm:$0xff]
    %v668 = vld [vmem:[#allocation2 + $0x578] sm:$0xff]
    %v669 = vld [vmem:[#allocation2 + $0x580] sm:$0xff]
    %v670 = vld [vmem:[#allocation2 + $0x588] sm:$0xff]
    %v671 = vld [vmem:[#allocation2 + $0x590] sm:$0xff]
    %v672 = vld [vmem:[#allocation2 + $0x598] sm:$0xff]
    %v673 = vld [vmem:[#allocation2 + $0x5a0] sm:$0xff]
    %v674 = vld [vmem:[#allocation2 + $0x5a8] sm:$0xff]
    %v675 = vld [vmem:[#allocation2 + $0x5b0] sm:$0xff]
    %v676 = vld [vmem:[#allocation2 + $0x5b8] sm:$0xff]
    %v677 = vld [vmem:[#allocation2 + $0x5c0] sm:$0xff]
    %v678 = vld [vmem:[#allocation2 + $0x5c8] sm:$0xff]
    %v679 = vld [vmem:[#allocation2 + $0x5d0] sm:$0xff]
    %v680 = vld [vmem:[#allocation2 + $0x5d8] sm:$0xff]
    %v681 = vld [vmem:[#allocation2 + $0x5e0] sm:$0xff]
    %v682 = vld [vmem:[#allocation2 + $0x5e8] sm:$0xff]
    %v683 = vld [vmem:[#allocation2 + $0x5f0] sm:$0xff]
    %v684 = vld [vmem:[#allocation2 + $0x5f8] sm:$0xff]
    %v685 = vld [vmem:[#allocation2 + $0x600] sm:$0xff]
    %v686 = vld [vmem:[#allocation2 + $0x608] sm:$0xff]
    %v687 = vld [vmem:[#allocation2 + $0x610] sm:$0xff]
    %v688 = vld [vmem:[#allocation2 + $0x618] sm:$0xff]
    %v689 = vld [vmem:[#allocation2 + $0x620] sm:$0xff]
    %v690 = vld [vmem:[#allocation2 + $0x628] sm:$0xff]
    %v691 = vld [vmem:[#allocation2 + $0x630] sm:$0xff]
    %v692 = vld [vmem:[#allocation2 + $0x638] sm:$0xff]
    %v693 = vld [vmem:[#allocation2 + $0x640] sm:$0xff]
    %v694 = vld [vmem:[#allocation2 + $0x648] sm:$0xff]
    %v695 = vld [vmem:[#allocation2 + $0x650] sm:$0xff]
    %v696 = vld [vmem:[#allocation2 + $0x658] sm:$0xff]
    %v697 = vld [vmem:[#allocation2 + $0x660] sm:$0xff]
    %v698 = vld [vmem:[#allocation2 + $0x668] sm:$0xff]
    %v699 = vld [vmem:[#allocation2 + $0x670] sm:$0xff]
    %v700 = vld [vmem:[#allocation2 + $0x678] sm:$0xff]
    %v701 = vld [vmem:[#allocation2 + $0x680] sm:$0xff]
    %v702 = vld [vmem:[#allocation2 + $0x688] sm:$0xff]
    %v703 = vld [vmem:[#allocation2 + $0x690] sm:$0xff]
    %v704 = vld [vmem:[#allocation2 + $0x698] sm:$0xff]
    %v705 = vld [vmem:[#allocation2 + $0x6a0] sm:$0xff]
    %v706 = vld [vmem:[#allocation2 + $0x6a8] sm:$0xff]
    %v707 = vld [vmem:[#allocation2 + $0x6b0] sm:$0xff]
    %v708 = vld [vmem:[#allocation2 + $0x6b8] sm:$0xff]
    %v709 = vld [vmem:[#allocation2 + $0x6c0] sm:$0xff]
    %v710 = vld [vmem:[#allocation2 + $0x6c8] sm:$0xff]
    %v711 = vld [vmem:[#allocation2 + $0x6d0] sm:$0xff]
    %v712 = vld [vmem:[#allocation2 + $0x6d8] sm:$0xff]
    %v713 = vld [vmem:[#allocation2 + $0x6e0] sm:$0xff]
    %v714 = vld [vmem:[#allocation2 + $0x6e8] sm:$0xff]
    %v715 = vld [vmem:[#allocation2 + $0x6f0] sm:$0xff]
    %v716 = vld [vmem:[#allocation2 + $0x6f8] sm:$0xff]
    %v717 = vld [vmem:[#allocation2 + $0x700] sm:$0xff]
    %v718 = vld [vmem:[#allocation2 + $0x708] sm:$0xff]
    %v719 = vld [vmem:[#allocation2 + $0x710] sm:$0xff]
    %v720 = vld [vmem:[#allocation2 + $0x718] sm:$0xff]
    %v721 = vld [vmem:[#allocation2 + $0x720] sm:$0xff]
    %v722 = vld [vmem:[#allocation2 + $0x728] sm:$0xff]
    %v723 = vld [vmem:[#allocation2 + $0x730] sm:$0xff]
    %v724 = vld [vmem:[#allocation2 + $0x738] sm:$0xff]
    %v725 = vld [vmem:[#allocation2 + $0x740] sm:$0xff]
    %v726 = vld [vmem:[#allocation2 + $0x748] sm:$0xff]
    %v727 = vld [vmem:[#allocation2 + $0x750] sm:$0xff]
    %v728 = vld [vmem:[#allocation2 + $0x758] sm:$0xff]
    %v729 = vld [vmem:[#allocation2 + $0x760] sm:$0xff]
    %v730 = vld [vmem:[#allocation2 + $0x768] sm:$0xff]
    %v731 = vld [vmem:[#allocation2 + $0x770] sm:$0xff]
    %v732 = vld [vmem:[#allocation2 + $0x778] sm:$0xff]
    %v733 = vld [vmem:[#allocation2 + $0x780] sm:$0xff]
    %v734 = vld [vmem:[#allocation2 + $0x788] sm:$0xff]
    %v735 = vld [vmem:[#allocation2 + $0x790] sm:$0xff]
    %v736 = vld [vmem:[#allocation2 + $0x798] sm:$0xff]
    %v737 = vld [vmem:[#allocation2 + $0x7a0] sm:$0xff]
    %v738 = vld [vmem:[#allocation2 + $0x7a8] sm:$0xff]
    %v739 = vld [vmem:[#allocation2 + $0x7b0] sm:$0xff]
    %v740 = vld [vmem:[#allocation2 + $0x7b8] sm:$0xff]
    %v741 = vld [vmem:[#allocation2 + $0x7c0] sm:$0xff]
    %v742 = vld [vmem:[#allocation2 + $0x7c8] sm:$0xff]
    %v743 = vld [vmem:[#allocation2 + $0x7d0] sm:$0xff]
    %v744 = vld [vmem:[#allocation2 + $0x7d8] sm:$0xff]
    %v745 = vld [vmem:[#allocation2 + $0x7e0] sm:$0xff]
    %v746 = vld [vmem:[#allocation2 + $0x7e8] sm:$0xff]
    %v747 = vld [vmem:[#allocation2 + $0x7f0] sm:$0xff]
    %v748 = vld [vmem:[#allocation2 + $0x7f8] sm:$0xff]
    %v749 = vld [vmem:[#allocation9] sm:$0xf]
    %v751 = vlaneseq
    %v752 = vshrl.u32 %v751, 7
    %v753 = vsub.s32 0, %v752
    %v754 = vrot.slane %v749, %v753
    %v755 = vlaneseq
    %v756 = vshrl.u32 %v755, 7
    %v757 = vsub.s32 1, %v756
    %v758 = vrot.slane %v749, %v757
    %v759 = vlaneseq
    %v760 = vshrl.u32 %v759, 7
    %v761 = vsub.s32 2, %v760
    %v762 = vrot.slane %v749, %v761
    %v763 = vlaneseq
    %v764 = vshrl.u32 %v763, 7
    %v765 = vsub.s32 3, %v764
    %v766 = vrot.slane %v749, %v765
    %v1027 = vunpack.c.l.b16 %v493
    %v1028 = vunpack.c.h.b16 %v493
    %v1029 = vunpack.c.l.b16 %v494
    %v1030 = vunpack.c.h.b16 %v494
    %v1031 = vunpack.c.l.b16 %v495
    %v1032 = vunpack.c.h.b16 %v495
    %v1033 = vunpack.c.l.b16 %v496
    %v1034 = vunpack.c.h.b16 %v496
    %v1035 = vunpack.c.l.b16 %v497
    %v1036 = vunpack.c.h.b16 %v497
    %v1037 = vunpack.c.l.b16 %v498
    %v1038 = vunpack.c.h.b16 %v498
    %v1039 = vunpack.c.l.b16 %v499
    %v1040 = vunpack.c.h.b16 %v499
    %v1041 = vunpack.c.l.b16 %v500
    %v1042 = vunpack.c.h.b16 %v500
    %v1043 = vunpack.c.l.b16 %v501
    %v1044 = vunpack.c.h.b16 %v501
    %v1045 = vunpack.c.l.b16 %v502
    %v1046 = vunpack.c.h.b16 %v502
    %v1047 = vunpack.c.l.b16 %v503
    %v1048 = vunpack.c.h.b16 %v503
    %v1049 = vunpack.c.l.b16 %v504
    %v1050 = vunpack.c.h.b16 %v504
    %v1051 = vunpack.c.l.b16 %v505
    %v1052 = vunpack.c.h.b16 %v505
    %v1053 = vunpack.c.l.b16 %v506
    %v1054 = vunpack.c.h.b16 %v506
    %v1055 = vunpack.c.l.b16 %v507
    %v1056 = vunpack.c.h.b16 %v507
    %v1057 = vunpack.c.l.b16 %v508
    %v1058 = vunpack.c.h.b16 %v508
    %v1059 = vunpack.c.l.b16 %v509
    %v1060 = vunpack.c.h.b16 %v509
    %v1061 = vunpack.c.l.b16 %v510
    %v1062 = vunpack.c.h.b16 %v510
    %v1063 = vunpack.c.l.b16 %v511
    %v1064 = vunpack.c.h.b16 %v511
    %v1065 = vunpack.c.l.b16 %v512
    %v1066 = vunpack.c.h.b16 %v512
    %v1067 = vunpack.c.l.b16 %v513
    %v1068 = vunpack.c.h.b16 %v513
    %v1069 = vunpack.c.l.b16 %v514
    %v1070 = vunpack.c.h.b16 %v514
    %v1071 = vunpack.c.l.b16 %v515
    %v1072 = vunpack.c.h.b16 %v515
    %v1073 = vunpack.c.l.b16 %v516
    %v1074 = vunpack.c.h.b16 %v516
    %v1075 = vunpack.c.l.b16 %v517
    %v1076 = vunpack.c.h.b16 %v517
    %v1077 = vunpack.c.l.b16 %v518
    %v1078 = vunpack.c.h.b16 %v518
    %v1079 = vunpack.c.l.b16 %v519
    %v1080 = vunpack.c.h.b16 %v519
    %v1081 = vunpack.c.l.b16 %v520
    %v1082 = vunpack.c.h.b16 %v520
    %v1083 = vunpack.c.l.b16 %v521
    %v1084 = vunpack.c.h.b16 %v521
    %v1085 = vunpack.c.l.b16 %v522
    %v1086 = vunpack.c.h.b16 %v522
    %v1087 = vunpack.c.l.b16 %v523
    %v1088 = vunpack.c.h.b16 %v523
    %v1089 = vunpack.c.l.b16 %v524
    %v1090 = vunpack.c.h.b16 %v524
    %v1091 = vunpack.c.l.b16 %v525
    %v1092 = vunpack.c.h.b16 %v525
    %v1093 = vunpack.c.l.b16 %v526
    %v1094 = vunpack.c.h.b16 %v526
    %v1095 = vunpack.c.l.b16 %v527
    %v1096 = vunpack.c.h.b16 %v527
    %v1097 = vunpack.c.l.b16 %v528
    %v1098 = vunpack.c.h.b16 %v528
    %v1099 = vunpack.c.l.b16 %v529
    %v1100 = vunpack.c.h.b16 %v529
    %v1101 = vunpack.c.l.b16 %v530
    %v1102 = vunpack.c.h.b16 %v530
    %v1103 = vunpack.c.l.b16 %v531
    %v1104 = vunpack.c.h.b16 %v531
    %v1105 = vunpack.c.l.b16 %v532
    %v1106 = vunpack.c.h.b16 %v532
    %v1107 = vunpack.c.l.b16 %v533
    %v1108 = vunpack.c.h.b16 %v533
    %v1109 = vunpack.c.l.b16 %v534
    %v1110 = vunpack.c.h.b16 %v534
    %v1111 = vunpack.c.l.b16 %v535
    %v1112 = vunpack.c.h.b16 %v535
    %v1113 = vunpack.c.l.b16 %v536
    %v1114 = vunpack.c.h.b16 %v536
    %v1115 = vunpack.c.l.b16 %v537
    %v1116 = vunpack.c.h.b16 %v537
    %v1117 = vunpack.c.l.b16 %v538
    %v1118 = vunpack.c.h.b16 %v538
    %v1119 = vunpack.c.l.b16 %v539
    %v1120 = vunpack.c.h.b16 %v539
    %v1121 = vunpack.c.l.b16 %v540
    %v1122 = vunpack.c.h.b16 %v540
    %v1123 = vunpack.c.l.b16 %v541
    %v1124 = vunpack.c.h.b16 %v541
    %v1125 = vunpack.c.l.b16 %v542
    %v1126 = vunpack.c.h.b16 %v542
    %v1127 = vunpack.c.l.b16 %v543
    %v1128 = vunpack.c.h.b16 %v543
    %v1129 = vunpack.c.l.b16 %v544
    %v1130 = vunpack.c.h.b16 %v544
    %v1131 = vunpack.c.l.b16 %v545
    %v1132 = vunpack.c.h.b16 %v545
    %v1133 = vunpack.c.l.b16 %v546
    %v1134 = vunpack.c.h.b16 %v546
    %v1135 = vunpack.c.l.b16 %v547
    %v1136 = vunpack.c.h.b16 %v547
    %v1137 = vunpack.c.l.b16 %v548
    %v1138 = vunpack.c.h.b16 %v548
    %v1139 = vunpack.c.l.b16 %v549
    %v1140 = vunpack.c.h.b16 %v549
    %v1141 = vunpack.c.l.b16 %v550
    %v1142 = vunpack.c.h.b16 %v550
    %v1143 = vunpack.c.l.b16 %v551
    %v1144 = vunpack.c.h.b16 %v551
    %v1145 = vunpack.c.l.b16 %v552
    %v1146 = vunpack.c.h.b16 %v552
    %v1147 = vunpack.c.l.b16 %v553
    %v1148 = vunpack.c.h.b16 %v553
    %v1149 = vunpack.c.l.b16 %v554
    %v1150 = vunpack.c.h.b16 %v554
    %v1151 = vunpack.c.l.b16 %v555
    %v1152 = vunpack.c.h.b16 %v555
    %v1153 = vunpack.c.l.b16 %v556
    %v1154 = vunpack.c.h.b16 %v556
    %v1155 = vunpack.c.l.b16 %v557
    %v1156 = vunpack.c.h.b16 %v557
    %v1157 = vunpack.c.l.b16 %v558
    %v1158 = vunpack.c.h.b16 %v558
    %v1159 = vunpack.c.l.b16 %v559
    %v1160 = vunpack.c.h.b16 %v559
    %v1161 = vunpack.c.l.b16 %v560
    %v1162 = vunpack.c.h.b16 %v560
    %v1163 = vunpack.c.l.b16 %v561
    %v1164 = vunpack.c.h.b16 %v561
    %v1165 = vunpack.c.l.b16 %v562
    %v1166 = vunpack.c.h.b16 %v562
    %v1167 = vunpack.c.l.b16 %v563
    %v1168 = vunpack.c.h.b16 %v563
    %v1169 = vunpack.c.l.b16 %v564
    %v1170 = vunpack.c.h.b16 %v564
    %v1171 = vunpack.c.l.b16 %v565
    %v1172 = vunpack.c.h.b16 %v565
    %v1173 = vunpack.c.l.b16 %v566
    %v1174 = vunpack.c.h.b16 %v566
    %v1175 = vunpack.c.l.b16 %v567
    %v1176 = vunpack.c.h.b16 %v567
    %v1177 = vunpack.c.l.b16 %v568
    %v1178 = vunpack.c.h.b16 %v568
    %v1179 = vunpack.c.l.b16 %v569
    %v1180 = vunpack.c.h.b16 %v569
    %v1181 = vunpack.c.l.b16 %v570
    %v1182 = vunpack.c.h.b16 %v570
    %v1183 = vunpack.c.l.b16 %v571
    %v1184 = vunpack.c.h.b16 %v571
    %v1185 = vunpack.c.l.b16 %v572
    %v1186 = vunpack.c.h.b16 %v572
    %v1187 = vunpack.c.l.b16 %v573
    %v1188 = vunpack.c.h.b16 %v573
    %v1189 = vunpack.c.l.b16 %v574
    %v1190 = vunpack.c.h.b16 %v574
    %v1191 = vunpack.c.l.b16 %v575
    %v1192 = vunpack.c.h.b16 %v575
    %v1193 = vunpack.c.l.b16 %v576
    %v1194 = vunpack.c.h.b16 %v576
    %v1195 = vunpack.c.l.b16 %v577
    %v1196 = vunpack.c.h.b16 %v577
    %v1197 = vunpack.c.l.b16 %v578
    %v1198 = vunpack.c.h.b16 %v578
    %v1199 = vunpack.c.l.b16 %v579
    %v1200 = vunpack.c.h.b16 %v579
    %v1201 = vunpack.c.l.b16 %v580
    %v1202 = vunpack.c.h.b16 %v580
    %v1203 = vunpack.c.l.b16 %v581
    %v1204 = vunpack.c.h.b16 %v581
    %v1205 = vunpack.c.l.b16 %v582
    %v1206 = vunpack.c.h.b16 %v582
    %v1207 = vunpack.c.l.b16 %v583
    %v1208 = vunpack.c.h.b16 %v583
    %v1209 = vunpack.c.l.b16 %v584
    %v1210 = vunpack.c.h.b16 %v584
    %v1211 = vunpack.c.l.b16 %v585
    %v1212 = vunpack.c.h.b16 %v585
    %v1213 = vunpack.c.l.b16 %v586
    %v1214 = vunpack.c.h.b16 %v586
    %v1215 = vunpack.c.l.b16 %v587
    %v1216 = vunpack.c.h.b16 %v587
    %v1217 = vunpack.c.l.b16 %v588
    %v1218 = vunpack.c.h.b16 %v588
    %v1219 = vunpack.c.l.b16 %v589
    %v1220 = vunpack.c.h.b16 %v589
    %v1221 = vunpack.c.l.b16 %v590
    %v1222 = vunpack.c.h.b16 %v590
    %v1223 = vunpack.c.l.b16 %v591
    %v1224 = vunpack.c.h.b16 %v591
    %v1225 = vunpack.c.l.b16 %v592
    %v1226 = vunpack.c.h.b16 %v592
    %v1227 = vunpack.c.l.b16 %v593
    %v1228 = vunpack.c.h.b16 %v593
    %v1229 = vunpack.c.l.b16 %v594
    %v1230 = vunpack.c.h.b16 %v594
    %v1231 = vunpack.c.l.b16 %v595
    %v1232 = vunpack.c.h.b16 %v595
    %v1233 = vunpack.c.l.b16 %v596
    %v1234 = vunpack.c.h.b16 %v596
    %v1235 = vunpack.c.l.b16 %v597
    %v1236 = vunpack.c.h.b16 %v597
    %v1237 = vunpack.c.l.b16 %v598
    %v1238 = vunpack.c.h.b16 %v598
    %v1239 = vunpack.c.l.b16 %v599
    %v1240 = vunpack.c.h.b16 %v599
    %v1241 = vunpack.c.l.b16 %v600
    %v1242 = vunpack.c.h.b16 %v600
    %v1243 = vunpack.c.l.b16 %v601
    %v1244 = vunpack.c.h.b16 %v601
    %v1245 = vunpack.c.l.b16 %v602
    %v1246 = vunpack.c.h.b16 %v602
    %v1247 = vunpack.c.l.b16 %v603
    %v1248 = vunpack.c.h.b16 %v603
    %v1249 = vunpack.c.l.b16 %v604
    %v1250 = vunpack.c.h.b16 %v604
    %v1251 = vunpack.c.l.b16 %v605
    %v1252 = vunpack.c.h.b16 %v605
    %v1253 = vunpack.c.l.b16 %v606
    %v1254 = vunpack.c.h.b16 %v606
    %v1255 = vunpack.c.l.b16 %v607
    %v1256 = vunpack.c.h.b16 %v607
    %v1257 = vunpack.c.l.b16 %v608
    %v1258 = vunpack.c.h.b16 %v608
    %v1259 = vunpack.c.l.b16 %v609
    %v1260 = vunpack.c.h.b16 %v609
    %v1261 = vunpack.c.l.b16 %v610
    %v1262 = vunpack.c.h.b16 %v610
    %v1263 = vunpack.c.l.b16 %v611
    %v1264 = vunpack.c.h.b16 %v611
    %v1265 = vunpack.c.l.b16 %v612
    %v1266 = vunpack.c.h.b16 %v612
    %v1267 = vunpack.c.l.b16 %v613
    %v1268 = vunpack.c.h.b16 %v613
    %v1269 = vunpack.c.l.b16 %v614
    %v1270 = vunpack.c.h.b16 %v614
    %v1271 = vunpack.c.l.b16 %v615
    %v1272 = vunpack.c.h.b16 %v615
    %v1273 = vunpack.c.l.b16 %v616
    %v1274 = vunpack.c.h.b16 %v616
    %v1275 = vunpack.c.l.b16 %v617
    %v1276 = vunpack.c.h.b16 %v617
    %v1277 = vunpack.c.l.b16 %v618
    %v1278 = vunpack.c.h.b16 %v618
    %v1279 = vunpack.c.l.b16 %v619
    %v1280 = vunpack.c.h.b16 %v619
    %v1281 = vunpack.c.l.b16 %v620
    %v1282 = vunpack.c.h.b16 %v620
    %v1283 = vunpack.c.l.b16 %v621
    %v1284 = vunpack.c.h.b16 %v621
    %v1285 = vunpack.c.l.b16 %v622
    %v1286 = vunpack.c.h.b16 %v622
    %v1287 = vunpack.c.l.b16 %v623
    %v1288 = vunpack.c.h.b16 %v623
    %v1289 = vunpack.c.l.b16 %v624
    %v1290 = vunpack.c.h.b16 %v624
    %v1291 = vunpack.c.l.b16 %v625
    %v1292 = vunpack.c.h.b16 %v625
    %v1293 = vunpack.c.l.b16 %v626
    %v1294 = vunpack.c.h.b16 %v626
    %v1295 = vunpack.c.l.b16 %v627
    %v1296 = vunpack.c.h.b16 %v627
    %v1297 = vunpack.c.l.b16 %v628
    %v1298 = vunpack.c.h.b16 %v628
    %v1299 = vunpack.c.l.b16 %v629
    %v1300 = vunpack.c.h.b16 %v629
    %v1301 = vunpack.c.l.b16 %v630
    %v1302 = vunpack.c.h.b16 %v630
    %v1303 = vunpack.c.l.b16 %v631
    %v1304 = vunpack.c.h.b16 %v631
    %v1305 = vunpack.c.l.b16 %v632
    %v1306 = vunpack.c.h.b16 %v632
    %v1307 = vunpack.c.l.b16 %v633
    %v1308 = vunpack.c.h.b16 %v633
    %v1309 = vunpack.c.l.b16 %v634
    %v1310 = vunpack.c.h.b16 %v634
    %v1311 = vunpack.c.l.b16 %v635
    %v1312 = vunpack.c.h.b16 %v635
    %v1313 = vunpack.c.l.b16 %v636
    %v1314 = vunpack.c.h.b16 %v636
    %v1315 = vunpack.c.l.b16 %v637
    %v1316 = vunpack.c.h.b16 %v637
    %v1317 = vunpack.c.l.b16 %v638
    %v1318 = vunpack.c.h.b16 %v638
    %v1319 = vunpack.c.l.b16 %v639
    %v1320 = vunpack.c.h.b16 %v639
    %v1321 = vunpack.c.l.b16 %v640
    %v1322 = vunpack.c.h.b16 %v640
    %v1323 = vunpack.c.l.b16 %v641
    %v1324 = vunpack.c.h.b16 %v641
    %v1325 = vunpack.c.l.b16 %v642
    %v1326 = vunpack.c.h.b16 %v642
    %v1327 = vunpack.c.l.b16 %v643
    %v1328 = vunpack.c.h.b16 %v643
    %v1329 = vunpack.c.l.b16 %v644
    %v1330 = vunpack.c.h.b16 %v644
    %v1331 = vunpack.c.l.b16 %v645
    %v1332 = vunpack.c.h.b16 %v645
    %v1333 = vunpack.c.l.b16 %v646
    %v1334 = vunpack.c.h.b16 %v646
    %v1335 = vunpack.c.l.b16 %v647
    %v1336 = vunpack.c.h.b16 %v647
    %v1337 = vunpack.c.l.b16 %v648
    %v1338 = vunpack.c.h.b16 %v648
    %v1339 = vunpack.c.l.b16 %v649
    %v1340 = vunpack.c.h.b16 %v649
    %v1341 = vunpack.c.l.b16 %v650
    %v1342 = vunpack.c.h.b16 %v650
    %v1343 = vunpack.c.l.b16 %v651
    %v1344 = vunpack.c.h.b16 %v651
    %v1345 = vunpack.c.l.b16 %v652
    %v1346 = vunpack.c.h.b16 %v652
    %v1347 = vunpack.c.l.b16 %v653
    %v1348 = vunpack.c.h.b16 %v653
    %v1349 = vunpack.c.l.b16 %v654
    %v1350 = vunpack.c.h.b16 %v654
    %v1351 = vunpack.c.l.b16 %v655
    %v1352 = vunpack.c.h.b16 %v655
    %v1353 = vunpack.c.l.b16 %v656
    %v1354 = vunpack.c.h.b16 %v656
    %v1355 = vunpack.c.l.b16 %v657
    %v1356 = vunpack.c.h.b16 %v657
    %v1357 = vunpack.c.l.b16 %v658
    %v1358 = vunpack.c.h.b16 %v658
    %v1359 = vunpack.c.l.b16 %v659
    %v1360 = vunpack.c.h.b16 %v659
    %v1361 = vunpack.c.l.b16 %v660
    %v1362 = vunpack.c.h.b16 %v660
    %v1363 = vunpack.c.l.b16 %v661
    %v1364 = vunpack.c.h.b16 %v661
    %v1365 = vunpack.c.l.b16 %v662
    %v1366 = vunpack.c.h.b16 %v662
    %v1367 = vunpack.c.l.b16 %v663
    %v1368 = vunpack.c.h.b16 %v663
    %v1369 = vunpack.c.l.b16 %v664
    %v1370 = vunpack.c.h.b16 %v664
    %v1371 = vunpack.c.l.b16 %v665
    %v1372 = vunpack.c.h.b16 %v665
    %v1373 = vunpack.c.l.b16 %v666
    %v1374 = vunpack.c.h.b16 %v666
    %v1375 = vunpack.c.l.b16 %v667
    %v1376 = vunpack.c.h.b16 %v667
    %v1377 = vunpack.c.l.b16 %v668
    %v1378 = vunpack.c.h.b16 %v668
    %v1379 = vunpack.c.l.b16 %v669
    %v1380 = vunpack.c.h.b16 %v669
    %v1381 = vunpack.c.l.b16 %v670
    %v1382 = vunpack.c.h.b16 %v670
    %v1383 = vunpack.c.l.b16 %v671
    %v1384 = vunpack.c.h.b16 %v671
    %v1385 = vunpack.c.l.b16 %v672
    %v1386 = vunpack.c.h.b16 %v672
    %v1387 = vunpack.c.l.b16 %v673
    %v1388 = vunpack.c.h.b16 %v673
    %v1389 = vunpack.c.l.b16 %v674
    %v1390 = vunpack.c.h.b16 %v674
    %v1391 = vunpack.c.l.b16 %v675
    %v1392 = vunpack.c.h.b16 %v675
    %v1393 = vunpack.c.l.b16 %v676
    %v1394 = vunpack.c.h.b16 %v676
    %v1395 = vunpack.c.l.b16 %v677
    %v1396 = vunpack.c.h.b16 %v677
    %v1397 = vunpack.c.l.b16 %v678
    %v1398 = vunpack.c.h.b16 %v678
    %v1399 = vunpack.c.l.b16 %v679
    %v1400 = vunpack.c.h.b16 %v679
    %v1401 = vunpack.c.l.b16 %v680
    %v1402 = vunpack.c.h.b16 %v680
    %v1403 = vunpack.c.l.b16 %v681
    %v1404 = vunpack.c.h.b16 %v681
    %v1405 = vunpack.c.l.b16 %v682
    %v1406 = vunpack.c.h.b16 %v682
    %v1407 = vunpack.c.l.b16 %v683
    %v1408 = vunpack.c.h.b16 %v683
    %v1409 = vunpack.c.l.b16 %v684
    %v1410 = vunpack.c.h.b16 %v684
    %v1411 = vunpack.c.l.b16 %v685
    %v1412 = vunpack.c.h.b16 %v685
    %v1413 = vunpack.c.l.b16 %v686
    %v1414 = vunpack.c.h.b16 %v686
    %v1415 = vunpack.c.l.b16 %v687
    %v1416 = vunpack.c.h.b16 %v687
    %v1417 = vunpack.c.l.b16 %v688
    %v1418 = vunpack.c.h.b16 %v688
    %v1419 = vunpack.c.l.b16 %v689
    %v1420 = vunpack.c.h.b16 %v689
    %v1421 = vunpack.c.l.b16 %v690
    %v1422 = vunpack.c.h.b16 %v690
    %v1423 = vunpack.c.l.b16 %v691
    %v1424 = vunpack.c.h.b16 %v691
    %v1425 = vunpack.c.l.b16 %v692
    %v1426 = vunpack.c.h.b16 %v692
    %v1427 = vunpack.c.l.b16 %v693
    %v1428 = vunpack.c.h.b16 %v693
    %v1429 = vunpack.c.l.b16 %v694
    %v1430 = vunpack.c.h.b16 %v694
    %v1431 = vunpack.c.l.b16 %v695
    %v1432 = vunpack.c.h.b16 %v695
    %v1433 = vunpack.c.l.b16 %v696
    %v1434 = vunpack.c.h.b16 %v696
    %v1435 = vunpack.c.l.b16 %v697
    %v1436 = vunpack.c.h.b16 %v697
    %v1437 = vunpack.c.l.b16 %v698
    %v1438 = vunpack.c.h.b16 %v698
    %v1439 = vunpack.c.l.b16 %v699
    %v1440 = vunpack.c.h.b16 %v699
    %v1441 = vunpack.c.l.b16 %v700
    %v1442 = vunpack.c.h.b16 %v700
    %v1443 = vunpack.c.l.b16 %v701
    %v1444 = vunpack.c.h.b16 %v701
    %v1445 = vunpack.c.l.b16 %v702
    %v1446 = vunpack.c.h.b16 %v702
    %v1447 = vunpack.c.l.b16 %v703
    %v1448 = vunpack.c.h.b16 %v703
    %v1449 = vunpack.c.l.b16 %v704
    %v1450 = vunpack.c.h.b16 %v704
    %v1451 = vunpack.c.l.b16 %v705
    %v1452 = vunpack.c.h.b16 %v705
    %v1453 = vunpack.c.l.b16 %v706
    %v1454 = vunpack.c.h.b16 %v706
    %v1455 = vunpack.c.l.b16 %v707
    %v1456 = vunpack.c.h.b16 %v707
    %v1457 = vunpack.c.l.b16 %v708
    %v1458 = vunpack.c.h.b16 %v708
    %v1459 = vunpack.c.l.b16 %v709
    %v1460 = vunpack.c.h.b16 %v709
    %v1461 = vunpack.c.l.b16 %v710
    %v1462 = vunpack.c.h.b16 %v710
    %v1463 = vunpack.c.l.b16 %v711
    %v1464 = vunpack.c.h.b16 %v711
    %v1465 = vunpack.c.l.b16 %v712
    %v1466 = vunpack.c.h.b16 %v712
    %v1467 = vunpack.c.l.b16 %v713
    %v1468 = vunpack.c.h.b16 %v713
    %v1469 = vunpack.c.l.b16 %v714
    %v1470 = vunpack.c.h.b16 %v714
    %v1471 = vunpack.c.l.b16 %v715
    %v1472 = vunpack.c.h.b16 %v715
    %v1473 = vunpack.c.l.b16 %v716
    %v1474 = vunpack.c.h.b16 %v716
    %v1475 = vunpack.c.l.b16 %v717
    %v1476 = vunpack.c.h.b16 %v717
    %v1477 = vunpack.c.l.b16 %v718
    %v1478 = vunpack.c.h.b16 %v718
    %v1479 = vunpack.c.l.b16 %v719
    %v1480 = vunpack.c.h.b16 %v719
    %v1481 = vunpack.c.l.b16 %v720
    %v1482 = vunpack.c.h.b16 %v720
    %v1483 = vunpack.c.l.b16 %v721
    %v1484 = vunpack.c.h.b16 %v721
    %v1485 = vunpack.c.l.b16 %v722
    %v1486 = vunpack.c.h.b16 %v722
    %v1487 = vunpack.c.l.b16 %v723
    %v1488 = vunpack.c.h.b16 %v723
    %v1489 = vunpack.c.l.b16 %v724
    %v1490 = vunpack.c.h.b16 %v724
    %v1491 = vunpack.c.l.b16 %v725
    %v1492 = vunpack.c.h.b16 %v725
    %v1493 = vunpack.c.l.b16 %v726
    %v1494 = vunpack.c.h.b16 %v726
    %v1495 = vunpack.c.l.b16 %v727
    %v1496 = vunpack.c.h.b16 %v727
    %v1497 = vunpack.c.l.b16 %v728
    %v1498 = vunpack.c.h.b16 %v728
    %v1499 = vunpack.c.l.b16 %v729
    %v1500 = vunpack.c.h.b16 %v729
    %v1501 = vunpack.c.l.b16 %v730
    %v1502 = vunpack.c.h.b16 %v730
    %v1503 = vunpack.c.l.b16 %v731
    %v1504 = vunpack.c.h.b16 %v731
    %v1505 = vunpack.c.l.b16 %v732
    %v1506 = vunpack.c.h.b16 %v732
    %v1507 = vunpack.c.l.b16 %v733
    %v1508 = vunpack.c.h.b16 %v733
    %v1509 = vunpack.c.l.b16 %v734
    %v1510 = vunpack.c.h.b16 %v734
    %v1511 = vunpack.c.l.b16 %v735
    %v1512 = vunpack.c.h.b16 %v735
    %v1513 = vunpack.c.l.b16 %v736
    %v1514 = vunpack.c.h.b16 %v736
    %v1515 = vunpack.c.l.b16 %v737
    %v1516 = vunpack.c.h.b16 %v737
    %v1517 = vunpack.c.l.b16 %v738
    %v1518 = vunpack.c.h.b16 %v738
    %v1519 = vunpack.c.l.b16 %v739
    %v1520 = vunpack.c.h.b16 %v739
    %v1521 = vunpack.c.l.b16 %v740
    %v1522 = vunpack.c.h.b16 %v740
    %v1523 = vunpack.c.l.b16 %v741
    %v1524 = vunpack.c.h.b16 %v741
    %v1525 = vunpack.c.l.b16 %v742
    %v1526 = vunpack.c.h.b16 %v742
    %v1527 = vunpack.c.l.b16 %v743
    %v1528 = vunpack.c.h.b16 %v743
    %v1529 = vunpack.c.l.b16 %v744
    %v1530 = vunpack.c.h.b16 %v744
    %v1531 = vunpack.c.l.b16 %v745
    %v1532 = vunpack.c.h.b16 %v745
    %v1533 = vunpack.c.l.b16 %v746
    %v1534 = vunpack.c.h.b16 %v746
    %v1535 = vunpack.c.l.b16 %v747
    %v1536 = vunpack.c.h.b16 %v747
    %v1537 = vunpack.c.l.b16 %v748
    %v1538 = vunpack.c.h.b16 %v748
    %v1539 = vpack.c.b16 %v1031, %v1027
    %v1540 = vpack.c.b16 %v1032, %v1028
    %v1541 = vpack.c.b16 %v1033, %v1029
    %v1542 = vpack.c.b16 %v1034, %v1030
    %v1543 = vpack.c.b16 %v1039, %v1035
    %v1544 = vpack.c.b16 %v1040, %v1036
    %v1545 = vpack.c.b16 %v1041, %v1037
    %v1546 = vpack.c.b16 %v1042, %v1038
    %v1547 = vpack.c.b16 %v1047, %v1043
    %v1548 = vpack.c.b16 %v1048, %v1044
    %v1549 = vpack.c.b16 %v1049, %v1045
    %v1550 = vpack.c.b16 %v1050, %v1046
    %v1551 = vpack.c.b16 %v1055, %v1051
    %v1552 = vpack.c.b16 %v1056, %v1052
    %v1553 = vpack.c.b16 %v1057, %v1053
    %v1554 = vpack.c.b16 %v1058, %v1054
    %v1555 = vpack.c.b16 %v1063, %v1059
    %v1556 = vpack.c.b16 %v1064, %v1060
    %v1557 = vpack.c.b16 %v1065, %v1061
    %v1558 = vpack.c.b16 %v1066, %v1062
    %v1559 = vpack.c.b16 %v1071, %v1067
    %v1560 = vpack.c.b16 %v1072, %v1068
    %v1561 = vpack.c.b16 %v1073, %v1069
    %v1562 = vpack.c.b16 %v1074, %v1070
    %v1563 = vpack.c.b16 %v1079, %v1075
    %v1564 = vpack.c.b16 %v1080, %v1076
    %v1565 = vpack.c.b16 %v1081, %v1077
    %v1566 = vpack.c.b16 %v1082, %v1078
    %v1567 = vpack.c.b16 %v1087, %v1083
    %v1568 = vpack.c.b16 %v1088, %v1084
    %v1569 = vpack.c.b16 %v1089, %v1085
    %v1570 = vpack.c.b16 %v1090, %v1086
    %v1571 = vpack.c.b16 %v1095, %v1091
    %v1572 = vpack.c.b16 %v1096, %v1092
    %v1573 = vpack.c.b16 %v1097, %v1093
    %v1574 = vpack.c.b16 %v1098, %v1094
    %v1575 = vpack.c.b16 %v1103, %v1099
    %v1576 = vpack.c.b16 %v1104, %v1100
    %v1577 = vpack.c.b16 %v1105, %v1101
    %v1578 = vpack.c.b16 %v1106, %v1102
    %v1579 = vpack.c.b16 %v1111, %v1107
    %v1580 = vpack.c.b16 %v1112, %v1108
    %v1581 = vpack.c.b16 %v1113, %v1109
    %v1582 = vpack.c.b16 %v1114, %v1110
    %v1583 = vpack.c.b16 %v1119, %v1115
    %v1584 = vpack.c.b16 %v1120, %v1116
    %v1585 = vpack.c.b16 %v1121, %v1117
    %v1586 = vpack.c.b16 %v1122, %v1118
    %v1587 = vpack.c.b16 %v1127, %v1123
    %v1588 = vpack.c.b16 %v1128, %v1124
    %v1589 = vpack.c.b16 %v1129, %v1125
    %v1590 = vpack.c.b16 %v1130, %v1126
    %v1591 = vpack.c.b16 %v1135, %v1131
    %v1592 = vpack.c.b16 %v1136, %v1132
    %v1593 = vpack.c.b16 %v1137, %v1133
    %v1594 = vpack.c.b16 %v1138, %v1134
    %v1595 = vpack.c.b16 %v1143, %v1139
    %v1596 = vpack.c.b16 %v1144, %v1140
    %v1597 = vpack.c.b16 %v1145, %v1141
    %v1598 = vpack.c.b16 %v1146, %v1142
    %v1599 = vpack.c.b16 %v1151, %v1147
    %v1600 = vpack.c.b16 %v1152, %v1148
    %v1601 = vpack.c.b16 %v1153, %v1149
    %v1602 = vpack.c.b16 %v1154, %v1150
    %v1603 = vpack.c.b16 %v1159, %v1155
    %v1604 = vpack.c.b16 %v1160, %v1156
    %v1605 = vpack.c.b16 %v1161, %v1157
    %v1606 = vpack.c.b16 %v1162, %v1158
    %v1607 = vpack.c.b16 %v1167, %v1163
    %v1608 = vpack.c.b16 %v1168, %v1164
    %v1609 = vpack.c.b16 %v1169, %v1165
    %v1610 = vpack.c.b16 %v1170, %v1166
    %v1611 = vpack.c.b16 %v1175, %v1171
    %v1612 = vpack.c.b16 %v1176, %v1172
    %v1613 = vpack.c.b16 %v1177, %v1173
    %v1614 = vpack.c.b16 %v1178, %v1174
    %v1615 = vpack.c.b16 %v1183, %v1179
    %v1616 = vpack.c.b16 %v1184, %v1180
    %v1617 = vpack.c.b16 %v1185, %v1181
    %v1618 = vpack.c.b16 %v1186, %v1182
    %v1619 = vpack.c.b16 %v1191, %v1187
    %v1620 = vpack.c.b16 %v1192, %v1188
    %v1621 = vpack.c.b16 %v1193, %v1189
    %v1622 = vpack.c.b16 %v1194, %v1190
    %v1623 = vpack.c.b16 %v1199, %v1195
    %v1624 = vpack.c.b16 %v1200, %v1196
    %v1625 = vpack.c.b16 %v1201, %v1197
    %v1626 = vpack.c.b16 %v1202, %v1198
    %v1627 = vpack.c.b16 %v1207, %v1203
    %v1628 = vpack.c.b16 %v1208, %v1204
    %v1629 = vpack.c.b16 %v1209, %v1205
    %v1630 = vpack.c.b16 %v1210, %v1206
    %v1631 = vpack.c.b16 %v1215, %v1211
    %v1632 = vpack.c.b16 %v1216, %v1212
    %v1633 = vpack.c.b16 %v1217, %v1213
    %v1634 = vpack.c.b16 %v1218, %v1214
    %v1635 = vpack.c.b16 %v1223, %v1219
    %v1636 = vpack.c.b16 %v1224, %v1220
    %v1637 = vpack.c.b16 %v1225, %v1221
    %v1638 = vpack.c.b16 %v1226, %v1222
    %v1639 = vpack.c.b16 %v1231, %v1227
    %v1640 = vpack.c.b16 %v1232, %v1228
    %v1641 = vpack.c.b16 %v1233, %v1229
    %v1642 = vpack.c.b16 %v1234, %v1230
    %v1643 = vpack.c.b16 %v1239, %v1235
    %v1644 = vpack.c.b16 %v1240, %v1236
    %v1645 = vpack.c.b16 %v1241, %v1237
    %v1646 = vpack.c.b16 %v1242, %v1238
    %v1647 = vpack.c.b16 %v1247, %v1243
    %v1648 = vpack.c.b16 %v1248, %v1244
    %v1649 = vpack.c.b16 %v1249, %v1245
    %v1650 = vpack.c.b16 %v1250, %v1246
    %v1651 = vpack.c.b16 %v1255, %v1251
    %v1652 = vpack.c.b16 %v1256, %v1252
    %v1653 = vpack.c.b16 %v1257, %v1253
    %v1654 = vpack.c.b16 %v1258, %v1254
    %v1655 = vpack.c.b16 %v1263, %v1259
    %v1656 = vpack.c.b16 %v1264, %v1260
    %v1657 = vpack.c.b16 %v1265, %v1261
    %v1658 = vpack.c.b16 %v1266, %v1262
    %v1659 = vpack.c.b16 %v1271, %v1267
    %v1660 = vpack.c.b16 %v1272, %v1268
    %v1661 = vpack.c.b16 %v1273, %v1269
    %v1662 = vpack.c.b16 %v1274, %v1270
    %v1663 = vpack.c.b16 %v1279, %v1275
    %v1664 = vpack.c.b16 %v1280, %v1276
    %v1665 = vpack.c.b16 %v1281, %v1277
    %v1666 = vpack.c.b16 %v1282, %v1278
    %v1667 = vpack.c.b16 %v1287, %v1283
    %v1668 = vpack.c.b16 %v1288, %v1284
    %v1669 = vpack.c.b16 %v1289, %v1285
    %v1670 = vpack.c.b16 %v1290, %v1286
    %v1671 = vpack.c.b16 %v1295, %v1291
    %v1672 = vpack.c.b16 %v1296, %v1292
    %v1673 = vpack.c.b16 %v1297, %v1293
    %v1674 = vpack.c.b16 %v1298, %v1294
    %v1675 = vpack.c.b16 %v1303, %v1299
    %v1676 = vpack.c.b16 %v1304, %v1300
    %v1677 = vpack.c.b16 %v1305, %v1301
    %v1678 = vpack.c.b16 %v1306, %v1302
    %v1679 = vpack.c.b16 %v1311, %v1307
    %v1680 = vpack.c.b16 %v1312, %v1308
    %v1681 = vpack.c.b16 %v1313, %v1309
    %v1682 = vpack.c.b16 %v1314, %v1310
    %v1683 = vpack.c.b16 %v1319, %v1315
    %v1684 = vpack.c.b16 %v1320, %v1316
    %v1685 = vpack.c.b16 %v1321, %v1317
    %v1686 = vpack.c.b16 %v1322, %v1318
    %v1687 = vpack.c.b16 %v1327, %v1323
    %v1688 = vpack.c.b16 %v1328, %v1324
    %v1689 = vpack.c.b16 %v1329, %v1325
    %v1690 = vpack.c.b16 %v1330, %v1326
    %v1691 = vpack.c.b16 %v1335, %v1331
    %v1692 = vpack.c.b16 %v1336, %v1332
    %v1693 = vpack.c.b16 %v1337, %v1333
    %v1694 = vpack.c.b16 %v1338, %v1334
    %v1695 = vpack.c.b16 %v1343, %v1339
    %v1696 = vpack.c.b16 %v1344, %v1340
    %v1697 = vpack.c.b16 %v1345, %v1341
    %v1698 = vpack.c.b16 %v1346, %v1342
    %v1699 = vpack.c.b16 %v1351, %v1347
    %v1700 = vpack.c.b16 %v1352, %v1348
    %v1701 = vpack.c.b16 %v1353, %v1349
    %v1702 = vpack.c.b16 %v1354, %v1350
    %v1703 = vpack.c.b16 %v1359, %v1355
    %v1704 = vpack.c.b16 %v1360, %v1356
    %v1705 = vpack.c.b16 %v1361, %v1357
    %v1706 = vpack.c.b16 %v1362, %v1358
    %v1707 = vpack.c.b16 %v1367, %v1363
    %v1708 = vpack.c.b16 %v1368, %v1364
    %v1709 = vpack.c.b16 %v1369, %v1365
    %v1710 = vpack.c.b16 %v1370, %v1366
    %v1711 = vpack.c.b16 %v1375, %v1371
    %v1712 = vpack.c.b16 %v1376, %v1372
    %v1713 = vpack.c.b16 %v1377, %v1373
    %v1714 = vpack.c.b16 %v1378, %v1374
    %v1715 = vpack.c.b16 %v1383, %v1379
    %v1716 = vpack.c.b16 %v1384, %v1380
    %v1717 = vpack.c.b16 %v1385, %v1381
    %v1718 = vpack.c.b16 %v1386, %v1382
    %v1719 = vpack.c.b16 %v1391, %v1387
    %v1720 = vpack.c.b16 %v1392, %v1388
    %v1721 = vpack.c.b16 %v1393, %v1389
    %v1722 = vpack.c.b16 %v1394, %v1390
    %v1723 = vpack.c.b16 %v1399, %v1395
    %v1724 = vpack.c.b16 %v1400, %v1396
    %v1725 = vpack.c.b16 %v1401, %v1397
    %v1726 = vpack.c.b16 %v1402, %v1398
    %v1727 = vpack.c.b16 %v1407, %v1403
    %v1728 = vpack.c.b16 %v1408, %v1404
    %v1729 = vpack.c.b16 %v1409, %v1405
    %v1730 = vpack.c.b16 %v1410, %v1406
    %v1731 = vpack.c.b16 %v1415, %v1411
    %v1732 = vpack.c.b16 %v1416, %v1412
    %v1733 = vpack.c.b16 %v1417, %v1413
    %v1734 = vpack.c.b16 %v1418, %v1414
    %v1735 = vpack.c.b16 %v1423, %v1419
    %v1736 = vpack.c.b16 %v1424, %v1420
    %v1737 = vpack.c.b16 %v1425, %v1421
    %v1738 = vpack.c.b16 %v1426, %v1422
    %v1739 = vpack.c.b16 %v1431, %v1427
    %v1740 = vpack.c.b16 %v1432, %v1428
    %v1741 = vpack.c.b16 %v1433, %v1429
    %v1742 = vpack.c.b16 %v1434, %v1430
    %v1743 = vpack.c.b16 %v1439, %v1435
    %v1744 = vpack.c.b16 %v1440, %v1436
    %v1745 = vpack.c.b16 %v1441, %v1437
    %v1746 = vpack.c.b16 %v1442, %v1438
    %v1747 = vpack.c.b16 %v1447, %v1443
    %v1748 = vpack.c.b16 %v1448, %v1444
    %v1749 = vpack.c.b16 %v1449, %v1445
    %v1750 = vpack.c.b16 %v1450, %v1446
    %v1751 = vpack.c.b16 %v1455, %v1451
    %v1752 = vpack.c.b16 %v1456, %v1452
    %v1753 = vpack.c.b16 %v1457, %v1453
    %v1754 = vpack.c.b16 %v1458, %v1454
    %v1755 = vpack.c.b16 %v1463, %v1459
    %v1756 = vpack.c.b16 %v1464, %v1460
    %v1757 = vpack.c.b16 %v1465, %v1461
    %v1758 = vpack.c.b16 %v1466, %v1462
    %v1759 = vpack.c.b16 %v1471, %v1467
    %v1760 = vpack.c.b16 %v1472, %v1468
    %v1761 = vpack.c.b16 %v1473, %v1469
    %v1762 = vpack.c.b16 %v1474, %v1470
    %v1763 = vpack.c.b16 %v1479, %v1475
    %v1764 = vpack.c.b16 %v1480, %v1476
    %v1765 = vpack.c.b16 %v1481, %v1477
    %v1766 = vpack.c.b16 %v1482, %v1478
    %v1767 = vpack.c.b16 %v1487, %v1483
    %v1768 = vpack.c.b16 %v1488, %v1484
    %v1769 = vpack.c.b16 %v1489, %v1485
    %v1770 = vpack.c.b16 %v1490, %v1486
    %v1771 = vpack.c.b16 %v1495, %v1491
    %v1772 = vpack.c.b16 %v1496, %v1492
    %v1773 = vpack.c.b16 %v1497, %v1493
    %v1774 = vpack.c.b16 %v1498, %v1494
    %v1775 = vpack.c.b16 %v1503, %v1499
    %v1776 = vpack.c.b16 %v1504, %v1500
    %v1777 = vpack.c.b16 %v1505, %v1501
    %v1778 = vpack.c.b16 %v1506, %v1502
    %v1779 = vpack.c.b16 %v1511, %v1507
    %v1780 = vpack.c.b16 %v1512, %v1508
    %v1781 = vpack.c.b16 %v1513, %v1509
    %v1782 = vpack.c.b16 %v1514, %v1510
    %v1783 = vpack.c.b16 %v1519, %v1515
    %v1784 = vpack.c.b16 %v1520, %v1516
    %v1785 = vpack.c.b16 %v1521, %v1517
    %v1786 = vpack.c.b16 %v1522, %v1518
    %v1787 = vpack.c.b16 %v1527, %v1523
    %v1788 = vpack.c.b16 %v1528, %v1524
    %v1789 = vpack.c.b16 %v1529, %v1525
    %v1790 = vpack.c.b16 %v1530, %v1526
    %v1791 = vpack.c.b16 %v1535, %v1531
    %v1792 = vpack.c.b16 %v1536, %v1532
    %v1793 = vpack.c.b16 %v1537, %v1533
    %v1794 = vpack.c.b16 %v1538, %v1534
    %2051 = vmatprep.subr.bf16.mxu0 %v1540
    %2052 = vmatpush1.bf16.msra.mxu0 %v1539
    %2053 = vmatprep.subr.bf16.mxu0 %v1544
    %2054 = vmatpush1.bf16.msra.mxu0 %v1543
    %2055 = vmatprep.subr.bf16.mxu0 %v1548
    %2056 = vmatpush1.bf16.msra.mxu0 %v1547
    %2057 = vmatprep.subr.bf16.mxu0 %v1552
    %2058 = vmatpush1.bf16.msra.mxu0 %v1551
    %2059 = vmatprep.subr.bf16.mxu0 %v1556
    %2060 = vmatpush1.bf16.msra.mxu0 %v1555
    %2061 = vmatprep.subr.bf16.mxu0 %v1560
    %2062 = vmatpush1.bf16.msra.mxu0 %v1559
    %2063 = vmatprep.subr.bf16.mxu0 %v1564
    %2064 = vmatpush1.bf16.msra.mxu0 %v1563
    %2065 = vmatprep.subr.bf16.mxu0 %v1568
    %2066 = vmatpush1.bf16.msra.mxu0 %v1567
    %2067 = vmatprep.subr.bf16.mxu0 %v1572
    %2068 = vmatpush1.bf16.msra.mxu0 %v1571
    %2069 = vmatprep.subr.bf16.mxu0 %v1576
    %2070 = vmatpush1.bf16.msra.mxu0 %v1575
    %2071 = vmatprep.subr.bf16.mxu0 %v1580
    %2072 = vmatpush1.bf16.msra.mxu0 %v1579
    %2073 = vmatprep.subr.bf16.mxu0 %v1584
    %2074 = vmatpush1.bf16.msra.mxu0 %v1583
    %2075 = vmatprep.subr.bf16.mxu0 %v1588
    %2076 = vmatpush1.bf16.msra.mxu0 %v1587
    %2077 = vmatprep.subr.bf16.mxu0 %v1592
    %2078 = vmatpush1.bf16.msra.mxu0 %v1591
    %2079 = vmatprep.subr.bf16.mxu0 %v1596
    %2080 = vmatpush1.bf16.msra.mxu0 %v1595
    %2081 = vmatprep.subr.bf16.mxu0 %v1600
    %2082 = vmatpush1.bf16.msra.mxu0 %v1599
    %2083 = vmatprep.mubr.bf16.mxu0 %v486
    %2084 = vmatmul.mubr.bf16.gmra.mrb[0].mxu0 %v485
    %v2085 = vpop.f32.mrb[0].mxu0
    %v2086 = vadd.f32 %v754, %v2085
    %v2087 = vpop.f32.mrb[0].mxu0
    %v2088 = vadd.f32 %v758, %v2087
    %v2089 = vpop.f32.mrb[0].mxu0
    %v2090 = vpop.f32.mrb[0].mxu0
    %2091 = vdwg.mxu0
    %2092 = vmatprep.subr.bf16.mxu0 %v1604
    %2093 = vmatpush1.bf16.msra.mxu0 %v1603
    %2094 = vmatprep.subr.bf16.mxu0 %v1608
    %2095 = vmatpush1.bf16.msra.mxu0 %v1607
    %2096 = vmatprep.subr.bf16.mxu0 %v1612
    %2097 = vmatpush1.bf16.msra.mxu0 %v1611
    %2098 = vmatprep.subr.bf16.mxu0 %v1616
    %2099 = vmatpush1.bf16.msra.mxu0 %v1615
    %2100 = vmatprep.subr.bf16.mxu0 %v1620
    %2101 = vmatpush1.bf16.msra.mxu0 %v1619
    %2102 = vmatprep.subr.bf16.mxu0 %v1624
    %2103 = vmatpush1.bf16.msra.mxu0 %v1623
    %2104 = vmatprep.subr.bf16.mxu0 %v1628
    %2105 = vmatpush1.bf16.msra.mxu0 %v1627
    %2106 = vmatprep.subr.bf16.mxu0 %v1632
    %2107 = vmatpush1.bf16.msra.mxu0 %v1631
    %2108 = vmatprep.subr.bf16.mxu0 %v1636
    %2109 = vmatpush1.bf16.msra.mxu0 %v1635
    %2110 = vmatprep.subr.bf16.mxu0 %v1640
    %2111 = vmatpush1.bf16.msra.mxu0 %v1639
    %2112 = vmatprep.subr.bf16.mxu0 %v1644
    %2113 = vmatpush1.bf16.msra.mxu0 %v1643
    %2114 = vmatprep.subr.bf16.mxu0 %v1648
    %2115 = vmatpush1.bf16.msra.mxu0 %v1647
    %2116 = vmatprep.subr.bf16.mxu0 %v1652
    %2117 = vmatpush1.bf16.msra.mxu0 %v1651
    %2118 = vmatprep.subr.bf16.mxu0 %v1656
    %2119 = vmatpush1.bf16.msra.mxu0 %v1655
    %2120 = vmatprep.subr.bf16.mxu0 %v1660
    %2121 = vmatpush1.bf16.msra.mxu0 %v1659
    %2122 = vmatprep.subr.bf16.mxu0 %v1664
    %2123 = vmatpush1.bf16.msra.mxu0 %v1663
    %2124 = vmatprep.mubr.bf16.mxu0 %v488
    %2125 = vmatmul.mubr.bf16.gmra.mrb[0].mxu0 %v487
    %v2126 = vpop.f32.mrb[0].mxu0
    %v2127 = vadd.f32 %v2086, %v2126
    %v2128 = vpop.f32.mrb[0].mxu0
    %v2129 = vadd.f32 %v2088, %v2128
    %v2130 = vpop.f32.mrb[0].mxu0
    %v2131 = vpop.f32.mrb[0].mxu0
    %2132 = vdwg.mxu0
    %2133 = vmatprep.subr.bf16.mxu0 %v1668
    %2134 = vmatpush1.bf16.msra.mxu0 %v1667
    %2135 = vmatprep.subr.bf16.mxu0 %v1672
    %2136 = vmatpush1.bf16.msra.mxu0 %v1671
    %2137 = vmatprep.subr.bf16.mxu0 %v1676
    %2138 = vmatpush1.bf16.msra.mxu0 %v1675
    %2139 = vmatprep.subr.bf16.mxu0 %v1680
    %2140 = vmatpush1.bf16.msra.mxu0 %v1679
    %2141 = vmatprep.subr.bf16.mxu0 %v1684
    %2142 = vmatpush1.bf16.msra.mxu0 %v1683
    %2143 = vmatprep.subr.bf16.mxu0 %v1688
    %2144 = vmatpush1.bf16.msra.mxu0 %v1687
    %2145 = vmatprep.subr.bf16.mxu0 %v1692
    %2146 = vmatpush1.bf16.msra.mxu0 %v1691
    %2147 = vmatprep.subr.bf16.mxu0 %v1696
    %2148 = vmatpush1.bf16.msra.mxu0 %v1695
    %2149 = vmatprep.subr.bf16.mxu0 %v1700
    %2150 = vmatpush1.bf16.msra.mxu0 %v1699
    %2151 = vmatprep.subr.bf16.mxu0 %v1704
    %2152 = vmatpush1.bf16.msra.mxu0 %v1703
    %2153 = vmatprep.subr.bf16.mxu0 %v1708
    %2154 = vmatpush1.bf16.msra.mxu0 %v1707
    %2155 = vmatprep.subr.bf16.mxu0 %v1712
    %2156 = vmatpush1.bf16.msra.mxu0 %v1711
    %2157 = vmatprep.subr.bf16.mxu0 %v1716
    %2158 = vmatpush1.bf16.msra.mxu0 %v1715
    %2159 = vmatprep.subr.bf16.mxu0 %v1720
    %2160 = vmatpush1.bf16.msra.mxu0 %v1719
    %2161 = vmatprep.subr.bf16.mxu0 %v1724
    %2162 = vmatpush1.bf16.msra.mxu0 %v1723
    %2163 = vmatprep.subr.bf16.mxu0 %v1728
    %2164 = vmatpush1.bf16.msra.mxu0 %v1727
    %2165 = vmatprep.mubr.bf16.mxu0 %v490
    %2166 = vmatmul.mubr.bf16.gmra.mrb[0].mxu0 %v489
    %v2167 = vpop.f32.mrb[0].mxu0
    %v2168 = vadd.f32 %v2127, %v2167
    %v2169 = vpop.f32.mrb[0].mxu0
    %v2170 = vadd.f32 %v2129, %v2169
    %v2171 = vpop.f32.mrb[0].mxu0
    %v2172 = vpop.f32.mrb[0].mxu0
    %2173 = vdwg.mxu0
    %2174 = vmatprep.subr.bf16.mxu0 %v1732
    %2175 = vmatpush1.bf16.msra.mxu0 %v1731
    %2176 = vmatprep.subr.bf16.mxu0 %v1736
    %2177 = vmatpush1.bf16.msra.mxu0 %v1735
    %2178 = vmatprep.subr.bf16.mxu0 %v1740
    %2179 = vmatpush1.bf16.msra.mxu0 %v1739
    %2180 = vmatprep.subr.bf16.mxu0 %v1744
    %2181 = vmatpush1.bf16.msra.mxu0 %v1743
    %2182 = vmatprep.subr.bf16.mxu0 %v1748
    %2183 = vmatpush1.bf16.msra.mxu0 %v1747
    %2184 = vmatprep.subr.bf16.mxu0 %v1752
    %2185 = vmatpush1.bf16.msra.mxu0 %v1751
    %2186 = vmatprep.subr.bf16.mxu0 %v1756
    %2187 = vmatpush1.bf16.msra.mxu0 %v1755
    %2188 = vmatprep.subr.bf16.mxu0 %v1760
    %2189 = vmatpush1.bf16.msra.mxu0 %v1759
    %2190 = vmatprep.subr.bf16.mxu0 %v1764
    %2191 = vmatpush1.bf16.msra.mxu0 %v1763
    %2192 = vmatprep.subr.bf16.mxu0 %v1768
    %2193 = vmatpush1.bf16.msra.mxu0 %v1767
    %2194 = vmatprep.subr.bf16.mxu0 %v1772
    %2195 = vmatpush1.bf16.msra.mxu0 %v1771
    %2196 = vmatprep.subr.bf16.mxu0 %v1776
    %2197 = vmatpush1.bf16.msra.mxu0 %v1775
    %2198 = vmatprep.subr.bf16.mxu0 %v1780
    %2199 = vmatpush1.bf16.msra.mxu0 %v1779
    %2200 = vmatprep.subr.bf16.mxu0 %v1784
    %2201 = vmatpush1.bf16.msra.mxu0 %v1783
    %2202 = vmatprep.subr.bf16.mxu0 %v1788
    %2203 = vmatpush1.bf16.msra.mxu0 %v1787
    %2204 = vmatprep.subr.bf16.mxu0 %v1792
    %2205 = vmatpush1.bf16.msra.mxu0 %v1791
    %2206 = vmatprep.mubr.bf16.mxu0 %v492
    %2207 = vmatmul.mubr.bf16.gmra.mrb[0].mxu0 %v491
    %v2208 = vpop.f32.mrb[0].mxu0
    %v2209 = vadd.f32 %v2168, %v2208
    %v2210 = vpop.f32.mrb[0].mxu0
    %v2211 = vadd.f32 %v2170, %v2210
    %v2212 = vpop.f32.mrb[0].mxu0
    %v2213 = vpop.f32.mrb[0].mxu0
    %2214 = vdwg.mxu0
    %2215 = vmatprep.subr.bf16.mxu0 %v1542
    %2216 = vmatpush1.bf16.msra.mxu0 %v1541
    %2217 = vmatprep.subr.bf16.mxu0 %v1546
    %2218 = vmatpush1.bf16.msra.mxu0 %v1545
    %2219 = vmatprep.subr.bf16.mxu0 %v1550
    %2220 = vmatpush1.bf16.msra.mxu0 %v1549
    %2221 = vmatprep.subr.bf16.mxu0 %v1554
    %2222 = vmatpush1.bf16.msra.mxu0 %v1553
    %2223 = vmatprep.subr.bf16.mxu0 %v1558
    %2224 = vmatpush1.bf16.msra.mxu0 %v1557
    %2225 = vmatprep.subr.bf16.mxu0 %v1562
    %2226 = vmatpush1.bf16.msra.mxu0 %v1561
    %2227 = vmatprep.subr.bf16.mxu0 %v1566
    %2228 = vmatpush1.bf16.msra.mxu0 %v1565
    %2229 = vmatprep.subr.bf16.mxu0 %v1570
    %2230 = vmatpush1.bf16.msra.mxu0 %v1569
    %2231 = vmatprep.subr.bf16.mxu0 %v1574
    %2232 = vmatpush1.bf16.msra.mxu0 %v1573
    %2233 = vmatprep.subr.bf16.mxu0 %v1578
    %2234 = vmatpush1.bf16.msra.mxu0 %v1577
    %2235 = vmatprep.subr.bf16.mxu0 %v1582
    %2236 = vmatpush1.bf16.msra.mxu0 %v1581
    %2237 = vmatprep.subr.bf16.mxu0 %v1586
    %2238 = vmatpush1.bf16.msra.mxu0 %v1585
    %2239 = vmatprep.subr.bf16.mxu0 %v1590
    %2240 = vmatpush1.bf16.msra.mxu0 %v1589
    %2241 = vmatprep.subr.bf16.mxu0 %v1594
    %2242 = vmatpush1.bf16.msra.mxu0 %v1593
    %2243 = vmatprep.subr.bf16.mxu0 %v1598
    %2244 = vmatpush1.bf16.msra.mxu0 %v1597
    %2245 = vmatprep.subr.bf16.mxu0 %v1602
    %2246 = vmatpush1.bf16.msra.mxu0 %v1601
    %2247 = vmatprep.mubr.bf16.mxu0 %v486
    %2248 = vmatmul.mubr.bf16.gmra.mrb[0].mxu0 %v485
    %v2249 = vpop.f32.mrb[0].mxu0
    %v2250 = vadd.f32 %v762, %v2249
    %v2251 = vpop.f32.mrb[0].mxu0
    %v2252 = vadd.f32 %v766, %v2251
    %v2253 = vpop.f32.mrb[0].mxu0
    %v2254 = vpop.f32.mrb[0].mxu0
    %2255 = vdwg.mxu0
    %2256 = vmatprep.subr.bf16.mxu0 %v1606
    %2257 = vmatpush1.bf16.msra.mxu0 %v1605
    %2258 = vmatprep.subr.bf16.mxu0 %v1610
    %2259 = vmatpush1.bf16.msra.mxu0 %v1609
    %2260 = vmatprep.subr.bf16.mxu0 %v1614
    %2261 = vmatpush1.bf16.msra.mxu0 %v1613
    %2262 = vmatprep.subr.bf16.mxu0 %v1618
    %2263 = vmatpush1.bf16.msra.mxu0 %v1617
    %2264 = vmatprep.subr.bf16.mxu0 %v1622
    %2265 = vmatpush1.bf16.msra.mxu0 %v1621
    %2266 = vmatprep.subr.bf16.mxu0 %v1626
    %2267 = vmatpush1.bf16.msra.mxu0 %v1625
    %2268 = vmatprep.subr.bf16.mxu0 %v1630
    %2269 = vmatpush1.bf16.msra.mxu0 %v1629
    %2270 = vmatprep.subr.bf16.mxu0 %v1634
    %2271 = vmatpush1.bf16.msra.mxu0 %v1633
    %2272 = vmatprep.subr.bf16.mxu0 %v1638
    %2273 = vmatpush1.bf16.msra.mxu0 %v1637
    %2274 = vmatprep.subr.bf16.mxu0 %v1642
    %2275 = vmatpush1.bf16.msra.mxu0 %v1641
    %2276 = vmatprep.subr.bf16.mxu0 %v1646
    %2277 = vmatpush1.bf16.msra.mxu0 %v1645
    %2278 = vmatprep.subr.bf16.mxu0 %v1650
    %2279 = vmatpush1.bf16.msra.mxu0 %v1649
    %2280 = vmatprep.subr.bf16.mxu0 %v1654
    %2281 = vmatpush1.bf16.msra.mxu0 %v1653
    %2282 = vmatprep.subr.bf16.mxu0 %v1658
    %2283 = vmatpush1.bf16.msra.mxu0 %v1657
    %2284 = vmatprep.subr.bf16.mxu0 %v1662
    %2285 = vmatpush1.bf16.msra.mxu0 %v1661
    %2286 = vmatprep.subr.bf16.mxu0 %v1666
    %2287 = vmatpush1.bf16.msra.mxu0 %v1665
    %2288 = vmatprep.mubr.bf16.mxu0 %v488
    %2289 = vmatmul.mubr.bf16.gmra.mrb[0].mxu0 %v487
    %v2290 = vpop.f32.mrb[0].mxu0
    %v2291 = vadd.f32 %v2250, %v2290
    %v2292 = vpop.f32.mrb[0].mxu0
    %v2293 = vadd.f32 %v2252, %v2292
    %v2294 = vpop.f32.mrb[0].mxu0
    %v2295 = vpop.f32.mrb[0].mxu0
    %2296 = vdwg.mxu0
    %2297 = vmatprep.subr.bf16.mxu0 %v1670
    %2298 = vmatpush1.bf16.msra.mxu0 %v1669
    %2299 = vmatprep.subr.bf16.mxu0 %v1674
    %2300 = vmatpush1.bf16.msra.mxu0 %v1673
    %2301 = vmatprep.subr.bf16.mxu0 %v1678
    %2302 = vmatpush1.bf16.msra.mxu0 %v1677
    %2303 = vmatprep.subr.bf16.mxu0 %v1682
    %2304 = vmatpush1.bf16.msra.mxu0 %v1681
    %2305 = vmatprep.subr.bf16.mxu0 %v1686
    %2306 = vmatpush1.bf16.msra.mxu0 %v1685
    %2307 = vmatprep.subr.bf16.mxu0 %v1690
    %2308 = vmatpush1.bf16.msra.mxu0 %v1689
    %2309 = vmatprep.subr.bf16.mxu0 %v1694
    %2310 = vmatpush1.bf16.msra.mxu0 %v1693
    %2311 = vmatprep.subr.bf16.mxu0 %v1698
    %2312 = vmatpush1.bf16.msra.mxu0 %v1697
    %2313 = vmatprep.subr.bf16.mxu0 %v1702
    %2314 = vmatpush1.bf16.msra.mxu0 %v1701
    %2315 = vmatprep.subr.bf16.mxu0 %v1706
    %2316 = vmatpush1.bf16.msra.mxu0 %v1705
    %2317 = vmatprep.subr.bf16.mxu0 %v1710
    %2318 = vmatpush1.bf16.msra.mxu0 %v1709
    %2319 = vmatprep.subr.bf16.mxu0 %v1714
    %2320 = vmatpush1.bf16.msra.mxu0 %v1713
    %2321 = vmatprep.subr.bf16.mxu0 %v1718
    %2322 = vmatpush1.bf16.msra.mxu0 %v1717
    %2323 = vmatprep.subr.bf16.mxu0 %v1722
    %2324 = vmatpush1.bf16.msra.mxu0 %v1721
    %2325 = vmatprep.subr.bf16.mxu0 %v1726
    %2326 = vmatpush1.bf16.msra.mxu0 %v1725
    %2327 = vmatprep.subr.bf16.mxu0 %v1730
    %2328 = vmatpush1.bf16.msra.mxu0 %v1729
    %2329 = vmatprep.mubr.bf16.mxu0 %v490
    %2330 = vmatmul.mubr.bf16.gmra.mrb[0].mxu0 %v489
    %v2331 = vpop.f32.mrb[0].mxu0
    %v2332 = vadd.f32 %v2291, %v2331
    %v2333 = vpop.f32.mrb[0].mxu0
    %v2334 = vadd.f32 %v2293, %v2333
    %v2335 = vpop.f32.mrb[0].mxu0
    %v2336 = vpop.f32.mrb[0].mxu0
    %2337 = vdwg.mxu0
    %2338 = vmatprep.subr.bf16.mxu0 %v1734
    %2339 = vmatpush1.bf16.msra.mxu0 %v1733
    %2340 = vmatprep.subr.bf16.mxu0 %v1738
    %2341 = vmatpush1.bf16.msra.mxu0 %v1737
    %2342 = vmatprep.subr.bf16.mxu0 %v1742
    %2343 = vmatpush1.bf16.msra.mxu0 %v1741
    %2344 = vmatprep.subr.bf16.mxu0 %v1746
    %2345 = vmatpush1.bf16.msra.mxu0 %v1745
    %2346 = vmatprep.subr.bf16.mxu0 %v1750
    %2347 = vmatpush1.bf16.msra.mxu0 %v1749
    %2348 = vmatprep.subr.bf16.mxu0 %v1754
    %2349 = vmatpush1.bf16.msra.mxu0 %v1753
    %2350 = vmatprep.subr.bf16.mxu0 %v1758
    %2351 = vmatpush1.bf16.msra.mxu0 %v1757
    %2352 = vmatprep.subr.bf16.mxu0 %v1762
    %2353 = vmatpush1.bf16.msra.mxu0 %v1761
    %2354 = vmatprep.subr.bf16.mxu0 %v1766
    %2355 = vmatpush1.bf16.msra.mxu0 %v1765
    %2356 = vmatprep.subr.bf16.mxu0 %v1770
    %2357 = vmatpush1.bf16.msra.mxu0 %v1769
    %2358 = vmatprep.subr.bf16.mxu0 %v1774
    %2359 = vmatpush1.bf16.msra.mxu0 %v1773
    %2360 = vmatprep.subr.bf16.mxu0 %v1778
    %2361 = vmatpush1.bf16.msra.mxu0 %v1777
    %2362 = vmatprep.subr.bf16.mxu0 %v1782
    %2363 = vmatpush1.bf16.msra.mxu0 %v1781
    %2364 = vmatprep.subr.bf16.mxu0 %v1786
    %2365 = vmatpush1.bf16.msra.mxu0 %v1785
    %2366 = vmatprep.subr.bf16.mxu0 %v1790
    %2367 = vmatpush1.bf16.msra.mxu0 %v1789
    %2368 = vmatprep.subr.bf16.mxu0 %v1794
    %2369 = vmatpush1.bf16.msra.mxu0 %v1793
    %2370 = vmatprep.mubr.bf16.mxu0 %v492
    %2371 = vmatmul.mubr.bf16.gmra.mrb[0].mxu0 %v491
    %v2372 = vpop.f32.mrb[0].mxu0
    %v2373 = vadd.f32 %v2332, %v2372
    %v2374 = vpop.f32.mrb[0].mxu0
    %v2375 = vadd.f32 %v2334, %v2374
    %v2376 = vpop.f32.mrb[0].mxu0
    %v2377 = vpop.f32.mrb[0].mxu0
    %2378 = vdwg.mxu0
    %v2379 = vxor.u32 %v2209, 2147483648
    %v2380 = vxor.u32 %v2211, 2147483648
    %v2381 = vxor.u32 %v2373, 2147483648
    %v2382 = vxor.u32 %v2375, 2147483648
    %v2383 = vmul.f32 %v2379, 1.442695
    %v2384 = vpow.pop %v2383
    %v2385 = vmul.f32 %v2380, 1.442695
    %v2386 = vpow.pop %v2385
    %v2387 = vmul.f32 %v2381, 1.442695
    %v2388 = vpow.pop %v2387
    %v2389 = vmul.f32 %v2382, 1.442695
    %v2390 = vpow.pop %v2389
    %v2391 = vadd.f32 %v2384, 1.0
    %v2392 = vadd.f32 %v2386, 1.0
    %v2393 = vadd.f32 %v2388, 1.0
    %v2394 = vadd.f32 %v2390, 1.0
    %v2395 = vrcp.pop %v2391
    %v2396 = vmul.f32 1.0, %v2395
    %v2397 = vrcp.pop %v2392
    %v2398 = vmul.f32 1.0, %v2397
    %v2399 = vrcp.pop %v2393
    %v2400 = vmul.f32 1.0, %v2399
    %v2401 = vrcp.pop %v2394
    %v2402 = vmul.f32 1.0, %v2401
    %v2403 = vmul.f32 %v2209, %v2396
    %v2404 = vmul.f32 %v2211, %v2398
    %v2405 = vmul.f32 %v2373, %v2400
    %v2406 = vmul.f32 %v2375, %v2402
    %v2407 = vpack.c.bf16 %v2403, %v2403
    %v2408 = vpack.c.bf16 %v2404, %v2404
    %v2409 = vpack.c.bf16 %v2405, %v2405
    %v2410 = vpack.c.bf16 %v2406, %v2406
    %v2411 = vld [vmem:[#allocation4] sm:$0xff]
    %v2412 = vld [vmem:[#allocation4 + $0x8] sm:$0xff]
    %v2413 = vld [vmem:[#allocation4 + $0x10] sm:$0xff]
    %v2414 = vld [vmem:[#allocation4 + $0x18] sm:$0xff]
    %v2415 = vld [vmem:[#allocation4 + $0x20] sm:$0xff]
    %v2416 = vld [vmem:[#allocation4 + $0x28] sm:$0xff]
    %v2417 = vld [vmem:[#allocation4 + $0x30] sm:$0xff]
    %v2418 = vld [vmem:[#allocation4 + $0x38] sm:$0xff]
    %v2419 = vld [vmem:[#allocation4 + $0x40] sm:$0xff]
    %v2420 = vld [vmem:[#allocation4 + $0x48] sm:$0xff]
    %v2421 = vld [vmem:[#allocation4 + $0x50] sm:$0xff]
    %v2422 = vld [vmem:[#allocation4 + $0x58] sm:$0xff]
    %v2423 = vld [vmem:[#allocation4 + $0x60] sm:$0xff]
    %v2424 = vld [vmem:[#allocation4 + $0x68] sm:$0xff]
    %v2425 = vld [vmem:[#allocation4 + $0x70] sm:$0xff]
    %v2426 = vld [vmem:[#allocation4 + $0x78] sm:$0xff]
    %v2427 = vld [vmem:[#allocation4 + $0x80] sm:$0xff]
    %v2428 = vld [vmem:[#allocation4 + $0x88] sm:$0xff]
    %v2429 = vld [vmem:[#allocation4 + $0x90] sm:$0xff]
    %v2430 = vld [vmem:[#allocation4 + $0x98] sm:$0xff]
    %v2431 = vld [vmem:[#allocation4 + $0xa0] sm:$0xff]
    %v2432 = vld [vmem:[#allocation4 + $0xa8] sm:$0xff]
    %v2433 = vld [vmem:[#allocation4 + $0xb0] sm:$0xff]
    %v2434 = vld [vmem:[#allocation4 + $0xb8] sm:$0xff]
    %v2435 = vld [vmem:[#allocation4 + $0xc0] sm:$0xff]
    %v2436 = vld [vmem:[#allocation4 + $0xc8] sm:$0xff]
    %v2437 = vld [vmem:[#allocation4 + $0xd0] sm:$0xff]
    %v2438 = vld [vmem:[#allocation4 + $0xd8] sm:$0xff]
    %v2439 = vld [vmem:[#allocation4 + $0xe0] sm:$0xff]
    %v2440 = vld [vmem:[#allocation4 + $0xe8] sm:$0xff]
    %v2441 = vld [vmem:[#allocation4 + $0xf0] sm:$0xff]
    %v2442 = vld [vmem:[#allocation4 + $0xf8] sm:$0xff]
    %v2443 = vld [vmem:[#allocation4 + $0x100] sm:$0xff]
    %v2444 = vld [vmem:[#allocation4 + $0x108] sm:$0xff]
    %v2445 = vld [vmem:[#allocation4 + $0x110] sm:$0xff]
    %v2446 = vld [vmem:[#allocation4 + $0x118] sm:$0xff]
    %v2447 = vld [vmem:[#allocation4 + $0x120] sm:$0xff]
    %v2448 = vld [vmem:[#allocation4 + $0x128] sm:$0xff]
    %v2449 = vld [vmem:[#allocation4 + $0x130] sm:$0xff]
    %v2450 = vld [vmem:[#allocation4 + $0x138] sm:$0xff]
    %v2451 = vld [vmem:[#allocation4 + $0x140] sm:$0xff]
    %v2452 = vld [vmem:[#allocation4 + $0x148] sm:$0xff]
    %v2453 = vld [vmem:[#allocation4 + $0x150] sm:$0xff]
    %v2454 = vld [vmem:[#allocation4 + $0x158] sm:$0xff]
    %v2455 = vld [vmem:[#allocation4 + $0x160] sm:$0xff]
    %v2456 = vld [vmem:[#allocation4 + $0x168] sm:$0xff]
    %v2457 = vld [vmem:[#allocation4 + $0x170] sm:$0xff]
    %v2458 = vld [vmem:[#allocation4 + $0x178] sm:$0xff]
    %v2459 = vld [vmem:[#allocation4 + $0x180] sm:$0xff]
    %v2460 = vld [vmem:[#allocation4 + $0x188] sm:$0xff]
    %v2461 = vld [vmem:[#allocation4 + $0x190] sm:$0xff]
    %v2462 = vld [vmem:[#allocation4 + $0x198] sm:$0xff]
    %v2463 = vld [vmem:[#allocation4 + $0x1a0] sm:$0xff]
    %v2464 = vld [vmem:[#allocation4 + $0x1a8] sm:$0xff]
    %v2465 = vld [vmem:[#allocation4 + $0x1b0] sm:$0xff]
    %v2466 = vld [vmem:[#allocation4 + $0x1b8] sm:$0xff]
    %v2467 = vld [vmem:[#allocation4 + $0x1c0] sm:$0xff]
    %v2468 = vld [vmem:[#allocation4 + $0x1c8] sm:$0xff]
    %v2469 = vld [vmem:[#allocation4 + $0x1d0] sm:$0xff]
    %v2470 = vld [vmem:[#allocation4 + $0x1d8] sm:$0xff]
    %v2471 = vld [vmem:[#allocation4 + $0x1e0] sm:$0xff]
    %v2472 = vld [vmem:[#allocation4 + $0x1e8] sm:$0xff]
    %v2473 = vld [vmem:[#allocation4 + $0x1f0] sm:$0xff]
    %v2474 = vld [vmem:[#allocation4 + $0x1f8] sm:$0xff]
    %v2475 = vld [vmem:[%s11] sm:$0x3]
    %v2477 = vlaneseq
    %v2478 = vshrl.u32 %v2477, 7
    %v2479 = vsub.s32 0, %v2478
    %v2480 = vrot.slane %v2475, %v2479
    %v2481 = vlaneseq
    %v2482 = vshrl.u32 %v2481, 7
    %v2483 = vsub.s32 1, %v2482
    %v2484 = vrot.slane %v2475, %v2483
    %v2551 = vunpack.c.l.b16 %v2411
    %v2552 = vunpack.c.h.b16 %v2411
    %v2553 = vunpack.c.l.b16 %v2412
    %v2554 = vunpack.c.h.b16 %v2412
    %v2555 = vunpack.c.l.b16 %v2413
    %v2556 = vunpack.c.h.b16 %v2413
    %v2557 = vunpack.c.l.b16 %v2414
    %v2558 = vunpack.c.h.b16 %v2414
    %v2559 = vunpack.c.l.b16 %v2415
    %v2560 = vunpack.c.h.b16 %v2415
    %v2561 = vunpack.c.l.b16 %v2416
    %v2562 = vunpack.c.h.b16 %v2416
    %v2563 = vunpack.c.l.b16 %v2417
    %v2564 = vunpack.c.h.b16 %v2417
    %v2565 = vunpack.c.l.b16 %v2418
    %v2566 = vunpack.c.h.b16 %v2418
    %v2567 = vunpack.c.l.b16 %v2419
    %v2568 = vunpack.c.h.b16 %v2419
    %v2569 = vunpack.c.l.b16 %v2420
    %v2570 = vunpack.c.h.b16 %v2420
    %v2571 = vunpack.c.l.b16 %v2421
    %v2572 = vunpack.c.h.b16 %v2421
    %v2573 = vunpack.c.l.b16 %v2422
    %v2574 = vunpack.c.h.b16 %v2422
    %v2575 = vunpack.c.l.b16 %v2423
    %v2576 = vunpack.c.h.b16 %v2423
    %v2577 = vunpack.c.l.b16 %v2424
    %v2578 = vunpack.c.h.b16 %v2424
    %v2579 = vunpack.c.l.b16 %v2425
    %v2580 = vunpack.c.h.b16 %v2425
    %v2581 = vunpack.c.l.b16 %v2426
    %v2582 = vunpack.c.h.b16 %v2426
    %v2583 = vunpack.c.l.b16 %v2427
    %v2584 = vunpack.c.h.b16 %v2427
    %v2585 = vunpack.c.l.b16 %v2428
    %v2586 = vunpack.c.h.b16 %v2428
    %v2587 = vunpack.c.l.b16 %v2429
    %v2588 = vunpack.c.h.b16 %v2429
    %v2589 = vunpack.c.l.b16 %v2430
    %v2590 = vunpack.c.h.b16 %v2430
    %v2591 = vunpack.c.l.b16 %v2431
    %v2592 = vunpack.c.h.b16 %v2431
    %v2593 = vunpack.c.l.b16 %v2432
    %v2594 = vunpack.c.h.b16 %v2432
    %v2595 = vunpack.c.l.b16 %v2433
    %v2596 = vunpack.c.h.b16 %v2433
    %v2597 = vunpack.c.l.b16 %v2434
    %v2598 = vunpack.c.h.b16 %v2434
    %v2599 = vunpack.c.l.b16 %v2435
    %v2600 = vunpack.c.h.b16 %v2435
    %v2601 = vunpack.c.l.b16 %v2436
    %v2602 = vunpack.c.h.b16 %v2436
    %v2603 = vunpack.c.l.b16 %v2437
    %v2604 = vunpack.c.h.b16 %v2437
    %v2605 = vunpack.c.l.b16 %v2438
    %v2606 = vunpack.c.h.b16 %v2438
    %v2607 = vunpack.c.l.b16 %v2439
    %v2608 = vunpack.c.h.b16 %v2439
    %v2609 = vunpack.c.l.b16 %v2440
    %v2610 = vunpack.c.h.b16 %v2440
    %v2611 = vunpack.c.l.b16 %v2441
    %v2612 = vunpack.c.h.b16 %v2441
    %v2613 = vunpack.c.l.b16 %v2442
    %v2614 = vunpack.c.h.b16 %v2442
    %v2615 = vunpack.c.l.b16 %v2443
    %v2616 = vunpack.c.h.b16 %v2443
    %v2617 = vunpack.c.l.b16 %v2444
    %v2618 = vunpack.c.h.b16 %v2444
    %v2619 = vunpack.c.l.b16 %v2445
    %v2620 = vunpack.c.h.b16 %v2445
    %v2621 = vunpack.c.l.b16 %v2446
    %v2622 = vunpack.c.h.b16 %v2446
    %v2623 = vunpack.c.l.b16 %v2447
    %v2624 = vunpack.c.h.b16 %v2447
    %v2625 = vunpack.c.l.b16 %v2448
    %v2626 = vunpack.c.h.b16 %v2448
    %v2627 = vunpack.c.l.b16 %v2449
    %v2628 = vunpack.c.h.b16 %v2449
    %v2629 = vunpack.c.l.b16 %v2450
    %v2630 = vunpack.c.h.b16 %v2450
    %v2631 = vunpack.c.l.b16 %v2451
    %v2632 = vunpack.c.h.b16 %v2451
    %v2633 = vunpack.c.l.b16 %v2452
    %v2634 = vunpack.c.h.b16 %v2452
    %v2635 = vunpack.c.l.b16 %v2453
    %v2636 = vunpack.c.h.b16 %v2453
    %v2637 = vunpack.c.l.b16 %v2454
    %v2638 = vunpack.c.h.b16 %v2454
    %v2639 = vunpack.c.l.b16 %v2455
    %v2640 = vunpack.c.h.b16 %v2455
    %v2641 = vunpack.c.l.b16 %v2456
    %v2642 = vunpack.c.h.b16 %v2456
    %v2643 = vunpack.c.l.b16 %v2457
    %v2644 = vunpack.c.h.b16 %v2457
    %v2645 = vunpack.c.l.b16 %v2458
    %v2646 = vunpack.c.h.b16 %v2458
    %v2647 = vunpack.c.l.b16 %v2459
    %v2648 = vunpack.c.h.b16 %v2459
    %v2649 = vunpack.c.l.b16 %v2460
    %v2650 = vunpack.c.h.b16 %v2460
    %v2651 = vunpack.c.l.b16 %v2461
    %v2652 = vunpack.c.h.b16 %v2461
    %v2653 = vunpack.c.l.b16 %v2462
    %v2654 = vunpack.c.h.b16 %v2462
    %v2655 = vunpack.c.l.b16 %v2463
    %v2656 = vunpack.c.h.b16 %v2463
    %v2657 = vunpack.c.l.b16 %v2464
    %v2658 = vunpack.c.h.b16 %v2464
    %v2659 = vunpack.c.l.b16 %v2465
    %v2660 = vunpack.c.h.b16 %v2465
    %v2661 = vunpack.c.l.b16 %v2466
    %v2662 = vunpack.c.h.b16 %v2466
    %v2663 = vunpack.c.l.b16 %v2467
    %v2664 = vunpack.c.h.b16 %v2467
    %v2665 = vunpack.c.l.b16 %v2468
    %v2666 = vunpack.c.h.b16 %v2468
    %v2667 = vunpack.c.l.b16 %v2469
    %v2668 = vunpack.c.h.b16 %v2469
    %v2669 = vunpack.c.l.b16 %v2470
    %v2670 = vunpack.c.h.b16 %v2470
    %v2671 = vunpack.c.l.b16 %v2471
    %v2672 = vunpack.c.h.b16 %v2471
    %v2673 = vunpack.c.l.b16 %v2472
    %v2674 = vunpack.c.h.b16 %v2472
    %v2675 = vunpack.c.l.b16 %v2473
    %v2676 = vunpack.c.h.b16 %v2473
    %v2677 = vunpack.c.l.b16 %v2474
    %v2678 = vunpack.c.h.b16 %v2474
    %v2679 = vpack.c.b16 %v2553, %v2551
    %v2680 = vpack.c.b16 %v2554, %v2552
    %v2681 = vpack.c.b16 %v2557, %v2555
    %v2682 = vpack.c.b16 %v2558, %v2556
    %v2683 = vpack.c.b16 %v2561, %v2559
    %v2684 = vpack.c.b16 %v2562, %v2560
    %v2685 = vpack.c.b16 %v2565, %v2563
    %v2686 = vpack.c.b16 %v2566, %v2564
    %v2687 = vpack.c.b16 %v2569, %v2567
    %v2688 = vpack.c.b16 %v2570, %v2568
    %v2689 = vpack.c.b16 %v2573, %v2571
    %v2690 = vpack.c.b16 %v2574, %v2572
    %v2691 = vpack.c.b16 %v2577, %v2575
    %v2692 = vpack.c.b16 %v2578, %v2576
    %v2693 = vpack.c.b16 %v2581, %v2579
    %v2694 = vpack.c.b16 %v2582, %v2580
    %v2695 = vpack.c.b16 %v2585, %v2583
    %v2696 = vpack.c.b16 %v2586, %v2584
    %v2697 = vpack.c.b16 %v2589, %v2587
    %v2698 = vpack.c.b16 %v2590, %v2588
    %v2699 = vpack.c.b16 %v2593, %v2591
    %v2700 = vpack.c.b16 %v2594, %v2592
    %v2701 = vpack.c.b16 %v2597, %v2595
    %v2702 = vpack.c.b16 %v2598, %v2596
    %v2703 = vpack.c.b16 %v2601, %v2599
    %v2704 = vpack.c.b16 %v2602, %v2600
    %v2705 = vpack.c.b16 %v2605, %v2603
    %v2706 = vpack.c.b16 %v2606, %v2604
    %v2707 = vpack.c.b16 %v2609, %v2607
    %v2708 = vpack.c.b16 %v2610, %v2608
    %v2709 = vpack.c.b16 %v2613, %v2611
    %v2710 = vpack.c.b16 %v2614, %v2612
    %v2711 = vpack.c.b16 %v2617, %v2615
    %v2712 = vpack.c.b16 %v2618, %v2616
    %v2713 = vpack.c.b16 %v2621, %v2619
    %v2714 = vpack.c.b16 %v2622, %v2620
    %v2715 = vpack.c.b16 %v2625, %v2623
    %v2716 = vpack.c.b16 %v2626, %v2624
    %v2717 = vpack.c.b16 %v2629, %v2627
    %v2718 = vpack.c.b16 %v2630, %v2628
    %v2719 = vpack.c.b16 %v2633, %v2631
    %v2720 = vpack.c.b16 %v2634, %v2632
    %v2721 = vpack.c.b16 %v2637, %v2635
    %v2722 = vpack.c.b16 %v2638, %v2636
    %v2723 = vpack.c.b16 %v2641, %v2639
    %v2724 = vpack.c.b16 %v2642, %v2640
    %v2725 = vpack.c.b16 %v2645, %v2643
    %v2726 = vpack.c.b16 %v2646, %v2644
    %v2727 = vpack.c.b16 %v2649, %v2647
    %v2728 = vpack.c.b16 %v2650, %v2648
    %v2729 = vpack.c.b16 %v2653, %v2651
    %v2730 = vpack.c.b16 %v2654, %v2652
    %v2731 = vpack.c.b16 %v2657, %v2655
    %v2732 = vpack.c.b16 %v2658, %v2656
    %v2733 = vpack.c.b16 %v2661, %v2659
    %v2734 = vpack.c.b16 %v2662, %v2660
    %v2735 = vpack.c.b16 %v2665, %v2663
    %v2736 = vpack.c.b16 %v2666, %v2664
    %v2737 = vpack.c.b16 %v2669, %v2667
    %v2738 = vpack.c.b16 %v2670, %v2668
    %v2739 = vpack.c.b16 %v2673, %v2671
    %v2740 = vpack.c.b16 %v2674, %v2672
    %v2741 = vpack.c.b16 %v2677, %v2675
    %v2742 = vpack.c.b16 %v2678, %v2676
    %2807 = vmatprep.subr.bf16.mxu0 %v2680
    %2808 = vmatpush1.bf16.msra.mxu0 %v2679
    %2809 = vmatprep.subr.bf16.mxu0 %v2682
    %2810 = vmatpush1.bf16.msra.mxu0 %v2681
    %2811 = vmatprep.subr.bf16.mxu0 %v2684
    %2812 = vmatpush1.bf16.msra.mxu0 %v2683
    %2813 = vmatprep.subr.bf16.mxu0 %v2686
    %2814 = vmatpush1.bf16.msra.mxu0 %v2685
    %2815 = vmatprep.subr.bf16.mxu0 %v2688
    %2816 = vmatpush1.bf16.msra.mxu0 %v2687
    %2817 = vmatprep.subr.bf16.mxu0 %v2690
    %2818 = vmatpush1.bf16.msra.mxu0 %v2689
    %2819 = vmatprep.subr.bf16.mxu0 %v2692
    %2820 = vmatpush1.bf16.msra.mxu0 %v2691
    %2821 = vmatprep.subr.bf16.mxu0 %v2694
    %2822 = vmatpush1.bf16.msra.mxu0 %v2693
    %2823 = vmatprep.subr.bf16.mxu0 %v2696
    %2824 = vmatpush1.bf16.msra.mxu0 %v2695
    %2825 = vmatprep.subr.bf16.mxu0 %v2698
    %2826 = vmatpush1.bf16.msra.mxu0 %v2697
    %2827 = vmatprep.subr.bf16.mxu0 %v2700
    %2828 = vmatpush1.bf16.msra.mxu0 %v2699
    %2829 = vmatprep.subr.bf16.mxu0 %v2702
    %2830 = vmatpush1.bf16.msra.mxu0 %v2701
    %2831 = vmatprep.subr.bf16.mxu0 %v2704
    %2832 = vmatpush1.bf16.msra.mxu0 %v2703
    %2833 = vmatprep.subr.bf16.mxu0 %v2706
    %2834 = vmatpush1.bf16.msra.mxu0 %v2705
    %2835 = vmatprep.subr.bf16.mxu0 %v2708
    %2836 = vmatpush1.bf16.msra.mxu0 %v2707
    %2837 = vmatprep.subr.bf16.mxu0 %v2710
    %2838 = vmatpush1.bf16.msra.mxu0 %v2709
    %2839 = vmatprep.mubr.bf16.mxu0 %v2408
    %2840 = vmatmul.mubr.bf16.gmra.mrb[0].mxu0 %v2407
    %v2841 = vpop.f32.mrb[0].mxu0
    %v2842 = vadd.f32 %v2480, %v2841
    %v2843 = vpop.f32.mrb[0].mxu0
    %v2844 = vadd.f32 %v2484, %v2843
    %v2845 = vpop.f32.mrb[0].mxu0
    %v2846 = vpop.f32.mrb[0].mxu0
    %2847 = vdwg.mxu0
    %2848 = vmatprep.subr.bf16.mxu0 %v2712
    %2849 = vmatpush1.bf16.msra.mxu0 %v2711
    %2850 = vmatprep.subr.bf16.mxu0 %v2714
    %2851 = vmatpush1.bf16.msra.mxu0 %v2713
    %2852 = vmatprep.subr.bf16.mxu0 %v2716
    %2853 = vmatpush1.bf16.msra.mxu0 %v2715
    %2854 = vmatprep.subr.bf16.mxu0 %v2718
    %2855 = vmatpush1.bf16.msra.mxu0 %v2717
    %2856 = vmatprep.subr.bf16.mxu0 %v2720
    %2857 = vmatpush1.bf16.msra.mxu0 %v2719
    %2858 = vmatprep.subr.bf16.mxu0 %v2722
    %2859 = vmatpush1.bf16.msra.mxu0 %v2721
    %2860 = vmatprep.subr.bf16.mxu0 %v2724
    %2861 = vmatpush1.bf16.msra.mxu0 %v2723
    %2862 = vmatprep.subr.bf16.mxu0 %v2726
    %2863 = vmatpush1.bf16.msra.mxu0 %v2725
    %2864 = vmatprep.subr.bf16.mxu0 %v2728
    %2865 = vmatpush1.bf16.msra.mxu0 %v2727
    %2866 = vmatprep.subr.bf16.mxu0 %v2730
    %2867 = vmatpush1.bf16.msra.mxu0 %v2729
    %2868 = vmatprep.subr.bf16.mxu0 %v2732
    %2869 = vmatpush1.bf16.msra.mxu0 %v2731
    %2870 = vmatprep.subr.bf16.mxu0 %v2734
    %2871 = vmatpush1.bf16.msra.mxu0 %v2733
    %2872 = vmatprep.subr.bf16.mxu0 %v2736
    %2873 = vmatpush1.bf16.msra.mxu0 %v2735
    %2874 = vmatprep.subr.bf16.mxu0 %v2738
    %2875 = vmatpush1.bf16.msra.mxu0 %v2737
    %2876 = vmatprep.subr.bf16.mxu0 %v2740
    %2877 = vmatpush1.bf16.msra.mxu0 %v2739
    %2878 = vmatprep.subr.bf16.mxu0 %v2742
    %2879 = vmatpush1.bf16.msra.mxu0 %v2741
    %2880 = vmatprep.mubr.bf16.mxu0 %v2410
    %2881 = vmatmul.mubr.bf16.gmra.mrb[0].mxu0 %v2409
    %v2882 = vpop.f32.mrb[0].mxu0
    %v2883 = vadd.f32 %v2842, %v2882
    %v2884 = vpop.f32.mrb[0].mxu0
    %v2885 = vadd.f32 %v2844, %v2884
    %v2886 = vpop.f32.mrb[0].mxu0
    %v2887 = vpop.f32.mrb[0].mxu0
    %2888 = vdwg.mxu0
    %v2889 = vxor.u32 %v2883, 2147483648
    %v2890 = vxor.u32 %v2885, 2147483648
    %v2891 = vmul.f32 %v2889, 1.442695
    %v2892 = vpow.pop %v2891
    %v2893 = vmul.f32 %v2890, 1.442695
    %v2894 = vpow.pop %v2893
    %v2895 = vadd.f32 %v2892, 1.0
    %v2896 = vadd.f32 %v2894, 1.0
    %v2897 = vrcp.pop %v2895
    %v2898 = vmul.f32 1.0, %v2897
    %v2899 = vrcp.pop %v2896
    %v2900 = vmul.f32 1.0, %v2899
    %v2901 = vmul.f32 %v2883, %v2898
    %v2902 = vmul.f32 %v2885, %v2900
    %v2903 = vpack.c.bf16 %v2901, %v2901
    %v2904 = vpack.c.bf16 %v2902, %v2902
    %v2905 = vld [vmem:[#allocation6] sm:$0xf]
    %v2906 = vld [vmem:[#allocation6 + $0x4] sm:$0xf]
    %v2907 = vld [vmem:[#allocation6 + $0x8] sm:$0xf]
    %v2908 = vld [vmem:[#allocation6 + $0xc] sm:$0xf]
    %v2909 = vld [vmem:[#allocation6 + $0x10] sm:$0xf]
    %v2910 = vld [vmem:[#allocation6 + $0x14] sm:$0xf]
    %v2911 = vld [vmem:[#allocation6 + $0x18] sm:$0xf]
    %v2912 = vld [vmem:[#allocation6 + $0x1c] sm:$0xf]
    %v2913 = vld [vmem:[#allocation6 + $0x20] sm:$0xf]
    %v2914 = vld [vmem:[#allocation6 + $0x24] sm:$0xf]
    %v2915 = vld [vmem:[#allocation6 + $0x28] sm:$0xf]
    %v2916 = vld [vmem:[#allocation6 + $0x2c] sm:$0xf]
    %v2917 = vld [vmem:[#allocation6 + $0x30] sm:$0xf]
    %v2918 = vld [vmem:[#allocation6 + $0x34] sm:$0xf]
    %v2919 = vld [vmem:[#allocation6 + $0x38] sm:$0xf]
    %v2920 = vld [vmem:[#allocation6 + $0x3c] sm:$0xf]
    %v2921 = vld [vmem:[#allocation6 + $0x40] sm:$0xf]
    %v2922 = vld [vmem:[#allocation6 + $0x44] sm:$0xf]
    %v2923 = vld [vmem:[#allocation6 + $0x48] sm:$0xf]
    %v2924 = vld [vmem:[#allocation6 + $0x4c] sm:$0xf]
    %v2925 = vld [vmem:[#allocation6 + $0x50] sm:$0xf]
    %v2926 = vld [vmem:[#allocation6 + $0x54] sm:$0xf]
    %v2927 = vld [vmem:[#allocation6 + $0x58] sm:$0xf]
    %v2928 = vld [vmem:[#allocation6 + $0x5c] sm:$0xf]
    %v2929 = vld [vmem:[#allocation6 + $0x60] sm:$0xf]
    %v2930 = vld [vmem:[#allocation6 + $0x64] sm:$0xf]
    %v2931 = vld [vmem:[#allocation6 + $0x68] sm:$0xf]
    %v2932 = vld [vmem:[#allocation6 + $0x6c] sm:$0xf]
    %v2933 = vld [vmem:[#allocation6 + $0x70] sm:$0xf]
    %v2934 = vld [vmem:[#allocation6 + $0x74] sm:$0xf]
    %v2935 = vld [vmem:[#allocation6 + $0x78] sm:$0xf]
    %v2936 = vld [vmem:[#allocation6 + $0x7c] sm:$0xf]
    %v2937 = vld [vmem:[%s12] sm:$0x1]
    %v2939 = vlaneseq
    %v2940 = vshrl.u32 %v2939, 7
    %v2941 = vsub.s32 0, %v2940
    %v2942 = vrot.slane %v2937, %v2941
    %v2976 = vunpack.c.l.b16 %v2905
    %v2977 = vunpack.c.l.b16 %v2906
    %v2978 = vunpack.c.l.b16 %v2907
    %v2979 = vunpack.c.l.b16 %v2908
    %v2980 = vunpack.c.l.b16 %v2909
    %v2981 = vunpack.c.l.b16 %v2910
    %v2982 = vunpack.c.l.b16 %v2911
    %v2983 = vunpack.c.l.b16 %v2912
    %v2984 = vunpack.c.l.b16 %v2913
    %v2985 = vunpack.c.l.b16 %v2914
    %v2986 = vunpack.c.l.b16 %v2915
    %v2987 = vunpack.c.l.b16 %v2916
    %v2988 = vunpack.c.l.b16 %v2917
    %v2989 = vunpack.c.l.b16 %v2918
    %v2990 = vunpack.c.l.b16 %v2919
    %v2991 = vunpack.c.l.b16 %v2920
    %v2992 = vunpack.c.l.b16 %v2921
    %v2993 = vunpack.c.l.b16 %v2922
    %v2994 = vunpack.c.l.b16 %v2923
    %v2995 = vunpack.c.l.b16 %v2924
    %v2996 = vunpack.c.l.b16 %v2925
    %v2997 = vunpack.c.l.b16 %v2926
    %v2998 = vunpack.c.l.b16 %v2927
    %v2999 = vunpack.c.l.b16 %v2928
    %v3000 = vunpack.c.l.b16 %v2929
    %v3001 = vunpack.c.l.b16 %v2930
    %v3002 = vunpack.c.l.b16 %v2931
    %v3003 = vunpack.c.l.b16 %v2932
    %v3004 = vunpack.c.l.b16 %v2933
    %v3005 = vunpack.c.l.b16 %v2934
    %v3006 = vunpack.c.l.b16 %v2935
    %v3007 = vunpack.c.l.b16 %v2936
    %v3008 = vpack.c.b16 %v2977, %v2976
    %v3009 = vpack.c.b16 %v2979, %v2978
    %v3010 = vpack.c.b16 %v2981, %v2980
    %v3011 = vpack.c.b16 %v2983, %v2982
    %v3012 = vpack.c.b16 %v2985, %v2984
    %v3013 = vpack.c.b16 %v2987, %v2986
    %v3014 = vpack.c.b16 %v2989, %v2988
    %v3015 = vpack.c.b16 %v2991, %v2990
    %v3016 = vpack.c.b16 %v2993, %v2992
    %v3017 = vpack.c.b16 %v2995, %v2994
    %v3018 = vpack.c.b16 %v2997, %v2996
    %v3019 = vpack.c.b16 %v2999, %v2998
    %v3020 = vpack.c.b16 %v3001, %v3000
    %v3021 = vpack.c.b16 %v3003, %v3002
    %v3022 = vpack.c.b16 %v3005, %v3004
    %v3023 = vpack.c.b16 %v3007, %v3006
    %3040 = vmatprep.subr.bf16.mxu0 0
    %3041 = vmatpush1.bf16.msra.mxu0 %v3008
    %3042 = vmatprep.subr.bf16.mxu0 0
    %3043 = vmatpush1.bf16.msra.mxu0 %v3009
    %3044 = vmatprep.subr.bf16.mxu0 0
    %3045 = vmatpush1.bf16.msra.mxu0 %v3010
    %3046 = vmatprep.subr.bf16.mxu0 0
    %3047 = vmatpush1.bf16.msra.mxu0 %v3011
    %3048 = vmatprep.subr.bf16.mxu0 0
    %3049 = vmatpush1.bf16.msra.mxu0 %v3012
    %3050 = vmatprep.subr.bf16.mxu0 0
    %3051 = vmatpush1.bf16.msra.mxu0 %v3013
    %3052 = vmatprep.subr.bf16.mxu0 0
    %3053 = vmatpush1.bf16.msra.mxu0 %v3014
    %3054 = vmatprep.subr.bf16.mxu0 0
    %3055 = vmatpush1.bf16.msra.mxu0 %v3015
    %3056 = vmatprep.subr.bf16.mxu0 0
    %3057 = vmatpush1.bf16.msra.mxu0 %v3016
    %3058 = vmatprep.subr.bf16.mxu0 0
    %3059 = vmatpush1.bf16.msra.mxu0 %v3017
    %3060 = vmatprep.subr.bf16.mxu0 0
    %3061 = vmatpush1.bf16.msra.mxu0 %v3018
    %3062 = vmatprep.subr.bf16.mxu0 0
    %3063 = vmatpush1.bf16.msra.mxu0 %v3019
    %3064 = vmatprep.subr.bf16.mxu0 0
    %3065 = vmatpush1.bf16.msra.mxu0 %v3020
    %3066 = vmatprep.subr.bf16.mxu0 0
    %3067 = vmatpush1.bf16.msra.mxu0 %v3021
    %3068 = vmatprep.subr.bf16.mxu0 0
    %3069 = vmatpush1.bf16.msra.mxu0 %v3022
    %3070 = vmatprep.subr.bf16.mxu0 0
    %3071 = vmatpush1.bf16.msra.mxu0 %v3023
    %3072 = vmatprep.mubr.bf16.mxu0 %v2904
    %3073 = vmatmul.mubr.bf16.gmra.mrb[0].mxu0 %v2903
    %v3074 = vpop.f32.mrb[0].mxu0
    %v3075 = vadd.f32 %v2942, %v3074
    %v3076 = vpop.f32.mrb[0].mxu0
    %v3077 = vpop.f32.mrb[0].mxu0
    %v3078 = vpop.f32.mrb[0].mxu0
    %3079 = vdwg.mxu0
    %v3080 = vxor.u32 %v3075, 2147483648
    %v3081 = vmul.f32 %v3080, 1.442695
    %v3082 = vpow.pop %v3081
    %v3083 = vadd.f32 %v3082, 1.0
    %v3084 = vrcp.pop %v3083
    %v3085 = vmul.f32 1.0, %v3084
    %v3086 = vmul.f32 %v3075, %v3085
    %v3087 = vpack.c.bf16 %v3086, %v3086
    %v3088 = vld [vmem:[%s5] sm:$0xf]
    %v3089 = vld [vmem:[%s5 + $0x4] sm:$0xf]
    %v3090 = vld [vmem:[%s5 + $0x8] sm:$0xf]
    %v3091 = vld [vmem:[%s5 + $0xc] sm:$0xf]
    %v3092 = vld [vmem:[%s5 + $0x10] sm:$0xf]
    %v3093 = vld [vmem:[%s5 + $0x14] sm:$0xf]
    %v3094 = vld [vmem:[%s5 + $0x18] sm:$0xf]
    %v3095 = vld [vmem:[%s5 + $0x1c] sm:$0xf]
    %v3096 = vld [vmem:[%s5 + $0x20] sm:$0xf]
    %v3097 = vld [vmem:[%s5 + $0x24] sm:$0xf]
    %v3098 = vld [vmem:[%s5 + $0x28] sm:$0xf]
    %v3099 = vld [vmem:[%s5 + $0x2c] sm:$0xf]
    %v3100 = vld [vmem:[%s5 + $0x30] sm:$0xf]
    %v3101 = vld [vmem:[%s5 + $0x34] sm:$0xf]
    %v3102 = vld [vmem:[%s5 + $0x38] sm:$0xf]
    %v3103 = vld [vmem:[%s5 + $0x3c] sm:$0xf]
    %v3104 = vld [vmem:[%s13] sm:$0x1]
    %v3106 = vlaneseq
    %v3107 = vshrl.u32 %v3106, 7
    %v3108 = vsub.s32 0, %v3107
    %v3109 = vrot.slane %v3104, %v3108
    %v3127 = vunpack.c.l.b16 %v3088
    %v3128 = vunpack.c.l.b16 %v3089
    %v3129 = vunpack.c.l.b16 %v3090
    %v3130 = vunpack.c.l.b16 %v3091
    %v3131 = vunpack.c.l.b16 %v3092
    %v3132 = vunpack.c.l.b16 %v3093
    %v3133 = vunpack.c.l.b16 %v3094
    %v3134 = vunpack.c.l.b16 %v3095
    %v3135 = vunpack.c.l.b16 %v3096
    %v3136 = vunpack.c.l.b16 %v3097
    %v3137 = vunpack.c.l.b16 %v3098
    %v3138 = vunpack.c.l.b16 %v3099
    %v3139 = vunpack.c.l.b16 %v3100
    %v3140 = vunpack.c.l.b16 %v3101
    %v3141 = vunpack.c.l.b16 %v3102
    %v3142 = vunpack.c.l.b16 %v3103
    %v3143 = vpack.c.b16 %v3128, %v3127
    %v3144 = vpack.c.b16 %v3130, %v3129
    %v3145 = vpack.c.b16 %v3132, %v3131
    %v3146 = vpack.c.b16 %v3134, %v3133
    %v3147 = vpack.c.b16 %v3136, %v3135
    %v3148 = vpack.c.b16 %v3138, %v3137
    %v3149 = vpack.c.b16 %v3140, %v3139
    %v3150 = vpack.c.b16 %v3142, %v3141
    %3159 = vmatprep.subr.bf16.mxu0 0
    %3160 = vmatpush1.bf16.msra.mxu0 %v3143
    %3161 = vmatprep.subr.bf16.mxu0 0
    %3162 = vmatpush1.bf16.msra.mxu0 %v3144
    %3163 = vmatprep.subr.bf16.mxu0 0
    %3164 = vmatpush1.bf16.msra.mxu0 %v3145
    %3165 = vmatprep.subr.bf16.mxu0 0
    %3166 = vmatpush1.bf16.msra.mxu0 %v3146
    %3167 = vmatprep.subr.bf16.mxu0 0
    %3168 = vmatpush1.bf16.msra.mxu0 %v3147
    %3169 = vmatprep.subr.bf16.mxu0 0
    %3170 = vmatpush1.bf16.msra.mxu0 %v3148
    %3171 = vmatprep.subr.bf16.mxu0 0
    %3172 = vmatpush1.bf16.msra.mxu0 %v3149
    %3173 = vmatprep.subr.bf16.mxu0 0
    %3174 = vmatpush1.bf16.msra.mxu0 %v3150
    %3175 = vmatprep.subr.bf16.mxu0 0
    %3176 = vmatpush1.bf16.msra.mxu0 0
    %3177 = vmatprep.subr.bf16.mxu0 0
    %3178 = vmatpush1.bf16.msra.mxu0 0
    %3179 = vmatprep.subr.bf16.mxu0 0
    %3180 = vmatpush1.bf16.msra.mxu0 0
    %3181 = vmatprep.subr.bf16.mxu0 0
    %3182 = vmatpush1.bf16.msra.mxu0 0
    %3183 = vmatprep.subr.bf16.mxu0 0
    %3184 = vmatpush1.bf16.msra.mxu0 0
    %3185 = vmatprep.subr.bf16.mxu0 0
    %3186 = vmatpush1.bf16.msra.mxu0 0
    %3187 = vmatprep.subr.bf16.mxu0 0
    %3188 = vmatpush1.bf16.msra.mxu0 0
    %3189 = vmatprep.subr.bf16.mxu0 0
    %3190 = vmatpush1.bf16.msra.mxu0 0
    %3191 = vmatprep.mubr.bf16.mxu0 0
    %3192 = vmatmul.mubr.bf16.gmra.mrb[0].mxu0 %v3087
    %v3193 = vpop.f32.mrb[0].mxu0
    %v3194 = vadd.f32 %v3109, %v3193
    %v3195 = vpop.f32.mrb[0].mxu0
    %v3196 = vpop.f32.mrb[0].mxu0
    %v3197 = vpop.f32.mrb[0].mxu0
    %3198 = vdwg.mxu0
    %v3199 = vxor.u32 %v3194, 2147483648
    %v3200 = vmul.f32 %v3199, 1.442695
    %v3201 = vpow.pop %v3200
    %v3202 = vadd.f32 %v3201, 1.0
    %v3203 = vrcp.pop %v3202
    %v3204 = vmul.f32 1.0, %v3203
    %v3205 = vmul.f32 %v3194, %v3204
    %v3206 = vpack.c.bf16 %v3205, %v3205
    %v3207 = vld [vmem:[%s6] sm:$0xf]
    %v3208 = vld [vmem:[%s6 + $0x4] sm:$0xf]
    %v3209 = vld [vmem:[%s6 + $0x8] sm:$0xf]
    %v3210 = vld [vmem:[%s6 + $0xc] sm:$0xf]
    %v3211 = vld [vmem:[%s6 + $0x10] sm:$0xf]
    %v3212 = vld [vmem:[%s6 + $0x14] sm:$0xf]
    %v3213 = vld [vmem:[%s6 + $0x18] sm:$0xf]
    %v3214 = vld [vmem:[%s6 + $0x1c] sm:$0xf]
    %v3215 = vld [vmem:[%s14] sm:$0x1]
    %v3217 = vlaneseq
    %v3218 = vshrl.u32 %v3217, 7
    %v3219 = vsub.s32 0, %v3218
    %v3220 = vrot.slane %v3215, %v3219
    %v3230 = vunpack.c.l.b16 %v3207
    %v3231 = vunpack.c.l.b16 %v3208
    %v3232 = vunpack.c.l.b16 %v3209
    %v3233 = vunpack.c.l.b16 %v3210
    %v3234 = vunpack.c.l.b16 %v3211
    %v3235 = vunpack.c.l.b16 %v3212
    %v3236 = vunpack.c.l.b16 %v3213
    %v3237 = vunpack.c.l.b16 %v3214
    %v3238 = vpack.c.b16 %v3231, %v3230
    %v3239 = vpack.c.b16 %v3233, %v3232
    %v3240 = vpack.c.b16 %v3235, %v3234
    %v3241 = vpack.c.b16 %v3237, %v3236
    %vm3246 = vcmask 523264
    %v3248 = vsel %vm3246, %v3206, 0
    %3250 = vmatprep.subr.bf16.mxu0 0
    %3251 = vmatpush1.bf16.msra.mxu0 %v3238
    %3252 = vmatprep.subr.bf16.mxu0 0
    %3253 = vmatpush1.bf16.msra.mxu0 %v3239
    %3254 = vmatprep.subr.bf16.mxu0 0
    %3255 = vmatpush1.bf16.msra.mxu0 %v3240
    %3256 = vmatprep.subr.bf16.mxu0 0
    %3257 = vmatpush1.bf16.msra.mxu0 %v3241
    %3258 = vmatprep.subr.bf16.mxu0 0
    %3259 = vmatpush1.bf16.msra.mxu0 0
    %3260 = vmatprep.subr.bf16.mxu0 0
    %3261 = vmatpush1.bf16.msra.mxu0 0
    %3262 = vmatprep.subr.bf16.mxu0 0
    %3263 = vmatpush1.bf16.msra.mxu0 0
    %3264 = vmatprep.subr.bf16.mxu0 0
    %3265 = vmatpush1.bf16.msra.mxu0 0
    %3266 = vmatprep.subr.bf16.mxu0 0
    %3267 = vmatpush1.bf16.msra.mxu0 0
    %3268 = vmatprep.subr.bf16.mxu0 0
    %3269 = vmatpush1.bf16.msra.mxu0 0
    %3270 = vmatprep.subr.bf16.mxu0 0
    %3271 = vmatpush1.bf16.msra.mxu0 0
    %3272 = vmatprep.subr.bf16.mxu0 0
    %3273 = vmatpush1.bf16.msra.mxu0 0
    %3274 = vmatprep.subr.bf16.mxu0 0
    %3275 = vmatpush1.bf16.msra.mxu0 0
    %3276 = vmatprep.subr.bf16.mxu0 0
    %3277 = vmatpush1.bf16.msra.mxu0 0
    %3278 = vmatprep.subr.bf16.mxu0 0
    %3279 = vmatpush1.bf16.msra.mxu0 0
    %3280 = vmatprep.subr.bf16.mxu0 0
    %3281 = vmatpush1.bf16.msra.mxu0 0
    %3282 = vmatprep.mubr.bf16.mxu0 0
    %3283 = vmatmul.mubr.bf16.gmra.mrb[0].mxu0 %v3248
    %v3284 = vpop.f32.mrb[0].mxu0
    %v3285 = vadd.f32 %v3220, %v3284
    %v3286 = vpop.f32.mrb[0].mxu0
    %v3287 = vpop.f32.mrb[0].mxu0
    %v3288 = vpop.f32.mrb[0].mxu0
    %3289 = vdwg.mxu0
    %v3290 = vxor.u32 %v3285, 2147483648
    %v3291 = vmul.f32 %v3290, 1.442695
    %v3292 = vpow.pop %v3291
    %v3293 = vadd.f32 %v3292, 1.0
    %v3294 = vrcp.pop %v3293
    %v3295 = vmul.f32 1.0, %v3294
    %v3296 = vmul.f32 %v3285, %v3295
    %v3297 = vpack.c.bf16 %v3296, %v3296
    %v3298 = vld [vmem:[%s7] sm:$0xf]
    %v3299 = vld [vmem:[%s7 + $0x4] sm:$0xf]
    %v3300 = vld [vmem:[%s7 + $0x8] sm:$0xf]
    %v3301 = vld [vmem:[%s7 + $0xc] sm:$0xf]
    %v3302 = vld [vmem:[%s15] sm:$0x1]
    %v3304 = vlaneseq
    %v3305 = vshrl.u32 %v3304, 7
    %v3306 = vsub.s32 0, %v3305
    %v3307 = vrot.slane %v3302, %v3306
    %v3313 = vunpack.c.l.b16 %v3298
    %v3314 = vunpack.c.l.b16 %v3299
    %v3315 = vunpack.c.l.b16 %v3300
    %v3316 = vunpack.c.l.b16 %v3301
    %v3317 = vpack.c.b16 %v3314, %v3313
    %v3318 = vpack.c.b16 %v3316, %v3315
    %v3322 = vsel %vm261, %v3297, 0
    %3324 = vmatprep.subr.bf16.mxu0 0
    %3325 = vmatpush1.bf16.msra.mxu0 %v3317
    %3326 = vmatprep.subr.bf16.mxu0 0
    %3327 = vmatpush1.bf16.msra.mxu0 %v3318
    %3328 = vmatprep.subr.bf16.mxu0 0
    %3329 = vmatpush1.bf16.msra.mxu0 0
    %3330 = vmatprep.subr.bf16.mxu0 0
    %3331 = vmatpush1.bf16.msra.mxu0 0
    %3332 = vmatprep.subr.bf16.mxu0 0
    %3333 = vmatpush1.bf16.msra.mxu0 0
    %3334 = vmatprep.subr.bf16.mxu0 0
    %3335 = vmatpush1.bf16.msra.mxu0 0
    %3336 = vmatprep.subr.bf16.mxu0 0
    %3337 = vmatpush1.bf16.msra.mxu0 0
    %3338 = vmatprep.subr.bf16.mxu0 0
    %3339 = vmatpush1.bf16.msra.mxu0 0
    %3340 = vmatprep.subr.bf16.mxu0 0
    %3341 = vmatpush1.bf16.msra.mxu0 0
    %3342 = vmatprep.subr.bf16.mxu0 0
    %3343 = vmatpush1.bf16.msra.mxu0 0
    %3344 = vmatprep.subr.bf16.mxu0 0
    %3345 = vmatpush1.bf16.msra.mxu0 0
    %3346 = vmatprep.subr.bf16.mxu0 0
    %3347 = vmatpush1.bf16.msra.mxu0 0
    %3348 = vmatprep.subr.bf16.mxu0 0
    %3349 = vmatpush1.bf16.msra.mxu0 0
    %3350 = vmatprep.subr.bf16.mxu0 0
    %3351 = vmatpush1.bf16.msra.mxu0 0
    %3352 = vmatprep.subr.bf16.mxu0 0
    %3353 = vmatpush1.bf16.msra.mxu0 0
    %3354 = vmatprep.subr.bf16.mxu0 0
    %3355 = vmatpush1.bf16.msra.mxu0 0
    %3356 = vmatprep.mubr.bf16.mxu0 0
    %3357 = vmatmul.mubr.bf16.gmra.mrb[0].mxu0 %v3322
    %v3358 = vpop.f32.mrb[0].mxu0
    %v3359 = vadd.f32 %v3307, %v3358
    %v3360 = vpop.f32.mrb[0].mxu0
    %v3361 = vpop.f32.mrb[0].mxu0
    %v3362 = vpop.f32.mrb[0].mxu0
    %3363 = vdwg.mxu0
    %v3364 = vxor.u32 %v3359, 2147483648
    %v3365 = vmul.f32 %v3364, 1.442695
    %v3366 = vpow.pop %v3365
    %v3367 = vadd.f32 %v3366, 1.0
    %v3368 = vrcp.pop %v3367
    %v3369 = vmul.f32 1.0, %v3368
    %v3370 = vmul.f32 %v3359, %v3369
    %v3371 = vpack.c.bf16 %v3370, %v3370
    %v3372 = vld [vmem:[%s8] sm:$0xf]
    %v3373 = vld [vmem:[%s8 + $0x4] sm:$0xf]
    %v3374 = vld [vmem:[%s16] sm:$0x1]
    %v3376 = vlaneseq
    %v3377 = vshrl.u32 %v3376, 7
    %v3378 = vsub.s32 0, %v3377
    %v3379 = vrot.slane %v3374, %v3378
    %v3383 = vunpack.c.l.b16 %v3372
    %v3384 = vunpack.c.l.b16 %v3373
    %v3385 = vpack.c.b16 %v3384, %v3383
    %vm3387 = vcmask 130048
    %v3389 = vsel %vm3387, %v3371, 0
    %3391 = vmatprep.subr.bf16.mxu0 0
    %3392 = vmatpush1.bf16.msra.mxu0 %v3385
    %3393 = vmatprep.subr.bf16.mxu0 0
    %3394 = vmatpush1.bf16.msra.mxu0 0
    %3395 = vmatprep.subr.bf16.mxu0 0
    %3396 = vmatpush1.bf16.msra.mxu0 0
    %3397 = vmatprep.subr.bf16.mxu0 0
    %3398 = vmatpush1.bf16.msra.mxu0 0
    %3399 = vmatprep.subr.bf16.mxu0 0
    %3400 = vmatpush1.bf16.msra.mxu0 0
    %3401 = vmatprep.subr.bf16.mxu0 0
    %3402 = vmatpush1.bf16.msra.mxu0 0
    %3403 = vmatprep.subr.bf16.mxu0 0
    %3404 = vmatpush1.bf16.msra.mxu0 0
    %3405 = vmatprep.subr.bf16.mxu0 0
    %3406 = vmatpush1.bf16.msra.mxu0 0
    %3407 = vmatprep.subr.bf16.mxu0 0
    %3408 = vmatpush1.bf16.msra.mxu0 0
    %3409 = vmatprep.subr.bf16.mxu0 0
    %3410 = vmatpush1.bf16.msra.mxu0 0
    %3411 = vmatprep.subr.bf16.mxu0 0
    %3412 = vmatpush1.bf16.msra.mxu0 0
    %3413 = vmatprep.subr.bf16.mxu0 0
    %3414 = vmatpush1.bf16.msra.mxu0 0
    %3415 = vmatprep.subr.bf16.mxu0 0
    %3416 = vmatpush1.bf16.msra.mxu0 0
    %3417 = vmatprep.subr.bf16.mxu0 0
    %3418 = vmatpush1.bf16.msra.mxu0 0
    %3419 = vmatprep.subr.bf16.mxu0 0
    %3420 = vmatpush1.bf16.msra.mxu0 0
    %3421 = vmatprep.subr.bf16.mxu0 0
    %3422 = vmatpush1.bf16.msra.mxu0 0
    %3423 = vmatprep.mubr.bf16.mxu0 0
    %3424 = vmatmul.mubr.bf16.gmra.mrb[0].mxu0 %v3389
    %v3425 = vpop.f32.mrb[0].mxu0
    %v3426 = vadd.f32 %v3379, %v3425
    %v3427 = vpop.f32.mrb[0].mxu0
    %v3428 = vpop.f32.mrb[0].mxu0
    %v3429 = vpop.f32.mrb[0].mxu0
    %3430 = vdwg.mxu0
    %vm3431 = vcmask 15360
    %3432 = vst.msk [vmem:[%s17] sm:$0xff] %vm3431, %v3426
    // Predicated region
    $region90: #{deepnet2_forward.1} parent=1 // pred_check
      _
    $region91: #{deepnet2_forward.1} parent=1 // pred_check_branch
      %3434 = sbr.rel (0) target = $region93
    $region92: #{deepnet2_forward.1} parent=1 // pred_region
      _
    $region93: #{deepnet2_forward.1} parent=1 // pred_fallthru
      _
    // Predicated region
    $region94: #{deepnet2_forward.1} parent=1 // pred_check
      _
    $region95: #{deepnet2_forward.1} parent=1 // pred_check_branch
      %3436 = sbr.rel (0) target = $region97
    $region96: #{deepnet2_forward.1} parent=1 // pred_region
      _
    $region97: #{deepnet2_forward.1} parent=1 // pred_fallthru
      _
    %3437 = vsyncpa [#allocation3], 1
    %3438 = vsyncpa [#allocation5], 1
    %3439 = vsyncpa [#allocation8], 1

</llo_original>
